<compile_context>
chip_gen: v6e
topology: v6e:2x2x1
jax: 0.10.0
libtpu: 0.0.40
codegen_flags: <defaults>
</compile_context>

<pallas_src>
import functools
import math
from typing import NamedTuple

import jax
import jax.numpy as jnp
from jax.experimental import pallas as pl
from jax.experimental.pallas import tpu as pltpu


# ------------------------------ static config -------------------------------

class ViTConfig(NamedTuple):
    in_ch: int
    patch: int
    image_size: int
    width: int
    heads: int
    layers: int
    out_dim: int

    @property
    def grid(self):
        return self.image_size // self.patch

    @property
    def n_tok(self):
        return self.grid * self.grid + 1


# ------------------------------ fused kernel --------------------------------

def _fused_vit_kernel(heads, n_tok,
                      patches_ref, conv1_w_ref, cls_ref, pos_ref,
                      ln_pre_g_ref, ln_pre_b_ref,
                      ln1_g_ref, ln1_b_ref, in_w_ref, in_b_ref,
                      out_w_ref, out_b_ref,
                      ln2_g_ref, ln2_b_ref, fc_w_ref, fc_b_ref,
                      cp_w_ref, cp_b_ref,
                      o_ref):
    f32 = jnp.float32
    rows, width = o_ref.shape
    B = rows // n_tok
    gg = n_tok - 1
    hd = width // heads
    scale = 1.0 / math.sqrt(hd)

    def layernorm(v, g, b):
        mu = jnp.mean(v, axis=-1, keepdims=True)
        vc = v - mu
        var = jnp.mean(vc * vc, axis=-1, keepdims=True)
        return vc * jax.lax.rsqrt(var + 1e-5) * g + b

    # --- patch embedding (conv stride=patch, bias=False) as one MXU matmul ---
    tok = jnp.dot(patches_ref[...].astype(f32), conv1_w_ref[...].astype(f32),
                  preferred_element_type=f32)                       # (B*gg, width)
    cls = cls_ref[...].astype(f32)                                  # (1, width)
    pos = pos_ref[...].astype(f32)                                  # (n_tok, width)

    # --- [CLS | patch tokens] + positional embedding, lane-dense (rows, width) ---
    per_batch = []
    for b in range(B):
        tb = jnp.concatenate([cls, tok[b * gg:(b + 1) * gg, :]], axis=0) + pos
        per_batch.append(tb)
    x = jnp.concatenate(per_batch, axis=0)                          # (B*n_tok, width)

    # --- ln_pre ---
    x = layernorm(x, ln_pre_g_ref[...].astype(f32), ln_pre_b_ref[...].astype(f32))

    n_layers = in_w_ref.shape[0]
    for l in range(n_layers):                                       # static unroll
        # ---------------- attention sublayer ----------------
        h = layernorm(x, ln1_g_ref[l].astype(f32), ln1_b_ref[l].astype(f32))
        qkv = jnp.dot(h, in_w_ref[l].astype(f32),
                      preferred_element_type=f32) + in_b_ref[l].astype(f32)

        per_batch = []
        for b in range(B):
            r0 = b * n_tok
            q_b = qkv[r0:r0 + n_tok, 0 * width:1 * width]
            k_b = qkv[r0:r0 + n_tok, 1 * width:2 * width]
            v_b = qkv[r0:r0 + n_tok, 2 * width:3 * width]
            head_out = []
            for hh in range(heads):
                c0 = hh * hd
                qh = q_b[:, c0:c0 + hd]
                kh = k_b[:, c0:c0 + hd]
                vh = v_b[:, c0:c0 + hd]
                # q @ k^T without an explicit transpose (contract last dims)
                s = jax.lax.dot_general(
                    qh, kh, (((1,), (1,)), ((), ())),
                    preferred_element_type=f32) * scale             # (n_tok, n_tok)
                s = s - jnp.max(s, axis=-1, keepdims=True)
                e = jnp.exp(s)                                      # EUP
                denom = jnp.sum(e, axis=-1, keepdims=True)
                p = e * pl.reciprocal(denom, approx=True)           # EUP, not VALU
                head_out.append(jnp.dot(p, vh, preferred_element_type=f32))
            per_batch.append(jnp.concatenate(head_out, axis=1))     # (n_tok, width)
        attn = jnp.concatenate(per_batch, axis=0)                   # (B*n_tok, width)

        # out_proj + bias + residual fused as matmul epilogue
        x = x + jnp.dot(attn, out_w_ref[l].astype(f32),
                        preferred_element_type=f32) + out_b_ref[l].astype(f32)

        # ---------------- MLP sublayer ----------------
        h = layernorm(x, ln2_g_ref[l].astype(f32), ln2_b_ref[l].astype(f32))
        h = jnp.dot(h, fc_w_ref[l].astype(f32),
                    preferred_element_type=f32) + fc_b_ref[l].astype(f32)
        h = h * jax.nn.sigmoid(1.702 * h)                           # QuickGELU (EUP)
        x = x + jnp.dot(h, cp_w_ref[l].astype(f32),
                        preferred_element_type=f32) + cp_b_ref[l].astype(f32)

    o_ref[...] = x.astype(o_ref.dtype)


def _run_fused_backbone(cfg, params, patches):
    B = patches.shape[0] // (cfg.grid * cfg.grid)
    rows = B * cfg.n_tok
    kernel = functools.partial(_fused_vit_kernel, cfg.heads, cfg.n_tok)
    operands = (
        patches, params['conv1_w'], params['cls'], params['pos'],
        params['ln_pre_g'], params['ln_pre_b'],
        params['ln1_g'], params['ln1_b'], params['in_w'], params['in_b'],
        params['out_w'], params['out_b'],
        params['ln2_g'], params['ln2_b'], params['fc_w'], params['fc_b'],
        params['cp_w'], params['cp_b'],
    )
    # Tiny synthetic config: everything fits in VMEM as single full blocks, no grid.
    # TODO(synk): at real ViT-B sizes (width=768, N=50, 12 layers) the row dim would
    # be tiled with BlockSpec + grid (128/256-aligned), bf16 MXU feeds, and
    # dimension_semantics=('parallel', ..., 'arbitrary').
    return pl.pallas_call(
        kernel,
        out_shape=jax.ShapeDtypeStruct((rows, cfg.width), patches.dtype),
        in_specs=[pl.BlockSpec(memory_space=pltpu.MemorySpace.VMEM)
                  for _ in operands],
        out_specs=pl.BlockSpec(memory_space=pltpu.MemorySpace.VMEM),
        compiler_params=pltpu.CompilerParams(vmem_limit_bytes=32 * 1024 * 1024),
    )(*operands)


# ------------------------------ jitted forward ------------------------------

def _visual_forward(cfg, params, x):
    B, C, H, W = x.shape
    g, p = cfg.grid, cfg.patch

    # Patch extraction is pure layout glue (XLA fuses it under jit).
    patches = x.reshape(B, C, g, p, g, p).transpose(0, 2, 4, 1, 3, 5)
    patches = patches.reshape(B * g * g, C * p * p)

    xs = _run_fused_backbone(cfg, params, patches)                  # (B*n_tok, width)
    xs = xs.reshape(B, cfg.n_tok, cfg.width)

    # ln_post on CLS token + projection: (B, width) problem — plain JAX, no launch.
    cls_tok = xs[:, 0, :].astype(jnp.float32)
    mu = jnp.mean(cls_tok, axis=-1, keepdims=True)
    cc = cls_tok - mu
    var = jnp.mean(cc * cc, axis=-1, keepdims=True)
    cls_tok = cc * jax.lax.rsqrt(var + 1e-5) * params['ln_post_g'] + params['ln_post_b']
    return (cls_tok @ params['proj'].astype(jnp.float32)).astype(x.dtype)


# ------------------------------- parameters ---------------------------------

def init_params(key, cfg, dtype=jnp.float32):
    """Deterministic synthetic CLIP-ViT-style visual weights (scaled-down config)."""
    W, L = cfg.width, cfg.layers

    def nrm(k, shape, scale=0.02):
        return (scale * jax.random.normal(k, shape)).astype(dtype)

    ks = jax.random.split(key, 8)
    return dict(
        conv1_w=nrm(ks[0], (cfg.in_ch * cfg.patch * cfg.patch, W)),
        cls=nrm(ks[1], (1, W)),
        pos=nrm(ks[2], (cfg.n_tok, W)),          # precomputed learned-style PE
        ln_pre_g=jnp.ones((1, W), dtype), ln_pre_b=jnp.zeros((1, W), dtype),
        ln_post_g=jnp.ones((W,), dtype), ln_post_b=jnp.zeros((W,), dtype),
        proj=nrm(ks[3], (W, cfg.out_dim)),
        ln1_g=jnp.ones((L, 1, W), dtype), ln1_b=jnp.zeros((L, 1, W), dtype),
        ln2_g=jnp.ones((L, 1, W), dtype), ln2_b=jnp.zeros((L, 1, W), dtype),
        in_w=nrm(ks[4], (L, W, 3 * W)), in_b=jnp.zeros((L, 1, 3 * W), dtype),
        out_w=nrm(ks[5], (L, W, W)), out_b=jnp.zeros((L, 1, W), dtype),
        fc_w=nrm(ks[6], (L, W, 4 * W)), fc_b=jnp.zeros((L, 1, 4 * W), dtype),
        cp_w=nrm(ks[7], (L, 4 * W, W)), cp_b=jnp.zeros((L, 1, W), dtype),
    )


# --------------------------------- model ------------------------------------

class GeoLocalizationNet:
    """JAX/Pallas re-implementation of the image path of GeoLocalizationNet.forward:
    forward(x) -> image_features = self.backbone(x)  (CLIP-ViT visual)."""

    _PATCH = {'CLIP-ViT-B-32': 32, 'CLIP-ViT-B-16': 16}

    def __init__(self, backbone_name='CLIP-ViT-B-32', fc_output_dim=16,
                 image_size=64, seed=0):
        assert backbone_name in ('CLIP-ViT-B-32', 'CLIP-ViT-B-16',
                                 'CLIP-RN50', 'CLIP-RN101')
        self.backbone_name = backbone_name
        # TODO(synk): synthetic, scaled-down ViT config (width=32, 2 layers, 4 heads)
        # vs. real CLIP ViT-B (width=768, 12 layers, 12 heads); dataflow is identical.
        patch = self._PATCH.get(backbone_name, 32)
        self.cfg = ViTConfig(in_ch=3, patch=patch, image_size=image_size,
                             width=32, heads=4, layers=2, out_dim=fc_output_dim)
        self.params = init_params(jax.random.PRNGKey(seed), self.cfg)
        # TODO(synk): self.aggregation (L2Norm/GeM/Flatten/Linear/L2Norm) is built in
        # the reference __init__ but never used by this forward path.
        self._fwd = jax.jit(functools.partial(_visual_forward, self.cfg))

    def __call__(self, x=None, prompt_learner=None, label=None, get_text=False):
        if get_text:
            # TODO(synk): text path (prompt_learner + TextEncoder) requires a CLIP
            # text-transformer checkpoint; not reproduced with synthetic weights.
            raise NotImplementedError
        if self.backbone_name in ('CLIP-ViT-B-32', 'CLIP-ViT-B-16'):
            return self._fwd(self.params, x)
        # TODO(synk): CLIP-RN50/RN101 `backbone(x, stage=1)` (modified-ResNet stem +
        # stage-1 feature maps) is not implemented here.
        raise NotImplementedError


# ----------------------------------- main ------------------------------------

if __name__ == "__main__":
    key = jax.random.PRNGKey(0)
    # B=2, C=3, H=W=64 with patch=32 (matches 'CLIP-ViT-B-32' patch size) -> 5 tokens.
    x = jax.random.normal(key, (2, 3, 64, 64), dtype=jnp.float32)

    model = GeoLocalizationNet(backbone_name='CLIP-ViT-B-32', fc_output_dim=16,
                               image_size=64, seed=0)
    out = jax.block_until_ready(model(x))          # compile + run
    out = jax.block_until_ready(model(x))          # cached jitted path
    assert out.shape == (2, 16) and out.dtype == jnp.float32
    assert bool(jnp.all(jnp.isfinite(out)))
    print("KERNEL_OK")
</pallas_src>

<mosaic_0001>
module attributes {stable_mosaic.version = 11 : i64} {
  func.func @_fused_vit_kernel(%arg0: memref<8x3072xf32, #tpu.memory_space<vmem>>, %arg1: memref<3072x32xf32, #tpu.memory_space<vmem>>, %arg2: memref<1x32xf32, #tpu.memory_space<vmem>>, %arg3: memref<5x32xf32, #tpu.memory_space<vmem>>, %arg4: memref<1x32xf32, #tpu.memory_space<vmem>>, %arg5: memref<1x32xf32, #tpu.memory_space<vmem>>, %arg6: memref<2x1x32xf32, #tpu.memory_space<vmem>>, %arg7: memref<2x1x32xf32, #tpu.memory_space<vmem>>, %arg8: memref<2x32x96xf32, #tpu.memory_space<vmem>>, %arg9: memref<2x1x96xf32, #tpu.memory_space<vmem>>, %arg10: memref<2x32x32xf32, #tpu.memory_space<vmem>>, %arg11: memref<2x1x32xf32, #tpu.memory_space<vmem>>, %arg12: memref<2x1x32xf32, #tpu.memory_space<vmem>>, %arg13: memref<2x1x32xf32, #tpu.memory_space<vmem>>, %arg14: memref<2x32x128xf32, #tpu.memory_space<vmem>>, %arg15: memref<2x1x128xf32, #tpu.memory_space<vmem>>, %arg16: memref<2x128x32xf32, #tpu.memory_space<vmem>>, %arg17: memref<2x1x32xf32, #tpu.memory_space<vmem>>, %arg18: memref<10x32xf32, #tpu.memory_space<vmem>>) attributes {dimension_semantics = [], scalar_prefetch = 0 : i64, scratch_operands = 0 : i64, tpu.core_type = #tpu.core_type<tc>} {
    %c0 = arith.constant 0 : index
    %c0_0 = arith.constant 0 : index
    %0 = vector.load %arg0[%c0, %c0_0] : memref<8x3072xf32, #tpu.memory_space<vmem>>, vector<8x3072xf32>
    %c0_1 = arith.constant 0 : index
    %c0_2 = arith.constant 0 : index
    %1 = vector.load %arg1[%c0_1, %c0_2] : memref<3072x32xf32, #tpu.memory_space<vmem>>, vector<3072x32xf32>
    %cst = arith.constant dense<0.000000e+00> : vector<8x32xf32>
    %2 = tpu.matmul %0, %1, %cst {dimension_numbers = #tpu.dot_dimension_numbers<[1], [0], [0], [1], [0, 0, 1, 1], [], []>} : vector<8x3072xf32>, vector<3072x32xf32>, vector<8x32xf32> -> vector<8x32xf32>
    %c0_3 = arith.constant 0 : index
    %c0_4 = arith.constant 0 : index
    %3 = vector.load %arg2[%c0_3, %c0_4] : memref<1x32xf32, #tpu.memory_space<vmem>>, vector<1x32xf32>
    %c0_5 = arith.constant 0 : index
    %c0_6 = arith.constant 0 : index
    %4 = vector.load %arg3[%c0_5, %c0_6] : memref<5x32xf32, #tpu.memory_space<vmem>>, vector<5x32xf32>
    %5 = vector.extract_strided_slice %2 {offsets = [0, 0], sizes = [4, 32], strides = [1, 1]} : vector<8x32xf32> to vector<4x32xf32>
    %6 = tpu.concatenate %3, %5 in 0 : vector<1x32xf32>, vector<4x32xf32> -> vector<5x32xf32>
    %7 = arith.addf %6, %4 : vector<5x32xf32>
    %8 = vector.extract_strided_slice %2 {offsets = [4, 0], sizes = [4, 32], strides = [1, 1]} : vector<8x32xf32> to vector<4x32xf32>
    %9 = tpu.concatenate %3, %8 in 0 : vector<1x32xf32>, vector<4x32xf32> -> vector<5x32xf32>
    %10 = arith.addf %9, %4 : vector<5x32xf32>
    %11 = tpu.concatenate %7, %10 in 0 : vector<5x32xf32>, vector<5x32xf32> -> vector<10x32xf32>
    %c0_7 = arith.constant 0 : index
    %c0_8 = arith.constant 0 : index
    %12 = vector.load %arg4[%c0_7, %c0_8] : memref<1x32xf32, #tpu.memory_space<vmem>>, vector<1x32xf32>
    %c0_9 = arith.constant 0 : index
    %c0_10 = arith.constant 0 : index
    %13 = vector.load %arg5[%c0_9, %c0_10] : memref<1x32xf32, #tpu.memory_space<vmem>>, vector<1x32xf32>
    %cst_11 = arith.constant dense<0.000000e+00> : vector<10xf32>
    %14 = vector.multi_reduction <add>, %11, %cst_11 [1] : vector<10x32xf32> to vector<10xf32>
    %15 = vector.shape_cast %14 : vector<10xf32> to vector<10x1xf32>
    %cst_12 = arith.constant 3.200000e+01 : f32
    %16 = vector.broadcast %cst_12 : f32 to vector<10x1xf32>
    %17 = arith.divf %15, %16 : vector<10x1xf32>
    %18 = vector.broadcast %17 : vector<10x1xf32> to vector<10x32xf32>
    %19 = arith.subf %11, %18 : vector<10x32xf32>
    %20 = arith.mulf %19, %19 : vector<10x32xf32>
    %cst_13 = arith.constant dense<0.000000e+00> : vector<10xf32>
    %21 = vector.multi_reduction <add>, %20, %cst_13 [1] : vector<10x32xf32> to vector<10xf32>
    %22 = vector.shape_cast %21 : vector<10xf32> to vector<10x1xf32>
    %cst_14 = arith.constant 3.200000e+01 : f32
    %23 = vector.broadcast %cst_14 : f32 to vector<10x1xf32>
    %24 = arith.divf %22, %23 : vector<10x1xf32>
    %cst_15 = arith.constant 9.99999974E-6 : f32
    %25 = vector.broadcast %cst_15 : f32 to vector<10x1xf32>
    %26 = arith.addf %24, %25 : vector<10x1xf32>
    %27 = math.rsqrt %26 : vector<10x1xf32>
    %28 = vector.broadcast %27 : vector<10x1xf32> to vector<10x32xf32>
    %29 = arith.mulf %19, %28 : vector<10x32xf32>
    %30 = vector.broadcast %12 : vector<1x32xf32> to vector<10x32xf32>
    %31 = arith.mulf %29, %30 : vector<10x32xf32>
    %32 = vector.broadcast %13 : vector<1x32xf32> to vector<10x32xf32>
    %33 = arith.addf %31, %32 : vector<10x32xf32>
    %c0_16 = arith.constant 0 : index
    %c0_17 = arith.constant 0 : index
    %c0_18 = arith.constant 0 : index
    %34 = vector.load %arg6[%c0_16, %c0_17, %c0_18] : memref<2x1x32xf32, #tpu.memory_space<vmem>>, vector<1x1x32xf32>
    %35 = vector.shape_cast %34 : vector<1x1x32xf32> to vector<1x32xf32>
    %c0_19 = arith.constant 0 : index
    %c0_20 = arith.constant 0 : index
    %c0_21 = arith.constant 0 : index
    %36 = vector.load %arg7[%c0_19, %c0_20, %c0_21] : memref<2x1x32xf32, #tpu.memory_space<vmem>>, vector<1x1x32xf32>
    %37 = vector.shape_cast %36 : vector<1x1x32xf32> to vector<1x32xf32>
    %cst_22 = arith.constant dense<0.000000e+00> : vector<10xf32>
    %38 = vector.multi_reduction <add>, %33, %cst_22 [1] : vector<10x32xf32> to vector<10xf32>
    %39 = vector.shape_cast %38 : vector<10xf32> to vector<10x1xf32>
    %cst_23 = arith.constant 3.200000e+01 : f32
    %40 = vector.broadcast %cst_23 : f32 to vector<10x1xf32>
    %41 = arith.divf %39, %40 : vector<10x1xf32>
    %42 = vector.broadcast %41 : vector<10x1xf32> to vector<10x32xf32>
    %43 = arith.subf %33, %42 : vector<10x32xf32>
    %44 = arith.mulf %43, %43 : vector<10x32xf32>
    %cst_24 = arith.constant dense<0.000000e+00> : vector<10xf32>
    %45 = vector.multi_reduction <add>, %44, %cst_24 [1] : vector<10x32xf32> to vector<10xf32>
    %46 = vector.shape_cast %45 : vector<10xf32> to vector<10x1xf32>
    %cst_25 = arith.constant 3.200000e+01 : f32
    %47 = vector.broadcast %cst_25 : f32 to vector<10x1xf32>
    %48 = arith.divf %46, %47 : vector<10x1xf32>
    %cst_26 = arith.constant 9.99999974E-6 : f32
    %49 = vector.broadcast %cst_26 : f32 to vector<10x1xf32>
    %50 = arith.addf %48, %49 : vector<10x1xf32>
    %51 = math.rsqrt %50 : vector<10x1xf32>
    %52 = vector.broadcast %51 : vector<10x1xf32> to vector<10x32xf32>
    %53 = arith.mulf %43, %52 : vector<10x32xf32>
    %54 = vector.broadcast %35 : vector<1x32xf32> to vector<10x32xf32>
    %55 = arith.mulf %53, %54 : vector<10x32xf32>
    %56 = vector.broadcast %37 : vector<1x32xf32> to vector<10x32xf32>
    %57 = arith.addf %55, %56 : vector<10x32xf32>
    %c0_27 = arith.constant 0 : index
    %c0_28 = arith.constant 0 : index
    %c0_29 = arith.constant 0 : index
    %58 = vector.load %arg8[%c0_27, %c0_28, %c0_29] : memref<2x32x96xf32, #tpu.memory_space<vmem>>, vector<1x32x96xf32>
    %59 = vector.shape_cast %58 : vector<1x32x96xf32> to vector<32x96xf32>
    %cst_30 = arith.constant dense<0.000000e+00> : vector<10x96xf32>
    %60 = tpu.matmul %57, %59, %cst_30 {dimension_numbers = #tpu.dot_dimension_numbers<[1], [0], [0], [1], [0, 0, 1, 1], [], []>} : vector<10x32xf32>, vector<32x96xf32>, vector<10x96xf32> -> vector<10x96xf32>
    %c0_31 = arith.constant 0 : index
    %c0_32 = arith.constant 0 : index
    %c0_33 = arith.constant 0 : index
    %61 = vector.load %arg9[%c0_31, %c0_32, %c0_33] : memref<2x1x96xf32, #tpu.memory_space<vmem>>, vector<1x1x96xf32>
    %62 = vector.shape_cast %61 : vector<1x1x96xf32> to vector<1x96xf32>
    %63 = vector.broadcast %62 : vector<1x96xf32> to vector<10x96xf32>
    %64 = arith.addf %60, %63 : vector<10x96xf32>
    %65 = vector.extract_strided_slice %64 {offsets = [0, 0], sizes = [5, 32], strides = [1, 1]} : vector<10x96xf32> to vector<5x32xf32>
    %66 = vector.extract_strided_slice %64 {offsets = [0, 32], sizes = [5, 32], strides = [1, 1]} : vector<10x96xf32> to vector<5x32xf32>
    %67 = vector.extract_strided_slice %64 {offsets = [0, 64], sizes = [5, 32], strides = [1, 1]} : vector<10x96xf32> to vector<5x32xf32>
    %68 = vector.extract_strided_slice %65 {offsets = [0, 0], sizes = [5, 8], strides = [1, 1]} : vector<5x32xf32> to vector<5x8xf32>
    %69 = vector.extract_strided_slice %66 {offsets = [0, 0], sizes = [5, 8], strides = [1, 1]} : vector<5x32xf32> to vector<5x8xf32>
    %70 = vector.extract_strided_slice %67 {offsets = [0, 0], sizes = [5, 8], strides = [1, 1]} : vector<5x32xf32> to vector<5x8xf32>
    %cst_34 = arith.constant dense<0.000000e+00> : vector<5x5xf32>
    %71 = tpu.matmul %68, %69, %cst_34 {dimension_numbers = #tpu.dot_dimension_numbers<[1], [1], [0], [0], [0, 0, 1, 0], [], []>} : vector<5x8xf32>, vector<5x8xf32>, vector<5x5xf32> -> vector<5x5xf32>
    %cst_35 = arith.constant 0.353553385 : f32
    %72 = vector.broadcast %cst_35 : f32 to vector<5x5xf32>
    %73 = arith.mulf %71, %72 : vector<5x5xf32>
    %cst_36 = arith.constant dense<0xFF800000> : vector<5xf32>
    %74 = vector.multi_reduction <maximumf>, %73, %cst_36 [1] : vector<5x5xf32> to vector<5xf32>
    %75 = vector.shape_cast %74 : vector<5xf32> to vector<5x1xf32>
    %76 = vector.broadcast %75 : vector<5x1xf32> to vector<5x5xf32>
    %77 = arith.subf %73, %76 : vector<5x5xf32>
    %78 = math.exp %77 : vector<5x5xf32>
    %cst_37 = arith.constant dense<0.000000e+00> : vector<5xf32>
    %79 = vector.multi_reduction <add>, %78, %cst_37 [1] : vector<5x5xf32> to vector<5xf32>
    %80 = vector.shape_cast %79 : vector<5xf32> to vector<5x1xf32>
    %81 = tpu.reciprocal %80 {approx = true} : vector<5x1xf32> -> vector<5x1xf32>
    %82 = vector.broadcast %81 : vector<5x1xf32> to vector<5x5xf32>
    %83 = arith.mulf %78, %82 : vector<5x5xf32>
    %cst_38 = arith.constant dense<0.000000e+00> : vector<5x8xf32>
    %84 = tpu.matmul %83, %70, %cst_38 {dimension_numbers = #tpu.dot_dimension_numbers<[1], [0], [0], [1], [0, 0, 1, 1], [], []>} : vector<5x5xf32>, vector<5x8xf32>, vector<5x8xf32> -> vector<5x8xf32>
    %85 = vector.extract_strided_slice %65 {offsets = [0, 8], sizes = [5, 8], strides = [1, 1]} : vector<5x32xf32> to vector<5x8xf32>
    %86 = vector.extract_strided_slice %66 {offsets = [0, 8], sizes = [5, 8], strides = [1, 1]} : vector<5x32xf32> to vector<5x8xf32>
    %87 = vector.extract_strided_slice %67 {offsets = [0, 8], sizes = [5, 8], strides = [1, 1]} : vector<5x32xf32> to vector<5x8xf32>
    %cst_39 = arith.constant dense<0.000000e+00> : vector<5x5xf32>
    %88 = tpu.matmul %85, %86, %cst_39 {dimension_numbers = #tpu.dot_dimension_numbers<[1], [1], [0], [0], [0, 0, 1, 0], [], []>} : vector<5x8xf32>, vector<5x8xf32>, vector<5x5xf32> -> vector<5x5xf32>
    %cst_40 = arith.constant 0.353553385 : f32
    %89 = vector.broadcast %cst_40 : f32 to vector<5x5xf32>
    %90 = arith.mulf %88, %89 : vector<5x5xf32>
    %cst_41 = arith.constant dense<0xFF800000> : vector<5xf32>
    %91 = vector.multi_reduction <maximumf>, %90, %cst_41 [1] : vector<5x5xf32> to vector<5xf32>
    %92 = vector.shape_cast %91 : vector<5xf32> to vector<5x1xf32>
    %93 = vector.broadcast %92 : vector<5x1xf32> to vector<5x5xf32>
    %94 = arith.subf %90, %93 : vector<5x5xf32>
    %95 = math.exp %94 : vector<5x5xf32>
    %cst_42 = arith.constant dense<0.000000e+00> : vector<5xf32>
    %96 = vector.multi_reduction <add>, %95, %cst_42 [1] : vector<5x5xf32> to vector<5xf32>
    %97 = vector.shape_cast %96 : vector<5xf32> to vector<5x1xf32>
    %98 = tpu.reciprocal %97 {approx = true} : vector<5x1xf32> -> vector<5x1xf32>
    %99 = vector.broadcast %98 : vector<5x1xf32> to vector<5x5xf32>
    %100 = arith.mulf %95, %99 : vector<5x5xf32>
    %cst_43 = arith.constant dense<0.000000e+00> : vector<5x8xf32>
    %101 = tpu.matmul %100, %87, %cst_43 {dimension_numbers = #tpu.dot_dimension_numbers<[1], [0], [0], [1], [0, 0, 1, 1], [], []>} : vector<5x5xf32>, vector<5x8xf32>, vector<5x8xf32> -> vector<5x8xf32>
    %102 = vector.extract_strided_slice %65 {offsets = [0, 16], sizes = [5, 8], strides = [1, 1]} : vector<5x32xf32> to vector<5x8xf32>
    %103 = vector.extract_strided_slice %66 {offsets = [0, 16], sizes = [5, 8], strides = [1, 1]} : vector<5x32xf32> to vector<5x8xf32>
    %104 = vector.extract_strided_slice %67 {offsets = [0, 16], sizes = [5, 8], strides = [1, 1]} : vector<5x32xf32> to vector<5x8xf32>
    %cst_44 = arith.constant dense<0.000000e+00> : vector<5x5xf32>
    %105 = tpu.matmul %102, %103, %cst_44 {dimension_numbers = #tpu.dot_dimension_numbers<[1], [1], [0], [0], [0, 0, 1, 0], [], []>} : vector<5x8xf32>, vector<5x8xf32>, vector<5x5xf32> -> vector<5x5xf32>
    %cst_45 = arith.constant 0.353553385 : f32
    %106 = vector.broadcast %cst_45 : f32 to vector<5x5xf32>
    %107 = arith.mulf %105, %106 : vector<5x5xf32>
    %cst_46 = arith.constant dense<0xFF800000> : vector<5xf32>
    %108 = vector.multi_reduction <maximumf>, %107, %cst_46 [1] : vector<5x5xf32> to vector<5xf32>
    %109 = vector.shape_cast %108 : vector<5xf32> to vector<5x1xf32>
    %110 = vector.broadcast %109 : vector<5x1xf32> to vector<5x5xf32>
    %111 = arith.subf %107, %110 : vector<5x5xf32>
    %112 = math.exp %111 : vector<5x5xf32>
    %cst_47 = arith.constant dense<0.000000e+00> : vector<5xf32>
    %113 = vector.multi_reduction <add>, %112, %cst_47 [1] : vector<5x5xf32> to vector<5xf32>
    %114 = vector.shape_cast %113 : vector<5xf32> to vector<5x1xf32>
    %115 = tpu.reciprocal %114 {approx = true} : vector<5x1xf32> -> vector<5x1xf32>
    %116 = vector.broadcast %115 : vector<5x1xf32> to vector<5x5xf32>
    %117 = arith.mulf %112, %116 : vector<5x5xf32>
    %cst_48 = arith.constant dense<0.000000e+00> : vector<5x8xf32>
    %118 = tpu.matmul %117, %104, %cst_48 {dimension_numbers = #tpu.dot_dimension_numbers<[1], [0], [0], [1], [0, 0, 1, 1], [], []>} : vector<5x5xf32>, vector<5x8xf32>, vector<5x8xf32> -> vector<5x8xf32>
    %119 = vector.extract_strided_slice %65 {offsets = [0, 24], sizes = [5, 8], strides = [1, 1]} : vector<5x32xf32> to vector<5x8xf32>
    %120 = vector.extract_strided_slice %66 {offsets = [0, 24], sizes = [5, 8], strides = [1, 1]} : vector<5x32xf32> to vector<5x8xf32>
    %121 = vector.extract_strided_slice %67 {offsets = [0, 24], sizes = [5, 8], strides = [1, 1]} : vector<5x32xf32> to vector<5x8xf32>
    %cst_49 = arith.constant dense<0.000000e+00> : vector<5x5xf32>
    %122 = tpu.matmul %119, %120, %cst_49 {dimension_numbers = #tpu.dot_dimension_numbers<[1], [1], [0], [0], [0, 0, 1, 0], [], []>} : vector<5x8xf32>, vector<5x8xf32>, vector<5x5xf32> -> vector<5x5xf32>
    %cst_50 = arith.constant 0.353553385 : f32
    %123 = vector.broadcast %cst_50 : f32 to vector<5x5xf32>
    %124 = arith.mulf %122, %123 : vector<5x5xf32>
    %cst_51 = arith.constant dense<0xFF800000> : vector<5xf32>
    %125 = vector.multi_reduction <maximumf>, %124, %cst_51 [1] : vector<5x5xf32> to vector<5xf32>
    %126 = vector.shape_cast %125 : vector<5xf32> to vector<5x1xf32>
    %127 = vector.broadcast %126 : vector<5x1xf32> to vector<5x5xf32>
    %128 = arith.subf %124, %127 : vector<5x5xf32>
    %129 = math.exp %128 : vector<5x5xf32>
    %cst_52 = arith.constant dense<0.000000e+00> : vector<5xf32>
    %130 = vector.multi_reduction <add>, %129, %cst_52 [1] : vector<5x5xf32> to vector<5xf32>
    %131 = vector.shape_cast %130 : vector<5xf32> to vector<5x1xf32>
    %132 = tpu.reciprocal %131 {approx = true} : vector<5x1xf32> -> vector<5x1xf32>
    %133 = vector.broadcast %132 : vector<5x1xf32> to vector<5x5xf32>
    %134 = arith.mulf %129, %133 : vector<5x5xf32>
    %cst_53 = arith.constant dense<0.000000e+00> : vector<5x8xf32>
    %135 = tpu.matmul %134, %121, %cst_53 {dimension_numbers = #tpu.dot_dimension_numbers<[1], [0], [0], [1], [0, 0, 1, 1], [], []>} : vector<5x5xf32>, vector<5x8xf32>, vector<5x8xf32> -> vector<5x8xf32>
    %136 = tpu.concatenate %84, %101, %118, %135 in 1 : vector<5x8xf32>, vector<5x8xf32>, vector<5x8xf32>, vector<5x8xf32> -> vector<5x32xf32>
    %137 = vector.extract_strided_slice %64 {offsets = [5, 0], sizes = [5, 32], strides = [1, 1]} : vector<10x96xf32> to vector<5x32xf32>
    %138 = vector.extract_strided_slice %64 {offsets = [5, 32], sizes = [5, 32], strides = [1, 1]} : vector<10x96xf32> to vector<5x32xf32>
    %139 = vector.extract_strided_slice %64 {offsets = [5, 64], sizes = [5, 32], strides = [1, 1]} : vector<10x96xf32> to vector<5x32xf32>
    %140 = vector.extract_strided_slice %137 {offsets = [0, 0], sizes = [5, 8], strides = [1, 1]} : vector<5x32xf32> to vector<5x8xf32>
    %141 = vector.extract_strided_slice %138 {offsets = [0, 0], sizes = [5, 8], strides = [1, 1]} : vector<5x32xf32> to vector<5x8xf32>
    %142 = vector.extract_strided_slice %139 {offsets = [0, 0], sizes = [5, 8], strides = [1, 1]} : vector<5x32xf32> to vector<5x8xf32>
    %cst_54 = arith.constant dense<0.000000e+00> : vector<5x5xf32>
    %143 = tpu.matmul %140, %141, %cst_54 {dimension_numbers = #tpu.dot_dimension_numbers<[1], [1], [0], [0], [0, 0, 1, 0], [], []>} : vector<5x8xf32>, vector<5x8xf32>, vector<5x5xf32> -> vector<5x5xf32>
    %cst_55 = arith.constant 0.353553385 : f32
    %144 = vector.broadcast %cst_55 : f32 to vector<5x5xf32>
    %145 = arith.mulf %143, %144 : vector<5x5xf32>
    %cst_56 = arith.constant dense<0xFF800000> : vector<5xf32>
    %146 = vector.multi_reduction <maximumf>, %145, %cst_56 [1] : vector<5x5xf32> to vector<5xf32>
    %147 = vector.shape_cast %146 : vector<5xf32> to vector<5x1xf32>
    %148 = vector.broadcast %147 : vector<5x1xf32> to vector<5x5xf32>
    %149 = arith.subf %145, %148 : vector<5x5xf32>
    %150 = math.exp %149 : vector<5x5xf32>
    %cst_57 = arith.constant dense<0.000000e+00> : vector<5xf32>
    %151 = vector.multi_reduction <add>, %150, %cst_57 [1] : vector<5x5xf32> to vector<5xf32>
    %152 = vector.shape_cast %151 : vector<5xf32> to vector<5x1xf32>
    %153 = tpu.reciprocal %152 {approx = true} : vector<5x1xf32> -> vector<5x1xf32>
    %154 = vector.broadcast %153 : vector<5x1xf32> to vector<5x5xf32>
    %155 = arith.mulf %150, %154 : vector<5x5xf32>
    %cst_58 = arith.constant dense<0.000000e+00> : vector<5x8xf32>
    %156 = tpu.matmul %155, %142, %cst_58 {dimension_numbers = #tpu.dot_dimension_numbers<[1], [0], [0], [1], [0, 0, 1, 1], [], []>} : vector<5x5xf32>, vector<5x8xf32>, vector<5x8xf32> -> vector<5x8xf32>
    %157 = vector.extract_strided_slice %137 {offsets = [0, 8], sizes = [5, 8], strides = [1, 1]} : vector<5x32xf32> to vector<5x8xf32>
    %158 = vector.extract_strided_slice %138 {offsets = [0, 8], sizes = [5, 8], strides = [1, 1]} : vector<5x32xf32> to vector<5x8xf32>
    %159 = vector.extract_strided_slice %139 {offsets = [0, 8], sizes = [5, 8], strides = [1, 1]} : vector<5x32xf32> to vector<5x8xf32>
    %cst_59 = arith.constant dense<0.000000e+00> : vector<5x5xf32>
    %160 = tpu.matmul %157, %158, %cst_59 {dimension_numbers = #tpu.dot_dimension_numbers<[1], [1], [0], [0], [0, 0, 1, 0], [], []>} : vector<5x8xf32>, vector<5x8xf32>, vector<5x5xf32> -> vector<5x5xf32>
    %cst_60 = arith.constant 0.353553385 : f32
    %161 = vector.broadcast %cst_60 : f32 to vector<5x5xf32>
    %162 = arith.mulf %160, %161 : vector<5x5xf32>
    %cst_61 = arith.constant dense<0xFF800000> : vector<5xf32>
    %163 = vector.multi_reduction <maximumf>, %162, %cst_61 [1] : vector<5x5xf32> to vector<5xf32>
    %164 = vector.shape_cast %163 : vector<5xf32> to vector<5x1xf32>
    %165 = vector.broadcast %164 : vector<5x1xf32> to vector<5x5xf32>
    %166 = arith.subf %162, %165 : vector<5x5xf32>
    %167 = math.exp %166 : vector<5x5xf32>
    %cst_62 = arith.constant dense<0.000000e+00> : vector<5xf32>
    %168 = vector.multi_reduction <add>, %167, %cst_62 [1] : vector<5x5xf32> to vector<5xf32>
    %169 = vector.shape_cast %168 : vector<5xf32> to vector<5x1xf32>
    %170 = tpu.reciprocal %169 {approx = true} : vector<5x1xf32> -> vector<5x1xf32>
    %171 = vector.broadcast %170 : vector<5x1xf32> to vector<5x5xf32>
    %172 = arith.mulf %167, %171 : vector<5x5xf32>
    %cst_63 = arith.constant dense<0.000000e+00> : vector<5x8xf32>
    %173 = tpu.matmul %172, %159, %cst_63 {dimension_numbers = #tpu.dot_dimension_numbers<[1], [0], [0], [1], [0, 0, 1, 1], [], []>} : vector<5x5xf32>, vector<5x8xf32>, vector<5x8xf32> -> vector<5x8xf32>
    %174 = vector.extract_strided_slice %137 {offsets = [0, 16], sizes = [5, 8], strides = [1, 1]} : vector<5x32xf32> to vector<5x8xf32>
    %175 = vector.extract_strided_slice %138 {offsets = [0, 16], sizes = [5, 8], strides = [1, 1]} : vector<5x32xf32> to vector<5x8xf32>
    %176 = vector.extract_strided_slice %139 {offsets = [0, 16], sizes = [5, 8], strides = [1, 1]} : vector<5x32xf32> to vector<5x8xf32>
    %cst_64 = arith.constant dense<0.000000e+00> : vector<5x5xf32>
    %177 = tpu.matmul %174, %175, %cst_64 {dimension_numbers = #tpu.dot_dimension_numbers<[1], [1], [0], [0], [0, 0, 1, 0], [], []>} : vector<5x8xf32>, vector<5x8xf32>, vector<5x5xf32> -> vector<5x5xf32>
    %cst_65 = arith.constant 0.353553385 : f32
    %178 = vector.broadcast %cst_65 : f32 to vector<5x5xf32>
    %179 = arith.mulf %177, %178 : vector<5x5xf32>
    %cst_66 = arith.constant dense<0xFF800000> : vector<5xf32>
    %180 = vector.multi_reduction <maximumf>, %179, %cst_66 [1] : vector<5x5xf32> to vector<5xf32>
    %181 = vector.shape_cast %180 : vector<5xf32> to vector<5x1xf32>
    %182 = vector.broadcast %181 : vector<5x1xf32> to vector<5x5xf32>
    %183 = arith.subf %179, %182 : vector<5x5xf32>
    %184 = math.exp %183 : vector<5x5xf32>
    %cst_67 = arith.constant dense<0.000000e+00> : vector<5xf32>
    %185 = vector.multi_reduction <add>, %184, %cst_67 [1] : vector<5x5xf32> to vector<5xf32>
    %186 = vector.shape_cast %185 : vector<5xf32> to vector<5x1xf32>
    %187 = tpu.reciprocal %186 {approx = true} : vector<5x1xf32> -> vector<5x1xf32>
    %188 = vector.broadcast %187 : vector<5x1xf32> to vector<5x5xf32>
    %189 = arith.mulf %184, %188 : vector<5x5xf32>
    %cst_68 = arith.constant dense<0.000000e+00> : vector<5x8xf32>
    %190 = tpu.matmul %189, %176, %cst_68 {dimension_numbers = #tpu.dot_dimension_numbers<[1], [0], [0], [1], [0, 0, 1, 1], [], []>} : vector<5x5xf32>, vector<5x8xf32>, vector<5x8xf32> -> vector<5x8xf32>
    %191 = vector.extract_strided_slice %137 {offsets = [0, 24], sizes = [5, 8], strides = [1, 1]} : vector<5x32xf32> to vector<5x8xf32>
    %192 = vector.extract_strided_slice %138 {offsets = [0, 24], sizes = [5, 8], strides = [1, 1]} : vector<5x32xf32> to vector<5x8xf32>
    %193 = vector.extract_strided_slice %139 {offsets = [0, 24], sizes = [5, 8], strides = [1, 1]} : vector<5x32xf32> to vector<5x8xf32>
    %cst_69 = arith.constant dense<0.000000e+00> : vector<5x5xf32>
    %194 = tpu.matmul %191, %192, %cst_69 {dimension_numbers = #tpu.dot_dimension_numbers<[1], [1], [0], [0], [0, 0, 1, 0], [], []>} : vector<5x8xf32>, vector<5x8xf32>, vector<5x5xf32> -> vector<5x5xf32>
    %cst_70 = arith.constant 0.353553385 : f32
    %195 = vector.broadcast %cst_70 : f32 to vector<5x5xf32>
    %196 = arith.mulf %194, %195 : vector<5x5xf32>
    %cst_71 = arith.constant dense<0xFF800000> : vector<5xf32>
    %197 = vector.multi_reduction <maximumf>, %196, %cst_71 [1] : vector<5x5xf32> to vector<5xf32>
    %198 = vector.shape_cast %197 : vector<5xf32> to vector<5x1xf32>
    %199 = vector.broadcast %198 : vector<5x1xf32> to vector<5x5xf32>
    %200 = arith.subf %196, %199 : vector<5x5xf32>
    %201 = math.exp %200 : vector<5x5xf32>
    %cst_72 = arith.constant dense<0.000000e+00> : vector<5xf32>
    %202 = vector.multi_reduction <add>, %201, %cst_72 [1] : vector<5x5xf32> to vector<5xf32>
    %203 = vector.shape_cast %202 : vector<5xf32> to vector<5x1xf32>
    %204 = tpu.reciprocal %203 {approx = true} : vector<5x1xf32> -> vector<5x1xf32>
    %205 = vector.broadcast %204 : vector<5x1xf32> to vector<5x5xf32>
    %206 = arith.mulf %201, %205 : vector<5x5xf32>
    %cst_73 = arith.constant dense<0.000000e+00> : vector<5x8xf32>
    %207 = tpu.matmul %206, %193, %cst_73 {dimension_numbers = #tpu.dot_dimension_numbers<[1], [0], [0], [1], [0, 0, 1, 1], [], []>} : vector<5x5xf32>, vector<5x8xf32>, vector<5x8xf32> -> vector<5x8xf32>
    %208 = tpu.concatenate %156, %173, %190, %207 in 1 : vector<5x8xf32>, vector<5x8xf32>, vector<5x8xf32>, vector<5x8xf32> -> vector<5x32xf32>
    %209 = tpu.concatenate %136, %208 in 0 : vector<5x32xf32>, vector<5x32xf32> -> vector<10x32xf32>
    %c0_74 = arith.constant 0 : index
    %c0_75 = arith.constant 0 : index
    %c0_76 = arith.constant 0 : index
    %210 = vector.load %arg10[%c0_74, %c0_75, %c0_76] : memref<2x32x32xf32, #tpu.memory_space<vmem>>, vector<1x32x32xf32>
    %211 = vector.shape_cast %210 : vector<1x32x32xf32> to vector<32x32xf32>
    %cst_77 = arith.constant dense<0.000000e+00> : vector<10x32xf32>
    %212 = tpu.matmul %209, %211, %cst_77 {dimension_numbers = #tpu.dot_dimension_numbers<[1], [0], [0], [1], [0, 0, 1, 1], [], []>} : vector<10x32xf32>, vector<32x32xf32>, vector<10x32xf32> -> vector<10x32xf32>
    %213 = arith.addf %33, %212 : vector<10x32xf32>
    %c0_78 = arith.constant 0 : index
    %c0_79 = arith.constant 0 : index
    %c0_80 = arith.constant 0 : index
    %214 = vector.load %arg11[%c0_78, %c0_79, %c0_80] : memref<2x1x32xf32, #tpu.memory_space<vmem>>, vector<1x1x32xf32>
    %215 = vector.shape_cast %214 : vector<1x1x32xf32> to vector<1x32xf32>
    %216 = vector.broadcast %215 : vector<1x32xf32> to vector<10x32xf32>
    %217 = arith.addf %213, %216 : vector<10x32xf32>
    %c0_81 = arith.constant 0 : index
    %c0_82 = arith.constant 0 : index
    %c0_83 = arith.constant 0 : index
    %218 = vector.load %arg12[%c0_81, %c0_82, %c0_83] : memref<2x1x32xf32, #tpu.memory_space<vmem>>, vector<1x1x32xf32>
    %219 = vector.shape_cast %218 : vector<1x1x32xf32> to vector<1x32xf32>
    %c0_84 = arith.constant 0 : index
    %c0_85 = arith.constant 0 : index
    %c0_86 = arith.constant 0 : index
    %220 = vector.load %arg13[%c0_84, %c0_85, %c0_86] : memref<2x1x32xf32, #tpu.memory_space<vmem>>, vector<1x1x32xf32>
    %221 = vector.shape_cast %220 : vector<1x1x32xf32> to vector<1x32xf32>
    %cst_87 = arith.constant dense<0.000000e+00> : vector<10xf32>
    %222 = vector.multi_reduction <add>, %217, %cst_87 [1] : vector<10x32xf32> to vector<10xf32>
    %223 = vector.shape_cast %222 : vector<10xf32> to vector<10x1xf32>
    %cst_88 = arith.constant 3.200000e+01 : f32
    %224 = vector.broadcast %cst_88 : f32 to vector<10x1xf32>
    %225 = arith.divf %223, %224 : vector<10x1xf32>
    %226 = vector.broadcast %225 : vector<10x1xf32> to vector<10x32xf32>
    %227 = arith.subf %217, %226 : vector<10x32xf32>
    %228 = arith.mulf %227, %227 : vector<10x32xf32>
    %cst_89 = arith.constant dense<0.000000e+00> : vector<10xf32>
    %229 = vector.multi_reduction <add>, %228, %cst_89 [1] : vector<10x32xf32> to vector<10xf32>
    %230 = vector.shape_cast %229 : vector<10xf32> to vector<10x1xf32>
    %cst_90 = arith.constant 3.200000e+01 : f32
    %231 = vector.broadcast %cst_90 : f32 to vector<10x1xf32>
    %232 = arith.divf %230, %231 : vector<10x1xf32>
    %cst_91 = arith.constant 9.99999974E-6 : f32
    %233 = vector.broadcast %cst_91 : f32 to vector<10x1xf32>
    %234 = arith.addf %232, %233 : vector<10x1xf32>
    %235 = math.rsqrt %234 : vector<10x1xf32>
    %236 = vector.broadcast %235 : vector<10x1xf32> to vector<10x32xf32>
    %237 = arith.mulf %227, %236 : vector<10x32xf32>
    %238 = vector.broadcast %219 : vector<1x32xf32> to vector<10x32xf32>
    %239 = arith.mulf %237, %238 : vector<10x32xf32>
    %240 = vector.broadcast %221 : vector<1x32xf32> to vector<10x32xf32>
    %241 = arith.addf %239, %240 : vector<10x32xf32>
    %c0_92 = arith.constant 0 : index
    %c0_93 = arith.constant 0 : index
    %c0_94 = arith.constant 0 : index
    %242 = vector.load %arg14[%c0_92, %c0_93, %c0_94] : memref<2x32x128xf32, #tpu.memory_space<vmem>>, vector<1x32x128xf32>
    %243 = vector.shape_cast %242 : vector<1x32x128xf32> to vector<32x128xf32>
    %cst_95 = arith.constant dense<0.000000e+00> : vector<10x128xf32>
    %244 = tpu.matmul %241, %243, %cst_95 {dimension_numbers = #tpu.dot_dimension_numbers<[1], [0], [0], [1], [0, 0, 1, 1], [], []>} : vector<10x32xf32>, vector<32x128xf32>, vector<10x128xf32> -> vector<10x128xf32>
    %c0_96 = arith.constant 0 : index
    %c0_97 = arith.constant 0 : index
    %c0_98 = arith.constant 0 : index
    %245 = vector.load %arg15[%c0_96, %c0_97, %c0_98] : memref<2x1x128xf32, #tpu.memory_space<vmem>>, vector<1x1x128xf32>
    %246 = vector.shape_cast %245 : vector<1x1x128xf32> to vector<1x128xf32>
    %247 = vector.broadcast %246 : vector<1x128xf32> to vector<10x128xf32>
    %248 = arith.addf %244, %247 : vector<10x128xf32>
    %cst_99 = arith.constant 1.702000e+00 : f32
    %249 = vector.broadcast %cst_99 : f32 to vector<10x128xf32>
    %250 = arith.mulf %249, %248 : vector<10x128xf32>
    %251 = arith.negf %250 : vector<10x128xf32>
    %252 = math.exp %251 : vector<10x128xf32>
    %cst_100 = arith.constant 1.000000e+00 : f32
    %253 = vector.broadcast %cst_100 : f32 to vector<10x128xf32>
    %254 = arith.addf %253, %252 : vector<10x128xf32>
    %255 = arith.divf %253, %254 : vector<10x128xf32>
    %256 = arith.mulf %248, %255 : vector<10x128xf32>
    %c0_101 = arith.constant 0 : index
    %c0_102 = arith.constant 0 : index
    %c0_103 = arith.constant 0 : index
    %257 = vector.load %arg16[%c0_101, %c0_102, %c0_103] : memref<2x128x32xf32, #tpu.memory_space<vmem>>, vector<1x128x32xf32>
    %258 = vector.shape_cast %257 : vector<1x128x32xf32> to vector<128x32xf32>
    %cst_104 = arith.constant dense<0.000000e+00> : vector<10x32xf32>
    %259 = tpu.matmul %256, %258, %cst_104 {dimension_numbers = #tpu.dot_dimension_numbers<[1], [0], [0], [1], [0, 0, 1, 1], [], []>} : vector<10x128xf32>, vector<128x32xf32>, vector<10x32xf32> -> vector<10x32xf32>
    %260 = arith.addf %217, %259 : vector<10x32xf32>
    %c0_105 = arith.constant 0 : index
    %c0_106 = arith.constant 0 : index
    %c0_107 = arith.constant 0 : index
    %261 = vector.load %arg17[%c0_105, %c0_106, %c0_107] : memref<2x1x32xf32, #tpu.memory_space<vmem>>, vector<1x1x32xf32>
    %262 = vector.shape_cast %261 : vector<1x1x32xf32> to vector<1x32xf32>
    %263 = vector.broadcast %262 : vector<1x32xf32> to vector<10x32xf32>
    %264 = arith.addf %260, %263 : vector<10x32xf32>
    %c1 = arith.constant 1 : index
    %c0_108 = arith.constant 0 : index
    %c0_109 = arith.constant 0 : index
    %265 = vector.load %arg6[%c1, %c0_108, %c0_109] : memref<2x1x32xf32, #tpu.memory_space<vmem>>, vector<1x1x32xf32>
    %266 = vector.shape_cast %265 : vector<1x1x32xf32> to vector<1x32xf32>
    %c1_110 = arith.constant 1 : index
    %c0_111 = arith.constant 0 : index
    %c0_112 = arith.constant 0 : index
    %267 = vector.load %arg7[%c1_110, %c0_111, %c0_112] : memref<2x1x32xf32, #tpu.memory_space<vmem>>, vector<1x1x32xf32>
    %268 = vector.shape_cast %267 : vector<1x1x32xf32> to vector<1x32xf32>
    %cst_113 = arith.constant dense<0.000000e+00> : vector<10xf32>
    %269 = vector.multi_reduction <add>, %264, %cst_113 [1] : vector<10x32xf32> to vector<10xf32>
    %270 = vector.shape_cast %269 : vector<10xf32> to vector<10x1xf32>
    %cst_114 = arith.constant 3.200000e+01 : f32
    %271 = vector.broadcast %cst_114 : f32 to vector<10x1xf32>
    %272 = arith.divf %270, %271 : vector<10x1xf32>
    %273 = vector.broadcast %272 : vector<10x1xf32> to vector<10x32xf32>
    %274 = arith.subf %264, %273 : vector<10x32xf32>
    %275 = arith.mulf %274, %274 : vector<10x32xf32>
    %cst_115 = arith.constant dense<0.000000e+00> : vector<10xf32>
    %276 = vector.multi_reduction <add>, %275, %cst_115 [1] : vector<10x32xf32> to vector<10xf32>
    %277 = vector.shape_cast %276 : vector<10xf32> to vector<10x1xf32>
    %cst_116 = arith.constant 3.200000e+01 : f32
    %278 = vector.broadcast %cst_116 : f32 to vector<10x1xf32>
    %279 = arith.divf %277, %278 : vector<10x1xf32>
    %cst_117 = arith.constant 9.99999974E-6 : f32
    %280 = vector.broadcast %cst_117 : f32 to vector<10x1xf32>
    %281 = arith.addf %279, %280 : vector<10x1xf32>
    %282 = math.rsqrt %281 : vector<10x1xf32>
    %283 = vector.broadcast %282 : vector<10x1xf32> to vector<10x32xf32>
    %284 = arith.mulf %274, %283 : vector<10x32xf32>
    %285 = vector.broadcast %266 : vector<1x32xf32> to vector<10x32xf32>
    %286 = arith.mulf %284, %285 : vector<10x32xf32>
    %287 = vector.broadcast %268 : vector<1x32xf32> to vector<10x32xf32>
    %288 = arith.addf %286, %287 : vector<10x32xf32>
    %c1_118 = arith.constant 1 : index
    %c0_119 = arith.constant 0 : index
    %c0_120 = arith.constant 0 : index
    %289 = vector.load %arg8[%c1_118, %c0_119, %c0_120] : memref<2x32x96xf32, #tpu.memory_space<vmem>>, vector<1x32x96xf32>
    %290 = vector.shape_cast %289 : vector<1x32x96xf32> to vector<32x96xf32>
    %cst_121 = arith.constant dense<0.000000e+00> : vector<10x96xf32>
    %291 = tpu.matmul %288, %290, %cst_121 {dimension_numbers = #tpu.dot_dimension_numbers<[1], [0], [0], [1], [0, 0, 1, 1], [], []>} : vector<10x32xf32>, vector<32x96xf32>, vector<10x96xf32> -> vector<10x96xf32>
    %c1_122 = arith.constant 1 : index
    %c0_123 = arith.constant 0 : index
    %c0_124 = arith.constant 0 : index
    %292 = vector.load %arg9[%c1_122, %c0_123, %c0_124] : memref<2x1x96xf32, #tpu.memory_space<vmem>>, vector<1x1x96xf32>
    %293 = vector.shape_cast %292 : vector<1x1x96xf32> to vector<1x96xf32>
    %294 = vector.broadcast %293 : vector<1x96xf32> to vector<10x96xf32>
    %295 = arith.addf %291, %294 : vector<10x96xf32>
    %296 = vector.extract_strided_slice %295 {offsets = [0, 0], sizes = [5, 32], strides = [1, 1]} : vector<10x96xf32> to vector<5x32xf32>
    %297 = vector.extract_strided_slice %295 {offsets = [0, 32], sizes = [5, 32], strides = [1, 1]} : vector<10x96xf32> to vector<5x32xf32>
    %298 = vector.extract_strided_slice %295 {offsets = [0, 64], sizes = [5, 32], strides = [1, 1]} : vector<10x96xf32> to vector<5x32xf32>
    %299 = vector.extract_strided_slice %296 {offsets = [0, 0], sizes = [5, 8], strides = [1, 1]} : vector<5x32xf32> to vector<5x8xf32>
    %300 = vector.extract_strided_slice %297 {offsets = [0, 0], sizes = [5, 8], strides = [1, 1]} : vector<5x32xf32> to vector<5x8xf32>
    %301 = vector.extract_strided_slice %298 {offsets = [0, 0], sizes = [5, 8], strides = [1, 1]} : vector<5x32xf32> to vector<5x8xf32>
    %cst_125 = arith.constant dense<0.000000e+00> : vector<5x5xf32>
    %302 = tpu.matmul %299, %300, %cst_125 {dimension_numbers = #tpu.dot_dimension_numbers<[1], [1], [0], [0], [0, 0, 1, 0], [], []>} : vector<5x8xf32>, vector<5x8xf32>, vector<5x5xf32> -> vector<5x5xf32>
    %cst_126 = arith.constant 0.353553385 : f32
    %303 = vector.broadcast %cst_126 : f32 to vector<5x5xf32>
    %304 = arith.mulf %302, %303 : vector<5x5xf32>
    %cst_127 = arith.constant dense<0xFF800000> : vector<5xf32>
    %305 = vector.multi_reduction <maximumf>, %304, %cst_127 [1] : vector<5x5xf32> to vector<5xf32>
    %306 = vector.shape_cast %305 : vector<5xf32> to vector<5x1xf32>
    %307 = vector.broadcast %306 : vector<5x1xf32> to vector<5x5xf32>
    %308 = arith.subf %304, %307 : vector<5x5xf32>
    %309 = math.exp %308 : vector<5x5xf32>
    %cst_128 = arith.constant dense<0.000000e+00> : vector<5xf32>
    %310 = vector.multi_reduction <add>, %309, %cst_128 [1] : vector<5x5xf32> to vector<5xf32>
    %311 = vector.shape_cast %310 : vector<5xf32> to vector<5x1xf32>
    %312 = tpu.reciprocal %311 {approx = true} : vector<5x1xf32> -> vector<5x1xf32>
    %313 = vector.broadcast %312 : vector<5x1xf32> to vector<5x5xf32>
    %314 = arith.mulf %309, %313 : vector<5x5xf32>
    %cst_129 = arith.constant dense<0.000000e+00> : vector<5x8xf32>
    %315 = tpu.matmul %314, %301, %cst_129 {dimension_numbers = #tpu.dot_dimension_numbers<[1], [0], [0], [1], [0, 0, 1, 1], [], []>} : vector<5x5xf32>, vector<5x8xf32>, vector<5x8xf32> -> vector<5x8xf32>
    %316 = vector.extract_strided_slice %296 {offsets = [0, 8], sizes = [5, 8], strides = [1, 1]} : vector<5x32xf32> to vector<5x8xf32>
    %317 = vector.extract_strided_slice %297 {offsets = [0, 8], sizes = [5, 8], strides = [1, 1]} : vector<5x32xf32> to vector<5x8xf32>
    %318 = vector.extract_strided_slice %298 {offsets = [0, 8], sizes = [5, 8], strides = [1, 1]} : vector<5x32xf32> to vector<5x8xf32>
    %cst_130 = arith.constant dense<0.000000e+00> : vector<5x5xf32>
    %319 = tpu.matmul %316, %317, %cst_130 {dimension_numbers = #tpu.dot_dimension_numbers<[1], [1], [0], [0], [0, 0, 1, 0], [], []>} : vector<5x8xf32>, vector<5x8xf32>, vector<5x5xf32> -> vector<5x5xf32>
    %cst_131 = arith.constant 0.353553385 : f32
    %320 = vector.broadcast %cst_131 : f32 to vector<5x5xf32>
    %321 = arith.mulf %319, %320 : vector<5x5xf32>
    %cst_132 = arith.constant dense<0xFF800000> : vector<5xf32>
    %322 = vector.multi_reduction <maximumf>, %321, %cst_132 [1] : vector<5x5xf32> to vector<5xf32>
    %323 = vector.shape_cast %322 : vector<5xf32> to vector<5x1xf32>
    %324 = vector.broadcast %323 : vector<5x1xf32> to vector<5x5xf32>
    %325 = arith.subf %321, %324 : vector<5x5xf32>
    %326 = math.exp %325 : vector<5x5xf32>
    %cst_133 = arith.constant dense<0.000000e+00> : vector<5xf32>
    %327 = vector.multi_reduction <add>, %326, %cst_133 [1] : vector<5x5xf32> to vector<5xf32>
    %328 = vector.shape_cast %327 : vector<5xf32> to vector<5x1xf32>
    %329 = tpu.reciprocal %328 {approx = true} : vector<5x1xf32> -> vector<5x1xf32>
    %330 = vector.broadcast %329 : vector<5x1xf32> to vector<5x5xf32>
    %331 = arith.mulf %326, %330 : vector<5x5xf32>
    %cst_134 = arith.constant dense<0.000000e+00> : vector<5x8xf32>
    %332 = tpu.matmul %331, %318, %cst_134 {dimension_numbers = #tpu.dot_dimension_numbers<[1], [0], [0], [1], [0, 0, 1, 1], [], []>} : vector<5x5xf32>, vector<5x8xf32>, vector<5x8xf32> -> vector<5x8xf32>
    %333 = vector.extract_strided_slice %296 {offsets = [0, 16], sizes = [5, 8], strides = [1, 1]} : vector<5x32xf32> to vector<5x8xf32>
    %334 = vector.extract_strided_slice %297 {offsets = [0, 16], sizes = [5, 8], strides = [1, 1]} : vector<5x32xf32> to vector<5x8xf32>
    %335 = vector.extract_strided_slice %298 {offsets = [0, 16], sizes = [5, 8], strides = [1, 1]} : vector<5x32xf32> to vector<5x8xf32>
    %cst_135 = arith.constant dense<0.000000e+00> : vector<5x5xf32>
    %336 = tpu.matmul %333, %334, %cst_135 {dimension_numbers = #tpu.dot_dimension_numbers<[1], [1], [0], [0], [0, 0, 1, 0], [], []>} : vector<5x8xf32>, vector<5x8xf32>, vector<5x5xf32> -> vector<5x5xf32>
    %cst_136 = arith.constant 0.353553385 : f32
    %337 = vector.broadcast %cst_136 : f32 to vector<5x5xf32>
    %338 = arith.mulf %336, %337 : vector<5x5xf32>
    %cst_137 = arith.constant dense<0xFF800000> : vector<5xf32>
    %339 = vector.multi_reduction <maximumf>, %338, %cst_137 [1] : vector<5x5xf32> to vector<5xf32>
    %340 = vector.shape_cast %339 : vector<5xf32> to vector<5x1xf32>
    %341 = vector.broadcast %340 : vector<5x1xf32> to vector<5x5xf32>
    %342 = arith.subf %338, %341 : vector<5x5xf32>
    %343 = math.exp %342 : vector<5x5xf32>
    %cst_138 = arith.constant dense<0.000000e+00> : vector<5xf32>
    %344 = vector.multi_reduction <add>, %343, %cst_138 [1] : vector<5x5xf32> to vector<5xf32>
    %345 = vector.shape_cast %344 : vector<5xf32> to vector<5x1xf32>
    %346 = tpu.reciprocal %345 {approx = true} : vector<5x1xf32> -> vector<5x1xf32>
    %347 = vector.broadcast %346 : vector<5x1xf32> to vector<5x5xf32>
    %348 = arith.mulf %343, %347 : vector<5x5xf32>
    %cst_139 = arith.constant dense<0.000000e+00> : vector<5x8xf32>
    %349 = tpu.matmul %348, %335, %cst_139 {dimension_numbers = #tpu.dot_dimension_numbers<[1], [0], [0], [1], [0, 0, 1, 1], [], []>} : vector<5x5xf32>, vector<5x8xf32>, vector<5x8xf32> -> vector<5x8xf32>
    %350 = vector.extract_strided_slice %296 {offsets = [0, 24], sizes = [5, 8], strides = [1, 1]} : vector<5x32xf32> to vector<5x8xf32>
    %351 = vector.extract_strided_slice %297 {offsets = [0, 24], sizes = [5, 8], strides = [1, 1]} : vector<5x32xf32> to vector<5x8xf32>
    %352 = vector.extract_strided_slice %298 {offsets = [0, 24], sizes = [5, 8], strides = [1, 1]} : vector<5x32xf32> to vector<5x8xf32>
    %cst_140 = arith.constant dense<0.000000e+00> : vector<5x5xf32>
    %353 = tpu.matmul %350, %351, %cst_140 {dimension_numbers = #tpu.dot_dimension_numbers<[1], [1], [0], [0], [0, 0, 1, 0], [], []>} : vector<5x8xf32>, vector<5x8xf32>, vector<5x5xf32> -> vector<5x5xf32>
    %cst_141 = arith.constant 0.353553385 : f32
    %354 = vector.broadcast %cst_141 : f32 to vector<5x5xf32>
    %355 = arith.mulf %353, %354 : vector<5x5xf32>
    %cst_142 = arith.constant dense<0xFF800000> : vector<5xf32>
    %356 = vector.multi_reduction <maximumf>, %355, %cst_142 [1] : vector<5x5xf32> to vector<5xf32>
    %357 = vector.shape_cast %356 : vector<5xf32> to vector<5x1xf32>
    %358 = vector.broadcast %357 : vector<5x1xf32> to vector<5x5xf32>
    %359 = arith.subf %355, %358 : vector<5x5xf32>
    %360 = math.exp %359 : vector<5x5xf32>
    %cst_143 = arith.constant dense<0.000000e+00> : vector<5xf32>
    %361 = vector.multi_reduction <add>, %360, %cst_143 [1] : vector<5x5xf32> to vector<5xf32>
    %362 = vector.shape_cast %361 : vector<5xf32> to vector<5x1xf32>
    %363 = tpu.reciprocal %362 {approx = true} : vector<5x1xf32> -> vector<5x1xf32>
    %364 = vector.broadcast %363 : vector<5x1xf32> to vector<5x5xf32>
    %365 = arith.mulf %360, %364 : vector<5x5xf32>
    %cst_144 = arith.constant dense<0.000000e+00> : vector<5x8xf32>
    %366 = tpu.matmul %365, %352, %cst_144 {dimension_numbers = #tpu.dot_dimension_numbers<[1], [0], [0], [1], [0, 0, 1, 1], [], []>} : vector<5x5xf32>, vector<5x8xf32>, vector<5x8xf32> -> vector<5x8xf32>
    %367 = tpu.concatenate %315, %332, %349, %366 in 1 : vector<5x8xf32>, vector<5x8xf32>, vector<5x8xf32>, vector<5x8xf32> -> vector<5x32xf32>
    %368 = vector.extract_strided_slice %295 {offsets = [5, 0], sizes = [5, 32], strides = [1, 1]} : vector<10x96xf32> to vector<5x32xf32>
    %369 = vector.extract_strided_slice %295 {offsets = [5, 32], sizes = [5, 32], strides = [1, 1]} : vector<10x96xf32> to vector<5x32xf32>
    %370 = vector.extract_strided_slice %295 {offsets = [5, 64], sizes = [5, 32], strides = [1, 1]} : vector<10x96xf32> to vector<5x32xf32>
    %371 = vector.extract_strided_slice %368 {offsets = [0, 0], sizes = [5, 8], strides = [1, 1]} : vector<5x32xf32> to vector<5x8xf32>
    %372 = vector.extract_strided_slice %369 {offsets = [0, 0], sizes = [5, 8], strides = [1, 1]} : vector<5x32xf32> to vector<5x8xf32>
    %373 = vector.extract_strided_slice %370 {offsets = [0, 0], sizes = [5, 8], strides = [1, 1]} : vector<5x32xf32> to vector<5x8xf32>
    %cst_145 = arith.constant dense<0.000000e+00> : vector<5x5xf32>
    %374 = tpu.matmul %371, %372, %cst_145 {dimension_numbers = #tpu.dot_dimension_numbers<[1], [1], [0], [0], [0, 0, 1, 0], [], []>} : vector<5x8xf32>, vector<5x8xf32>, vector<5x5xf32> -> vector<5x5xf32>
    %cst_146 = arith.constant 0.353553385 : f32
    %375 = vector.broadcast %cst_146 : f32 to vector<5x5xf32>
    %376 = arith.mulf %374, %375 : vector<5x5xf32>
    %cst_147 = arith.constant dense<0xFF800000> : vector<5xf32>
    %377 = vector.multi_reduction <maximumf>, %376, %cst_147 [1] : vector<5x5xf32> to vector<5xf32>
    %378 = vector.shape_cast %377 : vector<5xf32> to vector<5x1xf32>
    %379 = vector.broadcast %378 : vector<5x1xf32> to vector<5x5xf32>
    %380 = arith.subf %376, %379 : vector<5x5xf32>
    %381 = math.exp %380 : vector<5x5xf32>
    %cst_148 = arith.constant dense<0.000000e+00> : vector<5xf32>
    %382 = vector.multi_reduction <add>, %381, %cst_148 [1] : vector<5x5xf32> to vector<5xf32>
    %383 = vector.shape_cast %382 : vector<5xf32> to vector<5x1xf32>
    %384 = tpu.reciprocal %383 {approx = true} : vector<5x1xf32> -> vector<5x1xf32>
    %385 = vector.broadcast %384 : vector<5x1xf32> to vector<5x5xf32>
    %386 = arith.mulf %381, %385 : vector<5x5xf32>
    %cst_149 = arith.constant dense<0.000000e+00> : vector<5x8xf32>
    %387 = tpu.matmul %386, %373, %cst_149 {dimension_numbers = #tpu.dot_dimension_numbers<[1], [0], [0], [1], [0, 0, 1, 1], [], []>} : vector<5x5xf32>, vector<5x8xf32>, vector<5x8xf32> -> vector<5x8xf32>
    %388 = vector.extract_strided_slice %368 {offsets = [0, 8], sizes = [5, 8], strides = [1, 1]} : vector<5x32xf32> to vector<5x8xf32>
    %389 = vector.extract_strided_slice %369 {offsets = [0, 8], sizes = [5, 8], strides = [1, 1]} : vector<5x32xf32> to vector<5x8xf32>
    %390 = vector.extract_strided_slice %370 {offsets = [0, 8], sizes = [5, 8], strides = [1, 1]} : vector<5x32xf32> to vector<5x8xf32>
    %cst_150 = arith.constant dense<0.000000e+00> : vector<5x5xf32>
    %391 = tpu.matmul %388, %389, %cst_150 {dimension_numbers = #tpu.dot_dimension_numbers<[1], [1], [0], [0], [0, 0, 1, 0], [], []>} : vector<5x8xf32>, vector<5x8xf32>, vector<5x5xf32> -> vector<5x5xf32>
    %cst_151 = arith.constant 0.353553385 : f32
    %392 = vector.broadcast %cst_151 : f32 to vector<5x5xf32>
    %393 = arith.mulf %391, %392 : vector<5x5xf32>
    %cst_152 = arith.constant dense<0xFF800000> : vector<5xf32>
    %394 = vector.multi_reduction <maximumf>, %393, %cst_152 [1] : vector<5x5xf32> to vector<5xf32>
    %395 = vector.shape_cast %394 : vector<5xf32> to vector<5x1xf32>
    %396 = vector.broadcast %395 : vector<5x1xf32> to vector<5x5xf32>
    %397 = arith.subf %393, %396 : vector<5x5xf32>
    %398 = math.exp %397 : vector<5x5xf32>
    %cst_153 = arith.constant dense<0.000000e+00> : vector<5xf32>
    %399 = vector.multi_reduction <add>, %398, %cst_153 [1] : vector<5x5xf32> to vector<5xf32>
    %400 = vector.shape_cast %399 : vector<5xf32> to vector<5x1xf32>
    %401 = tpu.reciprocal %400 {approx = true} : vector<5x1xf32> -> vector<5x1xf32>
    %402 = vector.broadcast %401 : vector<5x1xf32> to vector<5x5xf32>
    %403 = arith.mulf %398, %402 : vector<5x5xf32>
    %cst_154 = arith.constant dense<0.000000e+00> : vector<5x8xf32>
    %404 = tpu.matmul %403, %390, %cst_154 {dimension_numbers = #tpu.dot_dimension_numbers<[1], [0], [0], [1], [0, 0, 1, 1], [], []>} : vector<5x5xf32>, vector<5x8xf32>, vector<5x8xf32> -> vector<5x8xf32>
    %405 = vector.extract_strided_slice %368 {offsets = [0, 16], sizes = [5, 8], strides = [1, 1]} : vector<5x32xf32> to vector<5x8xf32>
    %406 = vector.extract_strided_slice %369 {offsets = [0, 16], sizes = [5, 8], strides = [1, 1]} : vector<5x32xf32> to vector<5x8xf32>
    %407 = vector.extract_strided_slice %370 {offsets = [0, 16], sizes = [5, 8], strides = [1, 1]} : vector<5x32xf32> to vector<5x8xf32>
    %cst_155 = arith.constant dense<0.000000e+00> : vector<5x5xf32>
    %408 = tpu.matmul %405, %406, %cst_155 {dimension_numbers = #tpu.dot_dimension_numbers<[1], [1], [0], [0], [0, 0, 1, 0], [], []>} : vector<5x8xf32>, vector<5x8xf32>, vector<5x5xf32> -> vector<5x5xf32>
    %cst_156 = arith.constant 0.353553385 : f32
    %409 = vector.broadcast %cst_156 : f32 to vector<5x5xf32>
    %410 = arith.mulf %408, %409 : vector<5x5xf32>
    %cst_157 = arith.constant dense<0xFF800000> : vector<5xf32>
    %411 = vector.multi_reduction <maximumf>, %410, %cst_157 [1] : vector<5x5xf32> to vector<5xf32>
    %412 = vector.shape_cast %411 : vector<5xf32> to vector<5x1xf32>
    %413 = vector.broadcast %412 : vector<5x1xf32> to vector<5x5xf32>
    %414 = arith.subf %410, %413 : vector<5x5xf32>
    %415 = math.exp %414 : vector<5x5xf32>
    %cst_158 = arith.constant dense<0.000000e+00> : vector<5xf32>
    %416 = vector.multi_reduction <add>, %415, %cst_158 [1] : vector<5x5xf32> to vector<5xf32>
    %417 = vector.shape_cast %416 : vector<5xf32> to vector<5x1xf32>
    %418 = tpu.reciprocal %417 {approx = true} : vector<5x1xf32> -> vector<5x1xf32>
    %419 = vector.broadcast %418 : vector<5x1xf32> to vector<5x5xf32>
    %420 = arith.mulf %415, %419 : vector<5x5xf32>
    %cst_159 = arith.constant dense<0.000000e+00> : vector<5x8xf32>
    %421 = tpu.matmul %420, %407, %cst_159 {dimension_numbers = #tpu.dot_dimension_numbers<[1], [0], [0], [1], [0, 0, 1, 1], [], []>} : vector<5x5xf32>, vector<5x8xf32>, vector<5x8xf32> -> vector<5x8xf32>
    %422 = vector.extract_strided_slice %368 {offsets = [0, 24], sizes = [5, 8], strides = [1, 1]} : vector<5x32xf32> to vector<5x8xf32>
    %423 = vector.extract_strided_slice %369 {offsets = [0, 24], sizes = [5, 8], strides = [1, 1]} : vector<5x32xf32> to vector<5x8xf32>
    %424 = vector.extract_strided_slice %370 {offsets = [0, 24], sizes = [5, 8], strides = [1, 1]} : vector<5x32xf32> to vector<5x8xf32>
    %cst_160 = arith.constant dense<0.000000e+00> : vector<5x5xf32>
    %425 = tpu.matmul %422, %423, %cst_160 {dimension_numbers = #tpu.dot_dimension_numbers<[1], [1], [0], [0], [0, 0, 1, 0], [], []>} : vector<5x8xf32>, vector<5x8xf32>, vector<5x5xf32> -> vector<5x5xf32>
    %cst_161 = arith.constant 0.353553385 : f32
    %426 = vector.broadcast %cst_161 : f32 to vector<5x5xf32>
    %427 = arith.mulf %425, %426 : vector<5x5xf32>
    %cst_162 = arith.constant dense<0xFF800000> : vector<5xf32>
    %428 = vector.multi_reduction <maximumf>, %427, %cst_162 [1] : vector<5x5xf32> to vector<5xf32>
    %429 = vector.shape_cast %428 : vector<5xf32> to vector<5x1xf32>
    %430 = vector.broadcast %429 : vector<5x1xf32> to vector<5x5xf32>
    %431 = arith.subf %427, %430 : vector<5x5xf32>
    %432 = math.exp %431 : vector<5x5xf32>
    %cst_163 = arith.constant dense<0.000000e+00> : vector<5xf32>
    %433 = vector.multi_reduction <add>, %432, %cst_163 [1] : vector<5x5xf32> to vector<5xf32>
    %434 = vector.shape_cast %433 : vector<5xf32> to vector<5x1xf32>
    %435 = tpu.reciprocal %434 {approx = true} : vector<5x1xf32> -> vector<5x1xf32>
    %436 = vector.broadcast %435 : vector<5x1xf32> to vector<5x5xf32>
    %437 = arith.mulf %432, %436 : vector<5x5xf32>
    %cst_164 = arith.constant dense<0.000000e+00> : vector<5x8xf32>
    %438 = tpu.matmul %437, %424, %cst_164 {dimension_numbers = #tpu.dot_dimension_numbers<[1], [0], [0], [1], [0, 0, 1, 1], [], []>} : vector<5x5xf32>, vector<5x8xf32>, vector<5x8xf32> -> vector<5x8xf32>
    %439 = tpu.concatenate %387, %404, %421, %438 in 1 : vector<5x8xf32>, vector<5x8xf32>, vector<5x8xf32>, vector<5x8xf32> -> vector<5x32xf32>
    %440 = tpu.concatenate %367, %439 in 0 : vector<5x32xf32>, vector<5x32xf32> -> vector<10x32xf32>
    %c1_165 = arith.constant 1 : index
    %c0_166 = arith.constant 0 : index
    %c0_167 = arith.constant 0 : index
    %441 = vector.load %arg10[%c1_165, %c0_166, %c0_167] : memref<2x32x32xf32, #tpu.memory_space<vmem>>, vector<1x32x32xf32>
    %442 = vector.shape_cast %441 : vector<1x32x32xf32> to vector<32x32xf32>
    %cst_168 = arith.constant dense<0.000000e+00> : vector<10x32xf32>
    %443 = tpu.matmul %440, %442, %cst_168 {dimension_numbers = #tpu.dot_dimension_numbers<[1], [0], [0], [1], [0, 0, 1, 1], [], []>} : vector<10x32xf32>, vector<32x32xf32>, vector<10x32xf32> -> vector<10x32xf32>
    %444 = arith.addf %264, %443 : vector<10x32xf32>
    %c1_169 = arith.constant 1 : index
    %c0_170 = arith.constant 0 : index
    %c0_171 = arith.constant 0 : index
    %445 = vector.load %arg11[%c1_169, %c0_170, %c0_171] : memref<2x1x32xf32, #tpu.memory_space<vmem>>, vector<1x1x32xf32>
    %446 = vector.shape_cast %445 : vector<1x1x32xf32> to vector<1x32xf32>
    %447 = vector.broadcast %446 : vector<1x32xf32> to vector<10x32xf32>
    %448 = arith.addf %444, %447 : vector<10x32xf32>
    %c1_172 = arith.constant 1 : index
    %c0_173 = arith.constant 0 : index
    %c0_174 = arith.constant 0 : index
    %449 = vector.load %arg12[%c1_172, %c0_173, %c0_174] : memref<2x1x32xf32, #tpu.memory_space<vmem>>, vector<1x1x32xf32>
    %450 = vector.shape_cast %449 : vector<1x1x32xf32> to vector<1x32xf32>
    %c1_175 = arith.constant 1 : index
    %c0_176 = arith.constant 0 : index
    %c0_177 = arith.constant 0 : index
    %451 = vector.load %arg13[%c1_175, %c0_176, %c0_177] : memref<2x1x32xf32, #tpu.memory_space<vmem>>, vector<1x1x32xf32>
    %452 = vector.shape_cast %451 : vector<1x1x32xf32> to vector<1x32xf32>
    %cst_178 = arith.constant dense<0.000000e+00> : vector<10xf32>
    %453 = vector.multi_reduction <add>, %448, %cst_178 [1] : vector<10x32xf32> to vector<10xf32>
    %454 = vector.shape_cast %453 : vector<10xf32> to vector<10x1xf32>
    %cst_179 = arith.constant 3.200000e+01 : f32
    %455 = vector.broadcast %cst_179 : f32 to vector<10x1xf32>
    %456 = arith.divf %454, %455 : vector<10x1xf32>
    %457 = vector.broadcast %456 : vector<10x1xf32> to vector<10x32xf32>
    %458 = arith.subf %448, %457 : vector<10x32xf32>
    %459 = arith.mulf %458, %458 : vector<10x32xf32>
    %cst_180 = arith.constant dense<0.000000e+00> : vector<10xf32>
    %460 = vector.multi_reduction <add>, %459, %cst_180 [1] : vector<10x32xf32> to vector<10xf32>
    %461 = vector.shape_cast %460 : vector<10xf32> to vector<10x1xf32>
    %cst_181 = arith.constant 3.200000e+01 : f32
    %462 = vector.broadcast %cst_181 : f32 to vector<10x1xf32>
    %463 = arith.divf %461, %462 : vector<10x1xf32>
    %cst_182 = arith.constant 9.99999974E-6 : f32
    %464 = vector.broadcast %cst_182 : f32 to vector<10x1xf32>
    %465 = arith.addf %463, %464 : vector<10x1xf32>
    %466 = math.rsqrt %465 : vector<10x1xf32>
    %467 = vector.broadcast %466 : vector<10x1xf32> to vector<10x32xf32>
    %468 = arith.mulf %458, %467 : vector<10x32xf32>
    %469 = vector.broadcast %450 : vector<1x32xf32> to vector<10x32xf32>
    %470 = arith.mulf %468, %469 : vector<10x32xf32>
    %471 = vector.broadcast %452 : vector<1x32xf32> to vector<10x32xf32>
    %472 = arith.addf %470, %471 : vector<10x32xf32>
    %c1_183 = arith.constant 1 : index
    %c0_184 = arith.constant 0 : index
    %c0_185 = arith.constant 0 : index
    %473 = vector.load %arg14[%c1_183, %c0_184, %c0_185] : memref<2x32x128xf32, #tpu.memory_space<vmem>>, vector<1x32x128xf32>
    %474 = vector.shape_cast %473 : vector<1x32x128xf32> to vector<32x128xf32>
    %cst_186 = arith.constant dense<0.000000e+00> : vector<10x128xf32>
    %475 = tpu.matmul %472, %474, %cst_186 {dimension_numbers = #tpu.dot_dimension_numbers<[1], [0], [0], [1], [0, 0, 1, 1], [], []>} : vector<10x32xf32>, vector<32x128xf32>, vector<10x128xf32> -> vector<10x128xf32>
    %c1_187 = arith.constant 1 : index
    %c0_188 = arith.constant 0 : index
    %c0_189 = arith.constant 0 : index
    %476 = vector.load %arg15[%c1_187, %c0_188, %c0_189] : memref<2x1x128xf32, #tpu.memory_space<vmem>>, vector<1x1x128xf32>
    %477 = vector.shape_cast %476 : vector<1x1x128xf32> to vector<1x128xf32>
    %478 = vector.broadcast %477 : vector<1x128xf32> to vector<10x128xf32>
    %479 = arith.addf %475, %478 : vector<10x128xf32>
    %cst_190 = arith.constant 1.702000e+00 : f32
    %480 = vector.broadcast %cst_190 : f32 to vector<10x128xf32>
    %481 = arith.mulf %480, %479 : vector<10x128xf32>
    %482 = arith.negf %481 : vector<10x128xf32>
    %483 = math.exp %482 : vector<10x128xf32>
    %cst_191 = arith.constant 1.000000e+00 : f32
    %484 = vector.broadcast %cst_191 : f32 to vector<10x128xf32>
    %485 = arith.addf %484, %483 : vector<10x128xf32>
    %486 = arith.divf %484, %485 : vector<10x128xf32>
    %487 = arith.mulf %479, %486 : vector<10x128xf32>
    %c1_192 = arith.constant 1 : index
    %c0_193 = arith.constant 0 : index
    %c0_194 = arith.constant 0 : index
    %488 = vector.load %arg16[%c1_192, %c0_193, %c0_194] : memref<2x128x32xf32, #tpu.memory_space<vmem>>, vector<1x128x32xf32>
    %489 = vector.shape_cast %488 : vector<1x128x32xf32> to vector<128x32xf32>
    %cst_195 = arith.constant dense<0.000000e+00> : vector<10x32xf32>
    %490 = tpu.matmul %487, %489, %cst_195 {dimension_numbers = #tpu.dot_dimension_numbers<[1], [0], [0], [1], [0, 0, 1, 1], [], []>} : vector<10x128xf32>, vector<128x32xf32>, vector<10x32xf32> -> vector<10x32xf32>
    %491 = arith.addf %448, %490 : vector<10x32xf32>
    %c1_196 = arith.constant 1 : index
    %c0_197 = arith.constant 0 : index
    %c0_198 = arith.constant 0 : index
    %492 = vector.load %arg17[%c1_196, %c0_197, %c0_198] : memref<2x1x32xf32, #tpu.memory_space<vmem>>, vector<1x1x32xf32>
    %493 = vector.shape_cast %492 : vector<1x1x32xf32> to vector<1x32xf32>
    %494 = vector.broadcast %493 : vector<1x32xf32> to vector<10x32xf32>
    %495 = arith.addf %491, %494 : vector<10x32xf32>
    %c0_199 = arith.constant 0 : index
    %c0_200 = arith.constant 0 : index
    %496 = vector.load %arg18[%c0_199, %c0_200] : memref<10x32xf32, #tpu.memory_space<vmem>>, vector<10x32xf32>
    tpu.vector_store %arg18[%c0_199, %c0_200], %495 {strides = array<i32>} : memref<10x32xf32, #tpu.memory_space<vmem>>, vector<10x32xf32>,
    return
  }
}

</mosaic_0001>

<llo_original>
// kernel: _visual_forward.1
$region0: #{_visual_forward.1}
  #allocation0 [shape = 'u32[]', space=smem, size = 0x4, offset = 0x4, fixed_abs, tag = 'smem constant byte address 0x4 - core index']
  #allocation1 [shape = 'u32[144,128]{1,0:T(1,128)}', space=vmem, size = 0x12000, scoped, tag = 'internal scratch']
  %s0 = inlined_call_operand.vmem [shape: f32[8,3072], index: 0, kind: input, shape index: {}]
  %s1 = inlined_call_operand.vmem [shape: f32[3072,32], index: 1, kind: input, shape index: {}]
  %s2 = inlined_call_operand.vmem [shape: f32[1,32], index: 2, kind: input, shape index: {}]
  %s3 = inlined_call_operand.vmem [shape: f32[5,32], index: 3, kind: input, shape index: {}]
  %s4 = inlined_call_operand.vmem [shape: f32[1,32], index: 4, kind: input, shape index: {}]
  %s5 = inlined_call_operand.vmem [shape: f32[1,32], index: 5, kind: input, shape index: {}]
  %s6 = inlined_call_operand.vmem [shape: f32[2,1,32], index: 6, kind: input, shape index: {}]
  %s7 = inlined_call_operand.vmem [shape: f32[2,1,32], index: 7, kind: input, shape index: {}]
  %s8 = inlined_call_operand.vmem [shape: f32[2,32,96], index: 8, kind: input, shape index: {}]
  %s9 = inlined_call_operand.vmem [shape: f32[2,1,96], index: 9, kind: input, shape index: {}]
  %s10 = inlined_call_operand.vmem [shape: f32[2,32,32], index: 10, kind: input, shape index: {}]
  %s11 = inlined_call_operand.vmem [shape: f32[2,1,32], index: 11, kind: input, shape index: {}]
  %s12 = inlined_call_operand.vmem [shape: f32[2,1,32], index: 12, kind: input, shape index: {}]
  %s13 = inlined_call_operand.vmem [shape: f32[2,1,32], index: 13, kind: input, shape index: {}]
  %s14 = inlined_call_operand.vmem [shape: f32[2,32,128], index: 14, kind: input, shape index: {}]
  %s15 = inlined_call_operand.vmem [shape: f32[2,1,128], index: 15, kind: input, shape index: {}]
  %s16 = inlined_call_operand.vmem [shape: f32[2,128,32], index: 16, kind: input, shape index: {}]
  %s17 = inlined_call_operand.vmem [shape: f32[2,1,32], index: 17, kind: input, shape index: {}]
  %s18 = inlined_call_operand.vmem [shape: f32[10,32], index: 18, kind: output, shape index: {}]
  %s19 = sld [smem:[#allocation0]]
  $region82: #{_visual_forward.1} parent=0
    _
  %s21 = ssub.s32 1, %s19
  %s22 = scalar_select 0, %s21, %s19
  // Predicated region
  $region2: #{_visual_forward.1} parent=0 // pred_check
    _
  $region3: #{_visual_forward.1} parent=0 // pred_check_branch
    %24 = sbr.rel (0) target = $region5
  $region4: #{_visual_forward.1} parent=0 // pred_region
    _
  $region5: #{_visual_forward.1} parent=0 // pred_fallthru
    _
  // Predicated region
  $region6: #{_visual_forward.1} parent=0 // pred_check
    _
  $region7: #{_visual_forward.1} parent=0 // pred_check_branch
    %26 = sbr.rel (0) target = $region9
  $region8: #{_visual_forward.1} parent=0 // pred_region
    _
  $region9: #{_visual_forward.1} parent=0 // pred_fallthru
    _
  // Predicated region
  $region10: #{_visual_forward.1} parent=0 // pred_check
    _
  $region11: #{_visual_forward.1} parent=0 // pred_check_branch
    %28 = sbr.rel (0) target = $region13
  $region12: #{_visual_forward.1} parent=0 // pred_region
    _
  $region13: #{_visual_forward.1} parent=0 // pred_fallthru
    _
  // Predicated region
  $region14: #{_visual_forward.1} parent=0 // pred_check
    _
  $region15: #{_visual_forward.1} parent=0 // pred_check_branch
    %30 = sbr.rel (0) target = $region17
  $region16: #{_visual_forward.1} parent=0 // pred_region
    _
  $region17: #{_visual_forward.1} parent=0 // pred_fallthru
    _
  // Predicated region
  $region18: #{_visual_forward.1} parent=0 // pred_check
    _
  $region19: #{_visual_forward.1} parent=0 // pred_check_branch
    %32 = sbr.rel (0) target = $region21
  $region20: #{_visual_forward.1} parent=0 // pred_region
    _
  $region21: #{_visual_forward.1} parent=0 // pred_fallthru
    _
  // Predicated region
  $region22: #{_visual_forward.1} parent=0 // pred_check
    _
  $region23: #{_visual_forward.1} parent=0 // pred_check_branch
    %34 = sbr.rel (0) target = $region25
  $region24: #{_visual_forward.1} parent=0 // pred_region
    _
  $region25: #{_visual_forward.1} parent=0 // pred_fallthru
    _
  // Predicated region
  $region26: #{_visual_forward.1} parent=0 // pred_check
    _
  $region27: #{_visual_forward.1} parent=0 // pred_check_branch
    %36 = sbr.rel (0) target = $region29
  $region28: #{_visual_forward.1} parent=0 // pred_region
    _
  $region29: #{_visual_forward.1} parent=0 // pred_fallthru
    _
  // Predicated region
  $region30: #{_visual_forward.1} parent=0 // pred_check
    _
  $region31: #{_visual_forward.1} parent=0 // pred_check_branch
    %38 = sbr.rel (0) target = $region33
  $region32: #{_visual_forward.1} parent=0 // pred_region
    _
  $region33: #{_visual_forward.1} parent=0 // pred_fallthru
    _
  // Predicated region
  $region34: #{_visual_forward.1} parent=0 // pred_check
    _
  $region35: #{_visual_forward.1} parent=0 // pred_check_branch
    %40 = sbr.rel (0) target = $region37
  $region36: #{_visual_forward.1} parent=0 // pred_region
    _
  $region37: #{_visual_forward.1} parent=0 // pred_fallthru
    _
  // Predicated region
  $region38: #{_visual_forward.1} parent=0 // pred_check
    _
  $region39: #{_visual_forward.1} parent=0 // pred_check_branch
    %42 = sbr.rel (0) target = $region41
  $region40: #{_visual_forward.1} parent=0 // pred_region
    _
  $region41: #{_visual_forward.1} parent=0 // pred_fallthru
    _
  // Predicated region
  $region42: #{_visual_forward.1} parent=0 // pred_check
    _
  $region43: #{_visual_forward.1} parent=0 // pred_check_branch
    %44 = sbr.rel (0) target = $region45
  $region44: #{_visual_forward.1} parent=0 // pred_region
    _
  $region45: #{_visual_forward.1} parent=0 // pred_fallthru
    _
  // Predicated region
  $region46: #{_visual_forward.1} parent=0 // pred_check
    _
  $region47: #{_visual_forward.1} parent=0 // pred_check_branch
    %46 = sbr.rel (0) target = $region49
  $region48: #{_visual_forward.1} parent=0 // pred_region
    _
  $region49: #{_visual_forward.1} parent=0 // pred_fallthru
    _
  // Predicated region
  $region50: #{_visual_forward.1} parent=0 // pred_check
    _
  $region51: #{_visual_forward.1} parent=0 // pred_check_branch
    %48 = sbr.rel (0) target = $region53
  $region52: #{_visual_forward.1} parent=0 // pred_region
    _
  $region53: #{_visual_forward.1} parent=0 // pred_fallthru
    _
  // Predicated region
  $region54: #{_visual_forward.1} parent=0 // pred_check
    _
  $region55: #{_visual_forward.1} parent=0 // pred_check_branch
    %50 = sbr.rel (0) target = $region57
  $region56: #{_visual_forward.1} parent=0 // pred_region
    _
  $region57: #{_visual_forward.1} parent=0 // pred_fallthru
    _
  // Predicated region
  $region58: #{_visual_forward.1} parent=0 // pred_check
    _
  $region59: #{_visual_forward.1} parent=0 // pred_check_branch
    %52 = sbr.rel (0) target = $region61
  $region60: #{_visual_forward.1} parent=0 // pred_region
    _
  $region61: #{_visual_forward.1} parent=0 // pred_fallthru
    _
  // Predicated region
  $region62: #{_visual_forward.1} parent=0 // pred_check
    _
  $region63: #{_visual_forward.1} parent=0 // pred_check_branch
    %54 = sbr.rel (0) target = $region65
  $region64: #{_visual_forward.1} parent=0 // pred_region
    _
  $region65: #{_visual_forward.1} parent=0 // pred_fallthru
    _
  // Predicated region
  $region66: #{_visual_forward.1} parent=0 // pred_check
    _
  $region67: #{_visual_forward.1} parent=0 // pred_check_branch
    %56 = sbr.rel (0) target = $region69
  $region68: #{_visual_forward.1} parent=0 // pred_region
    _
  $region69: #{_visual_forward.1} parent=0 // pred_fallthru
    _
  // Predicated region
  $region70: #{_visual_forward.1} parent=0 // pred_check
    _
  $region71: #{_visual_forward.1} parent=0 // pred_check_branch
    %58 = sbr.rel (0) target = $region73
  $region72: #{_visual_forward.1} parent=0 // pred_region
    _
  $region73: #{_visual_forward.1} parent=0 // pred_fallthru
    _
  %v59 = vld [vmem:[%s0] sm:$0xff]
  %v60 = vld [vmem:[%s0 + $0x8] sm:$0xff]
  %v61 = vld [vmem:[%s0 + $0x10] sm:$0xff]
  %v62 = vld [vmem:[%s0 + $0x18] sm:$0xff]
  %v63 = vld [vmem:[%s0 + $0x20] sm:$0xff]
  %v64 = vld [vmem:[%s0 + $0x28] sm:$0xff]
  %v65 = vld [vmem:[%s0 + $0x30] sm:$0xff]
  %v66 = vld [vmem:[%s0 + $0x38] sm:$0xff]
  %v67 = vld [vmem:[%s0 + $0x40] sm:$0xff]
  %v68 = vld [vmem:[%s0 + $0x48] sm:$0xff]
  %v69 = vld [vmem:[%s0 + $0x50] sm:$0xff]
  %v70 = vld [vmem:[%s0 + $0x58] sm:$0xff]
  %v71 = vld [vmem:[%s0 + $0x60] sm:$0xff]
  %v72 = vld [vmem:[%s0 + $0x68] sm:$0xff]
  %v73 = vld [vmem:[%s0 + $0x70] sm:$0xff]
  %v74 = vld [vmem:[%s0 + $0x78] sm:$0xff]
  %v75 = vld [vmem:[%s0 + $0x80] sm:$0xff]
  %v76 = vld [vmem:[%s0 + $0x88] sm:$0xff]
  %v77 = vld [vmem:[%s0 + $0x90] sm:$0xff]
  %v78 = vld [vmem:[%s0 + $0x98] sm:$0xff]
  %v79 = vld [vmem:[%s0 + $0xa0] sm:$0xff]
  %v80 = vld [vmem:[%s0 + $0xa8] sm:$0xff]
  %v81 = vld [vmem:[%s0 + $0xb0] sm:$0xff]
  %v82 = vld [vmem:[%s0 + $0xb8] sm:$0xff]
  %v83 = vld [vmem:[%s1] sm:$0xff]
  %v84 = vld [vmem:[%s1 + $0x8] sm:$0xff]
  %v85 = vld [vmem:[%s1 + $0x10] sm:$0xff]
  %v86 = vld [vmem:[%s1 + $0x18] sm:$0xff]
  %v87 = vld [vmem:[%s1 + $0x20] sm:$0xff]
  %v88 = vld [vmem:[%s1 + $0x28] sm:$0xff]
  %v89 = vld [vmem:[%s1 + $0x30] sm:$0xff]
  %v90 = vld [vmem:[%s1 + $0x38] sm:$0xff]
  %v91 = vld [vmem:[%s1 + $0x40] sm:$0xff]
  %v92 = vld [vmem:[%s1 + $0x48] sm:$0xff]
  %v93 = vld [vmem:[%s1 + $0x50] sm:$0xff]
  %v94 = vld [vmem:[%s1 + $0x58] sm:$0xff]
  %v95 = vld [vmem:[%s1 + $0x60] sm:$0xff]
  %v96 = vld [vmem:[%s1 + $0x68] sm:$0xff]
  %v97 = vld [vmem:[%s1 + $0x70] sm:$0xff]
  %v98 = vld [vmem:[%s1 + $0x78] sm:$0xff]
  %v99 = vld [vmem:[%s1 + $0x80] sm:$0xff]
  %v100 = vld [vmem:[%s1 + $0x88] sm:$0xff]
  %v101 = vld [vmem:[%s1 + $0x90] sm:$0xff]
  %v102 = vld [vmem:[%s1 + $0x98] sm:$0xff]
  %v103 = vld [vmem:[%s1 + $0xa0] sm:$0xff]
  %v104 = vld [vmem:[%s1 + $0xa8] sm:$0xff]
  %v105 = vld [vmem:[%s1 + $0xb0] sm:$0xff]
  %v106 = vld [vmem:[%s1 + $0xb8] sm:$0xff]
  %v107 = vld [vmem:[%s1 + $0xc0] sm:$0xff]
  %v108 = vld [vmem:[%s1 + $0xc8] sm:$0xff]
  %v109 = vld [vmem:[%s1 + $0xd0] sm:$0xff]
  %v110 = vld [vmem:[%s1 + $0xd8] sm:$0xff]
  %v111 = vld [vmem:[%s1 + $0xe0] sm:$0xff]
  %v112 = vld [vmem:[%s1 + $0xe8] sm:$0xff]
  %v113 = vld [vmem:[%s1 + $0xf0] sm:$0xff]
  %v114 = vld [vmem:[%s1 + $0xf8] sm:$0xff]
  %v115 = vld [vmem:[%s1 + $0x100] sm:$0xff]
  %v116 = vld [vmem:[%s1 + $0x108] sm:$0xff]
  %v117 = vld [vmem:[%s1 + $0x110] sm:$0xff]
  %v118 = vld [vmem:[%s1 + $0x118] sm:$0xff]
  %v119 = vld [vmem:[%s1 + $0x120] sm:$0xff]
  %v120 = vld [vmem:[%s1 + $0x128] sm:$0xff]
  %v121 = vld [vmem:[%s1 + $0x130] sm:$0xff]
  %v122 = vld [vmem:[%s1 + $0x138] sm:$0xff]
  %v123 = vld [vmem:[%s1 + $0x140] sm:$0xff]
  %v124 = vld [vmem:[%s1 + $0x148] sm:$0xff]
  %v125 = vld [vmem:[%s1 + $0x150] sm:$0xff]
  %v126 = vld [vmem:[%s1 + $0x158] sm:$0xff]
  %v127 = vld [vmem:[%s1 + $0x160] sm:$0xff]
  %v128 = vld [vmem:[%s1 + $0x168] sm:$0xff]
  %v129 = vld [vmem:[%s1 + $0x170] sm:$0xff]
  %v130 = vld [vmem:[%s1 + $0x178] sm:$0xff]
  %v131 = vld [vmem:[%s1 + $0x180] sm:$0xff]
  %v132 = vld [vmem:[%s1 + $0x188] sm:$0xff]
  %v133 = vld [vmem:[%s1 + $0x190] sm:$0xff]
  %v134 = vld [vmem:[%s1 + $0x198] sm:$0xff]
  %v135 = vld [vmem:[%s1 + $0x1a0] sm:$0xff]
  %v136 = vld [vmem:[%s1 + $0x1a8] sm:$0xff]
  %v137 = vld [vmem:[%s1 + $0x1b0] sm:$0xff]
  %v138 = vld [vmem:[%s1 + $0x1b8] sm:$0xff]
  %v139 = vld [vmem:[%s1 + $0x1c0] sm:$0xff]
  %v140 = vld [vmem:[%s1 + $0x1c8] sm:$0xff]
  %v141 = vld [vmem:[%s1 + $0x1d0] sm:$0xff]
  %v142 = vld [vmem:[%s1 + $0x1d8] sm:$0xff]
  %v143 = vld [vmem:[%s1 + $0x1e0] sm:$0xff]
  %v144 = vld [vmem:[%s1 + $0x1e8] sm:$0xff]
  %v145 = vld [vmem:[%s1 + $0x1f0] sm:$0xff]
  %v146 = vld [vmem:[%s1 + $0x1f8] sm:$0xff]
  %v147 = vld [vmem:[%s1 + $0x200] sm:$0xff]
  %v148 = vld [vmem:[%s1 + $0x208] sm:$0xff]
  %v149 = vld [vmem:[%s1 + $0x210] sm:$0xff]
  %v150 = vld [vmem:[%s1 + $0x218] sm:$0xff]
  %v151 = vld [vmem:[%s1 + $0x220] sm:$0xff]
  %v152 = vld [vmem:[%s1 + $0x228] sm:$0xff]
  %v153 = vld [vmem:[%s1 + $0x230] sm:$0xff]
  %v154 = vld [vmem:[%s1 + $0x238] sm:$0xff]
  %v155 = vld [vmem:[%s1 + $0x240] sm:$0xff]
  %v156 = vld [vmem:[%s1 + $0x248] sm:$0xff]
  %v157 = vld [vmem:[%s1 + $0x250] sm:$0xff]
  %v158 = vld [vmem:[%s1 + $0x258] sm:$0xff]
  %v159 = vld [vmem:[%s1 + $0x260] sm:$0xff]
  %v160 = vld [vmem:[%s1 + $0x268] sm:$0xff]
  %v161 = vld [vmem:[%s1 + $0x270] sm:$0xff]
  %v162 = vld [vmem:[%s1 + $0x278] sm:$0xff]
  %v163 = vld [vmem:[%s1 + $0x280] sm:$0xff]
  %v164 = vld [vmem:[%s1 + $0x288] sm:$0xff]
  %v165 = vld [vmem:[%s1 + $0x290] sm:$0xff]
  %v166 = vld [vmem:[%s1 + $0x298] sm:$0xff]
  %v167 = vld [vmem:[%s1 + $0x2a0] sm:$0xff]
  %v168 = vld [vmem:[%s1 + $0x2a8] sm:$0xff]
  %v169 = vld [vmem:[%s1 + $0x2b0] sm:$0xff]
  %v170 = vld [vmem:[%s1 + $0x2b8] sm:$0xff]
  %v171 = vld [vmem:[%s1 + $0x2c0] sm:$0xff]
  %v172 = vld [vmem:[%s1 + $0x2c8] sm:$0xff]
  %v173 = vld [vmem:[%s1 + $0x2d0] sm:$0xff]
  %v174 = vld [vmem:[%s1 + $0x2d8] sm:$0xff]
  %v175 = vld [vmem:[%s1 + $0x2e0] sm:$0xff]
  %v176 = vld [vmem:[%s1 + $0x2e8] sm:$0xff]
  %v177 = vld [vmem:[%s1 + $0x2f0] sm:$0xff]
  %v178 = vld [vmem:[%s1 + $0x2f8] sm:$0xff]
  %v179 = vld [vmem:[%s1 + $0x300] sm:$0xff]
  %v180 = vld [vmem:[%s1 + $0x308] sm:$0xff]
  %v181 = vld [vmem:[%s1 + $0x310] sm:$0xff]
  %v182 = vld [vmem:[%s1 + $0x318] sm:$0xff]
  %v183 = vld [vmem:[%s1 + $0x320] sm:$0xff]
  %v184 = vld [vmem:[%s1 + $0x328] sm:$0xff]
  %v185 = vld [vmem:[%s1 + $0x330] sm:$0xff]
  %v186 = vld [vmem:[%s1 + $0x338] sm:$0xff]
  %v187 = vld [vmem:[%s1 + $0x340] sm:$0xff]
  %v188 = vld [vmem:[%s1 + $0x348] sm:$0xff]
  %v189 = vld [vmem:[%s1 + $0x350] sm:$0xff]
  %v190 = vld [vmem:[%s1 + $0x358] sm:$0xff]
  %v191 = vld [vmem:[%s1 + $0x360] sm:$0xff]
  %v192 = vld [vmem:[%s1 + $0x368] sm:$0xff]
  %v193 = vld [vmem:[%s1 + $0x370] sm:$0xff]
  %v194 = vld [vmem:[%s1 + $0x378] sm:$0xff]
  %v195 = vld [vmem:[%s1 + $0x380] sm:$0xff]
  %v196 = vld [vmem:[%s1 + $0x388] sm:$0xff]
  %v197 = vld [vmem:[%s1 + $0x390] sm:$0xff]
  %v198 = vld [vmem:[%s1 + $0x398] sm:$0xff]
  %v199 = vld [vmem:[%s1 + $0x3a0] sm:$0xff]
  %v200 = vld [vmem:[%s1 + $0x3a8] sm:$0xff]
  %v201 = vld [vmem:[%s1 + $0x3b0] sm:$0xff]
  %v202 = vld [vmem:[%s1 + $0x3b8] sm:$0xff]
  %v203 = vld [vmem:[%s1 + $0x3c0] sm:$0xff]
  %v204 = vld [vmem:[%s1 + $0x3c8] sm:$0xff]
  %v205 = vld [vmem:[%s1 + $0x3d0] sm:$0xff]
  %v206 = vld [vmem:[%s1 + $0x3d8] sm:$0xff]
  %v207 = vld [vmem:[%s1 + $0x3e0] sm:$0xff]
  %v208 = vld [vmem:[%s1 + $0x3e8] sm:$0xff]
  %v209 = vld [vmem:[%s1 + $0x3f0] sm:$0xff]
  %v210 = vld [vmem:[%s1 + $0x3f8] sm:$0xff]
  %v211 = vld [vmem:[%s1 + $0x400] sm:$0xff]
  %v212 = vld [vmem:[%s1 + $0x408] sm:$0xff]
  %v213 = vld [vmem:[%s1 + $0x410] sm:$0xff]
  %v214 = vld [vmem:[%s1 + $0x418] sm:$0xff]
  %v215 = vld [vmem:[%s1 + $0x420] sm:$0xff]
  %v216 = vld [vmem:[%s1 + $0x428] sm:$0xff]
  %v217 = vld [vmem:[%s1 + $0x430] sm:$0xff]
  %v218 = vld [vmem:[%s1 + $0x438] sm:$0xff]
  %v219 = vld [vmem:[%s1 + $0x440] sm:$0xff]
  %v220 = vld [vmem:[%s1 + $0x448] sm:$0xff]
  %v221 = vld [vmem:[%s1 + $0x450] sm:$0xff]
  %v222 = vld [vmem:[%s1 + $0x458] sm:$0xff]
  %v223 = vld [vmem:[%s1 + $0x460] sm:$0xff]
  %v224 = vld [vmem:[%s1 + $0x468] sm:$0xff]
  %v225 = vld [vmem:[%s1 + $0x470] sm:$0xff]
  %v226 = vld [vmem:[%s1 + $0x478] sm:$0xff]
  %v227 = vld [vmem:[%s1 + $0x480] sm:$0xff]
  %v228 = vld [vmem:[%s1 + $0x488] sm:$0xff]
  %v229 = vld [vmem:[%s1 + $0x490] sm:$0xff]
  %v230 = vld [vmem:[%s1 + $0x498] sm:$0xff]
  %v231 = vld [vmem:[%s1 + $0x4a0] sm:$0xff]
  %v232 = vld [vmem:[%s1 + $0x4a8] sm:$0xff]
  %v233 = vld [vmem:[%s1 + $0x4b0] sm:$0xff]
  %v234 = vld [vmem:[%s1 + $0x4b8] sm:$0xff]
  %v235 = vld [vmem:[%s1 + $0x4c0] sm:$0xff]
  %v236 = vld [vmem:[%s1 + $0x4c8] sm:$0xff]
  %v237 = vld [vmem:[%s1 + $0x4d0] sm:$0xff]
  %v238 = vld [vmem:[%s1 + $0x4d8] sm:$0xff]
  %v239 = vld [vmem:[%s1 + $0x4e0] sm:$0xff]
  %v240 = vld [vmem:[%s1 + $0x4e8] sm:$0xff]
  %v241 = vld [vmem:[%s1 + $0x4f0] sm:$0xff]
  %v242 = vld [vmem:[%s1 + $0x4f8] sm:$0xff]
  %v243 = vld [vmem:[%s1 + $0x500] sm:$0xff]
  %v244 = vld [vmem:[%s1 + $0x508] sm:$0xff]
  %v245 = vld [vmem:[%s1 + $0x510] sm:$0xff]
  %v246 = vld [vmem:[%s1 + $0x518] sm:$0xff]
  %v247 = vld [vmem:[%s1 + $0x520] sm:$0xff]
  %v248 = vld [vmem:[%s1 + $0x528] sm:$0xff]
  %v249 = vld [vmem:[%s1 + $0x530] sm:$0xff]
  %v250 = vld [vmem:[%s1 + $0x538] sm:$0xff]
  %v251 = vld [vmem:[%s1 + $0x540] sm:$0xff]
  %v252 = vld [vmem:[%s1 + $0x548] sm:$0xff]
  %v253 = vld [vmem:[%s1 + $0x550] sm:$0xff]
  %v254 = vld [vmem:[%s1 + $0x558] sm:$0xff]
  %v255 = vld [vmem:[%s1 + $0x560] sm:$0xff]
  %v256 = vld [vmem:[%s1 + $0x568] sm:$0xff]
  %v257 = vld [vmem:[%s1 + $0x570] sm:$0xff]
  %v258 = vld [vmem:[%s1 + $0x578] sm:$0xff]
  %v259 = vld [vmem:[%s1 + $0x580] sm:$0xff]
  %v260 = vld [vmem:[%s1 + $0x588] sm:$0xff]
  %v261 = vld [vmem:[%s1 + $0x590] sm:$0xff]
  %v262 = vld [vmem:[%s1 + $0x598] sm:$0xff]
  %v263 = vld [vmem:[%s1 + $0x5a0] sm:$0xff]
  %v264 = vld [vmem:[%s1 + $0x5a8] sm:$0xff]
  %v265 = vld [vmem:[%s1 + $0x5b0] sm:$0xff]
  %v266 = vld [vmem:[%s1 + $0x5b8] sm:$0xff]
  %v267 = vld [vmem:[%s1 + $0x5c0] sm:$0xff]
  %v268 = vld [vmem:[%s1 + $0x5c8] sm:$0xff]
  %v269 = vld [vmem:[%s1 + $0x5d0] sm:$0xff]
  %v270 = vld [vmem:[%s1 + $0x5d8] sm:$0xff]
  %v271 = vld [vmem:[%s1 + $0x5e0] sm:$0xff]
  %v272 = vld [vmem:[%s1 + $0x5e8] sm:$0xff]
  %v273 = vld [vmem:[%s1 + $0x5f0] sm:$0xff]
  %v274 = vld [vmem:[%s1 + $0x5f8] sm:$0xff]
  %v275 = vld [vmem:[%s1 + $0x600] sm:$0xff]
  %v276 = vld [vmem:[%s1 + $0x608] sm:$0xff]
  %v277 = vld [vmem:[%s1 + $0x610] sm:$0xff]
  %v278 = vld [vmem:[%s1 + $0x618] sm:$0xff]
  %v279 = vld [vmem:[%s1 + $0x620] sm:$0xff]
  %v280 = vld [vmem:[%s1 + $0x628] sm:$0xff]
  %v281 = vld [vmem:[%s1 + $0x630] sm:$0xff]
  %v282 = vld [vmem:[%s1 + $0x638] sm:$0xff]
  %v283 = vld [vmem:[%s1 + $0x640] sm:$0xff]
  %v284 = vld [vmem:[%s1 + $0x648] sm:$0xff]
  %v285 = vld [vmem:[%s1 + $0x650] sm:$0xff]
  %v286 = vld [vmem:[%s1 + $0x658] sm:$0xff]
  %v287 = vld [vmem:[%s1 + $0x660] sm:$0xff]
  %v288 = vld [vmem:[%s1 + $0x668] sm:$0xff]
  %v289 = vld [vmem:[%s1 + $0x670] sm:$0xff]
  %v290 = vld [vmem:[%s1 + $0x678] sm:$0xff]
  %v291 = vld [vmem:[%s1 + $0x680] sm:$0xff]
  %v292 = vld [vmem:[%s1 + $0x688] sm:$0xff]
  %v293 = vld [vmem:[%s1 + $0x690] sm:$0xff]
  %v294 = vld [vmem:[%s1 + $0x698] sm:$0xff]
  %v295 = vld [vmem:[%s1 + $0x6a0] sm:$0xff]
  %v296 = vld [vmem:[%s1 + $0x6a8] sm:$0xff]
  %v297 = vld [vmem:[%s1 + $0x6b0] sm:$0xff]
  %v298 = vld [vmem:[%s1 + $0x6b8] sm:$0xff]
  %v299 = vld [vmem:[%s1 + $0x6c0] sm:$0xff]
  %v300 = vld [vmem:[%s1 + $0x6c8] sm:$0xff]
  %v301 = vld [vmem:[%s1 + $0x6d0] sm:$0xff]
  %v302 = vld [vmem:[%s1 + $0x6d8] sm:$0xff]
  %v303 = vld [vmem:[%s1 + $0x6e0] sm:$0xff]
  %v304 = vld [vmem:[%s1 + $0x6e8] sm:$0xff]
  %v305 = vld [vmem:[%s1 + $0x6f0] sm:$0xff]
  %v306 = vld [vmem:[%s1 + $0x6f8] sm:$0xff]
  %v307 = vld [vmem:[%s1 + $0x700] sm:$0xff]
  %v308 = vld [vmem:[%s1 + $0x708] sm:$0xff]
  %v309 = vld [vmem:[%s1 + $0x710] sm:$0xff]
  %v310 = vld [vmem:[%s1 + $0x718] sm:$0xff]
  %v311 = vld [vmem:[%s1 + $0x720] sm:$0xff]
  %v312 = vld [vmem:[%s1 + $0x728] sm:$0xff]
  %v313 = vld [vmem:[%s1 + $0x730] sm:$0xff]
  %v314 = vld [vmem:[%s1 + $0x738] sm:$0xff]
  %v315 = vld [vmem:[%s1 + $0x740] sm:$0xff]
  %v316 = vld [vmem:[%s1 + $0x748] sm:$0xff]
  %v317 = vld [vmem:[%s1 + $0x750] sm:$0xff]
  %v318 = vld [vmem:[%s1 + $0x758] sm:$0xff]
  %v319 = vld [vmem:[%s1 + $0x760] sm:$0xff]
  %v320 = vld [vmem:[%s1 + $0x768] sm:$0xff]
  %v321 = vld [vmem:[%s1 + $0x770] sm:$0xff]
  %v322 = vld [vmem:[%s1 + $0x778] sm:$0xff]
  %v323 = vld [vmem:[%s1 + $0x780] sm:$0xff]
  %v324 = vld [vmem:[%s1 + $0x788] sm:$0xff]
  %v325 = vld [vmem:[%s1 + $0x790] sm:$0xff]
  %v326 = vld [vmem:[%s1 + $0x798] sm:$0xff]
  %v327 = vld [vmem:[%s1 + $0x7a0] sm:$0xff]
  %v328 = vld [vmem:[%s1 + $0x7a8] sm:$0xff]
  %v329 = vld [vmem:[%s1 + $0x7b0] sm:$0xff]
  %v330 = vld [vmem:[%s1 + $0x7b8] sm:$0xff]
  %v331 = vld [vmem:[%s1 + $0x7c0] sm:$0xff]
  %v332 = vld [vmem:[%s1 + $0x7c8] sm:$0xff]
  %v333 = vld [vmem:[%s1 + $0x7d0] sm:$0xff]
  %v334 = vld [vmem:[%s1 + $0x7d8] sm:$0xff]
  %v335 = vld [vmem:[%s1 + $0x7e0] sm:$0xff]
  %v336 = vld [vmem:[%s1 + $0x7e8] sm:$0xff]
  %v337 = vld [vmem:[%s1 + $0x7f0] sm:$0xff]
  %v338 = vld [vmem:[%s1 + $0x7f8] sm:$0xff]
  %v339 = vld [vmem:[%s1 + $0x800] sm:$0xff]
  %v340 = vld [vmem:[%s1 + $0x808] sm:$0xff]
  %v341 = vld [vmem:[%s1 + $0x810] sm:$0xff]
  %v342 = vld [vmem:[%s1 + $0x818] sm:$0xff]
  %v343 = vld [vmem:[%s1 + $0x820] sm:$0xff]
  %v344 = vld [vmem:[%s1 + $0x828] sm:$0xff]
  %v345 = vld [vmem:[%s1 + $0x830] sm:$0xff]
  %v346 = vld [vmem:[%s1 + $0x838] sm:$0xff]
  %v347 = vld [vmem:[%s1 + $0x840] sm:$0xff]
  %v348 = vld [vmem:[%s1 + $0x848] sm:$0xff]
  %v349 = vld [vmem:[%s1 + $0x850] sm:$0xff]
  %v350 = vld [vmem:[%s1 + $0x858] sm:$0xff]
  %v351 = vld [vmem:[%s1 + $0x860] sm:$0xff]
  %v352 = vld [vmem:[%s1 + $0x868] sm:$0xff]
  %v353 = vld [vmem:[%s1 + $0x870] sm:$0xff]
  %v354 = vld [vmem:[%s1 + $0x878] sm:$0xff]
  %v355 = vld [vmem:[%s1 + $0x880] sm:$0xff]
  %v356 = vld [vmem:[%s1 + $0x888] sm:$0xff]
  %v357 = vld [vmem:[%s1 + $0x890] sm:$0xff]
  %v358 = vld [vmem:[%s1 + $0x898] sm:$0xff]
  %v359 = vld [vmem:[%s1 + $0x8a0] sm:$0xff]
  %v360 = vld [vmem:[%s1 + $0x8a8] sm:$0xff]
  %v361 = vld [vmem:[%s1 + $0x8b0] sm:$0xff]
  %v362 = vld [vmem:[%s1 + $0x8b8] sm:$0xff]
  %v363 = vld [vmem:[%s1 + $0x8c0] sm:$0xff]
  %v364 = vld [vmem:[%s1 + $0x8c8] sm:$0xff]
  %v365 = vld [vmem:[%s1 + $0x8d0] sm:$0xff]
  %v366 = vld [vmem:[%s1 + $0x8d8] sm:$0xff]
  %v367 = vld [vmem:[%s1 + $0x8e0] sm:$0xff]
  %v368 = vld [vmem:[%s1 + $0x8e8] sm:$0xff]
  %v369 = vld [vmem:[%s1 + $0x8f0] sm:$0xff]
  %v370 = vld [vmem:[%s1 + $0x8f8] sm:$0xff]
  %v371 = vld [vmem:[%s1 + $0x900] sm:$0xff]
  %v372 = vld [vmem:[%s1 + $0x908] sm:$0xff]
  %v373 = vld [vmem:[%s1 + $0x910] sm:$0xff]
  %v374 = vld [vmem:[%s1 + $0x918] sm:$0xff]
  %v375 = vld [vmem:[%s1 + $0x920] sm:$0xff]
  %v376 = vld [vmem:[%s1 + $0x928] sm:$0xff]
  %v377 = vld [vmem:[%s1 + $0x930] sm:$0xff]
  %v378 = vld [vmem:[%s1 + $0x938] sm:$0xff]
  %v379 = vld [vmem:[%s1 + $0x940] sm:$0xff]
  %v380 = vld [vmem:[%s1 + $0x948] sm:$0xff]
  %v381 = vld [vmem:[%s1 + $0x950] sm:$0xff]
  %v382 = vld [vmem:[%s1 + $0x958] sm:$0xff]
  %v383 = vld [vmem:[%s1 + $0x960] sm:$0xff]
  %v384 = vld [vmem:[%s1 + $0x968] sm:$0xff]
  %v385 = vld [vmem:[%s1 + $0x970] sm:$0xff]
  %v386 = vld [vmem:[%s1 + $0x978] sm:$0xff]
  %v387 = vld [vmem:[%s1 + $0x980] sm:$0xff]
  %v388 = vld [vmem:[%s1 + $0x988] sm:$0xff]
  %v389 = vld [vmem:[%s1 + $0x990] sm:$0xff]
  %v390 = vld [vmem:[%s1 + $0x998] sm:$0xff]
  %v391 = vld [vmem:[%s1 + $0x9a0] sm:$0xff]
  %v392 = vld [vmem:[%s1 + $0x9a8] sm:$0xff]
  %v393 = vld [vmem:[%s1 + $0x9b0] sm:$0xff]
  %v394 = vld [vmem:[%s1 + $0x9b8] sm:$0xff]
  %v395 = vld [vmem:[%s1 + $0x9c0] sm:$0xff]
  %v396 = vld [vmem:[%s1 + $0x9c8] sm:$0xff]
  %v397 = vld [vmem:[%s1 + $0x9d0] sm:$0xff]
  %v398 = vld [vmem:[%s1 + $0x9d8] sm:$0xff]
  %v399 = vld [vmem:[%s1 + $0x9e0] sm:$0xff]
  %v400 = vld [vmem:[%s1 + $0x9e8] sm:$0xff]
  %v401 = vld [vmem:[%s1 + $0x9f0] sm:$0xff]
  %v402 = vld [vmem:[%s1 + $0x9f8] sm:$0xff]
  %v403 = vld [vmem:[%s1 + $0xa00] sm:$0xff]
  %v404 = vld [vmem:[%s1 + $0xa08] sm:$0xff]
  %v405 = vld [vmem:[%s1 + $0xa10] sm:$0xff]
  %v406 = vld [vmem:[%s1 + $0xa18] sm:$0xff]
  %v407 = vld [vmem:[%s1 + $0xa20] sm:$0xff]
  %v408 = vld [vmem:[%s1 + $0xa28] sm:$0xff]
  %v409 = vld [vmem:[%s1 + $0xa30] sm:$0xff]
  %v410 = vld [vmem:[%s1 + $0xa38] sm:$0xff]
  %v411 = vld [vmem:[%s1 + $0xa40] sm:$0xff]
  %v412 = vld [vmem:[%s1 + $0xa48] sm:$0xff]
  %v413 = vld [vmem:[%s1 + $0xa50] sm:$0xff]
  %v414 = vld [vmem:[%s1 + $0xa58] sm:$0xff]
  %v415 = vld [vmem:[%s1 + $0xa60] sm:$0xff]
  %v416 = vld [vmem:[%s1 + $0xa68] sm:$0xff]
  %v417 = vld [vmem:[%s1 + $0xa70] sm:$0xff]
  %v418 = vld [vmem:[%s1 + $0xa78] sm:$0xff]
  %v419 = vld [vmem:[%s1 + $0xa80] sm:$0xff]
  %v420 = vld [vmem:[%s1 + $0xa88] sm:$0xff]
  %v421 = vld [vmem:[%s1 + $0xa90] sm:$0xff]
  %v422 = vld [vmem:[%s1 + $0xa98] sm:$0xff]
  %v423 = vld [vmem:[%s1 + $0xaa0] sm:$0xff]
  %v424 = vld [vmem:[%s1 + $0xaa8] sm:$0xff]
  %v425 = vld [vmem:[%s1 + $0xab0] sm:$0xff]
  %v426 = vld [vmem:[%s1 + $0xab8] sm:$0xff]
  %v427 = vld [vmem:[%s1 + $0xac0] sm:$0xff]
  %v428 = vld [vmem:[%s1 + $0xac8] sm:$0xff]
  %v429 = vld [vmem:[%s1 + $0xad0] sm:$0xff]
  %v430 = vld [vmem:[%s1 + $0xad8] sm:$0xff]
  %v431 = vld [vmem:[%s1 + $0xae0] sm:$0xff]
  %v432 = vld [vmem:[%s1 + $0xae8] sm:$0xff]
  %v433 = vld [vmem:[%s1 + $0xaf0] sm:$0xff]
  %v434 = vld [vmem:[%s1 + $0xaf8] sm:$0xff]
  %v435 = vld [vmem:[%s1 + $0xb00] sm:$0xff]
  %v436 = vld [vmem:[%s1 + $0xb08] sm:$0xff]
  %v437 = vld [vmem:[%s1 + $0xb10] sm:$0xff]
  %v438 = vld [vmem:[%s1 + $0xb18] sm:$0xff]
  %v439 = vld [vmem:[%s1 + $0xb20] sm:$0xff]
  %v440 = vld [vmem:[%s1 + $0xb28] sm:$0xff]
  %v441 = vld [vmem:[%s1 + $0xb30] sm:$0xff]
  %v442 = vld [vmem:[%s1 + $0xb38] sm:$0xff]
  %v443 = vld [vmem:[%s1 + $0xb40] sm:$0xff]
  %v444 = vld [vmem:[%s1 + $0xb48] sm:$0xff]
  %v445 = vld [vmem:[%s1 + $0xb50] sm:$0xff]
  %v446 = vld [vmem:[%s1 + $0xb58] sm:$0xff]
  %v447 = vld [vmem:[%s1 + $0xb60] sm:$0xff]
  %v448 = vld [vmem:[%s1 + $0xb68] sm:$0xff]
  %v449 = vld [vmem:[%s1 + $0xb70] sm:$0xff]
  %v450 = vld [vmem:[%s1 + $0xb78] sm:$0xff]
  %v451 = vld [vmem:[%s1 + $0xb80] sm:$0xff]
  %v452 = vld [vmem:[%s1 + $0xb88] sm:$0xff]
  %v453 = vld [vmem:[%s1 + $0xb90] sm:$0xff]
  %v454 = vld [vmem:[%s1 + $0xb98] sm:$0xff]
  %v455 = vld [vmem:[%s1 + $0xba0] sm:$0xff]
  %v456 = vld [vmem:[%s1 + $0xba8] sm:$0xff]
  %v457 = vld [vmem:[%s1 + $0xbb0] sm:$0xff]
  %v458 = vld [vmem:[%s1 + $0xbb8] sm:$0xff]
  %v459 = vld [vmem:[%s1 + $0xbc0] sm:$0xff]
  %v460 = vld [vmem:[%s1 + $0xbc8] sm:$0xff]
  %v461 = vld [vmem:[%s1 + $0xbd0] sm:$0xff]
  %v462 = vld [vmem:[%s1 + $0xbd8] sm:$0xff]
  %v463 = vld [vmem:[%s1 + $0xbe0] sm:$0xff]
  %v464 = vld [vmem:[%s1 + $0xbe8] sm:$0xff]
  %v465 = vld [vmem:[%s1 + $0xbf0] sm:$0xff]
  %v466 = vld [vmem:[%s1 + $0xbf8] sm:$0xff]
  %467 = vmatprep.subr.mxu0 0.0
  %468 = vmatpush1.msra.mxu0 %v98
  %469 = vmatprep.subr.mxu0 0.0
  %470 = vmatpush1.msra.mxu0 %v97
  %471 = vmatprep.subr.mxu0 0.0
  %472 = vmatpush1.msra.mxu0 %v96
  %473 = vmatprep.subr.mxu0 0.0
  %474 = vmatpush1.msra.mxu0 %v95
  %475 = vmatprep.subr.mxu0 0.0
  %476 = vmatpush1.msra.mxu0 %v94
  %477 = vmatprep.subr.mxu0 0.0
  %478 = vmatpush1.msra.mxu0 %v93
  %479 = vmatprep.subr.mxu0 0.0
  %480 = vmatpush1.msra.mxu0 %v92
  %481 = vmatprep.subr.mxu0 0.0
  %482 = vmatpush1.msra.mxu0 %v91
  %483 = vmatprep.subr.mxu0 0.0
  %484 = vmatpush1.msra.mxu0 %v90
  %485 = vmatprep.subr.mxu0 0.0
  %486 = vmatpush1.msra.mxu0 %v89
  %487 = vmatprep.subr.mxu0 0.0
  %488 = vmatpush1.msra.mxu0 %v88
  %489 = vmatprep.subr.mxu0 0.0
  %490 = vmatpush1.msra.mxu0 %v87
  %491 = vmatprep.subr.mxu0 0.0
  %492 = vmatpush1.msra.mxu0 %v86
  %493 = vmatprep.subr.mxu0 0.0
  %494 = vmatpush1.msra.mxu0 %v85
  %495 = vmatprep.subr.mxu0 0.0
  %496 = vmatpush1.msra.mxu0 %v84
  %497 = vmatprep.subr.mxu0 0.0
  %498 = vmatpush1.msra.mxu0 %v83
  %499 = vmatprep.subr.mxu0 0.0
  %500 = vmatpush2.msra.mxu0 %v114
  %501 = vmatprep.subr.mxu0 0.0
  %502 = vmatpush2.msra.mxu0 %v113
  %503 = vmatprep.subr.mxu0 0.0
  %504 = vmatpush2.msra.mxu0 %v112
  %505 = vmatprep.subr.mxu0 0.0
  %506 = vmatpush2.msra.mxu0 %v111
  %507 = vmatprep.subr.mxu0 0.0
  %508 = vmatpush2.msra.mxu0 %v110
  %509 = vmatprep.subr.mxu0 0.0
  %510 = vmatpush2.msra.mxu0 %v109
  %511 = vmatprep.subr.mxu0 0.0
  %512 = vmatpush2.msra.mxu0 %v108
  %513 = vmatprep.subr.mxu0 0.0
  %514 = vmatpush2.msra.mxu0 %v107
  %515 = vmatprep.subr.mxu0 0.0
  %516 = vmatpush2.msra.mxu0 %v106
  %517 = vmatprep.subr.mxu0 0.0
  %518 = vmatpush2.msra.mxu0 %v105
  %519 = vmatprep.subr.mxu0 0.0
  %520 = vmatpush2.msra.mxu0 %v104
  %521 = vmatprep.subr.mxu0 0.0
  %522 = vmatpush2.msra.mxu0 %v103
  %523 = vmatprep.subr.mxu0 0.0
  %524 = vmatpush2.msra.mxu0 %v102
  %525 = vmatprep.subr.mxu0 0.0
  %526 = vmatpush2.msra.mxu0 %v101
  %527 = vmatprep.subr.mxu0 0.0
  %528 = vmatpush2.msra.mxu0 %v100
  %529 = vmatprep.subr.mxu0 0.0
  %530 = vmatpush2.msra.mxu0 %v99
  %531 = vmatprep.mubr.f32.mxu0 %v60
  %532 = vmatmul.mubr.f32.gmra.mxu0 %v59
  %v533 = vpop.f32.mrf.mxu0
  %v534 = vadd.f32 0.0, %v533
  %v535 = vpop.f32.mrf.mxu0
  %536 = vdwg.mxu0
  %537 = vmatprep.subr.mxu0 0.0
  %538 = vmatpush1.msra.mxu0 %v130
  %539 = vmatprep.subr.mxu0 0.0
  %540 = vmatpush1.msra.mxu0 %v129
  %541 = vmatprep.subr.mxu0 0.0
  %542 = vmatpush1.msra.mxu0 %v128
  %543 = vmatprep.subr.mxu0 0.0
  %544 = vmatpush1.msra.mxu0 %v127
  %545 = vmatprep.subr.mxu0 0.0
  %546 = vmatpush1.msra.mxu0 %v126
  %547 = vmatprep.subr.mxu0 0.0
  %548 = vmatpush1.msra.mxu0 %v125
  %549 = vmatprep.subr.mxu0 0.0
  %550 = vmatpush1.msra.mxu0 %v124
  %551 = vmatprep.subr.mxu0 0.0
  %552 = vmatpush1.msra.mxu0 %v123
  %553 = vmatprep.subr.mxu0 0.0
  %554 = vmatpush1.msra.mxu0 %v122
  %555 = vmatprep.subr.mxu0 0.0
  %556 = vmatpush1.msra.mxu0 %v121
  %557 = vmatprep.subr.mxu0 0.0
  %558 = vmatpush1.msra.mxu0 %v120
  %559 = vmatprep.subr.mxu0 0.0
  %560 = vmatpush1.msra.mxu0 %v119
  %561 = vmatprep.subr.mxu0 0.0
  %562 = vmatpush1.msra.mxu0 %v118
  %563 = vmatprep.subr.mxu0 0.0
  %564 = vmatpush1.msra.mxu0 %v117
  %565 = vmatprep.subr.mxu0 0.0
  %566 = vmatpush1.msra.mxu0 %v116
  %567 = vmatprep.subr.mxu0 0.0
  %568 = vmatpush1.msra.mxu0 %v115
  %569 = vmatprep.subr.mxu0 0.0
  %570 = vmatpush2.msra.mxu0 %v146
  %571 = vmatprep.subr.mxu0 0.0
  %572 = vmatpush2.msra.mxu0 %v145
  %573 = vmatprep.subr.mxu0 0.0
  %574 = vmatpush2.msra.mxu0 %v144
  %575 = vmatprep.subr.mxu0 0.0
  %576 = vmatpush2.msra.mxu0 %v143
  %577 = vmatprep.subr.mxu0 0.0
  %578 = vmatpush2.msra.mxu0 %v142
  %579 = vmatprep.subr.mxu0 0.0
  %580 = vmatpush2.msra.mxu0 %v141
  %581 = vmatprep.subr.mxu0 0.0
  %582 = vmatpush2.msra.mxu0 %v140
  %583 = vmatprep.subr.mxu0 0.0
  %584 = vmatpush2.msra.mxu0 %v139
  %585 = vmatprep.subr.mxu0 0.0
  %586 = vmatpush2.msra.mxu0 %v138
  %587 = vmatprep.subr.mxu0 0.0
  %588 = vmatpush2.msra.mxu0 %v137
  %589 = vmatprep.subr.mxu0 0.0
  %590 = vmatpush2.msra.mxu0 %v136
  %591 = vmatprep.subr.mxu0 0.0
  %592 = vmatpush2.msra.mxu0 %v135
  %593 = vmatprep.subr.mxu0 0.0
  %594 = vmatpush2.msra.mxu0 %v134
  %595 = vmatprep.subr.mxu0 0.0
  %596 = vmatpush2.msra.mxu0 %v133
  %597 = vmatprep.subr.mxu0 0.0
  %598 = vmatpush2.msra.mxu0 %v132
  %599 = vmatprep.subr.mxu0 0.0
  %600 = vmatpush2.msra.mxu0 %v131
  %601 = vmatprep.mubr.f32.mxu0 %v62
  %602 = vmatmul.mubr.f32.gmra.mxu0 %v61
  %v603 = vpop.f32.mrf.mxu0
  %v604 = vadd.f32 %v534, %v603
  %v605 = vpop.f32.mrf.mxu0
  %606 = vdwg.mxu0
  %607 = vmatprep.subr.mxu0 0.0
  %608 = vmatpush1.msra.mxu0 %v162
  %609 = vmatprep.subr.mxu0 0.0
  %610 = vmatpush1.msra.mxu0 %v161
  %611 = vmatprep.subr.mxu0 0.0
  %612 = vmatpush1.msra.mxu0 %v160
  %613 = vmatprep.subr.mxu0 0.0
  %614 = vmatpush1.msra.mxu0 %v159
  %615 = vmatprep.subr.mxu0 0.0
  %616 = vmatpush1.msra.mxu0 %v158
  %617 = vmatprep.subr.mxu0 0.0
  %618 = vmatpush1.msra.mxu0 %v157
  %619 = vmatprep.subr.mxu0 0.0
  %620 = vmatpush1.msra.mxu0 %v156
  %621 = vmatprep.subr.mxu0 0.0
  %622 = vmatpush1.msra.mxu0 %v155
  %623 = vmatprep.subr.mxu0 0.0
  %624 = vmatpush1.msra.mxu0 %v154
  %625 = vmatprep.subr.mxu0 0.0
  %626 = vmatpush1.msra.mxu0 %v153
  %627 = vmatprep.subr.mxu0 0.0
  %628 = vmatpush1.msra.mxu0 %v152
  %629 = vmatprep.subr.mxu0 0.0
  %630 = vmatpush1.msra.mxu0 %v151
  %631 = vmatprep.subr.mxu0 0.0
  %632 = vmatpush1.msra.mxu0 %v150
  %633 = vmatprep.subr.mxu0 0.0
  %634 = vmatpush1.msra.mxu0 %v149
  %635 = vmatprep.subr.mxu0 0.0
  %636 = vmatpush1.msra.mxu0 %v148
  %637 = vmatprep.subr.mxu0 0.0
  %638 = vmatpush1.msra.mxu0 %v147
  %639 = vmatprep.subr.mxu0 0.0
  %640 = vmatpush2.msra.mxu0 %v178
  %641 = vmatprep.subr.mxu0 0.0
  %642 = vmatpush2.msra.mxu0 %v177
  %643 = vmatprep.subr.mxu0 0.0
  %644 = vmatpush2.msra.mxu0 %v176
  %645 = vmatprep.subr.mxu0 0.0
  %646 = vmatpush2.msra.mxu0 %v175
  %647 = vmatprep.subr.mxu0 0.0
  %648 = vmatpush2.msra.mxu0 %v174
  %649 = vmatprep.subr.mxu0 0.0
  %650 = vmatpush2.msra.mxu0 %v173
  %651 = vmatprep.subr.mxu0 0.0
  %652 = vmatpush2.msra.mxu0 %v172
  %653 = vmatprep.subr.mxu0 0.0
  %654 = vmatpush2.msra.mxu0 %v171
  %655 = vmatprep.subr.mxu0 0.0
  %656 = vmatpush2.msra.mxu0 %v170
  %657 = vmatprep.subr.mxu0 0.0
  %658 = vmatpush2.msra.mxu0 %v169
  %659 = vmatprep.subr.mxu0 0.0
  %660 = vmatpush2.msra.mxu0 %v168
  %661 = vmatprep.subr.mxu0 0.0
  %662 = vmatpush2.msra.mxu0 %v167
  %663 = vmatprep.subr.mxu0 0.0
  %664 = vmatpush2.msra.mxu0 %v166
  %665 = vmatprep.subr.mxu0 0.0
  %666 = vmatpush2.msra.mxu0 %v165
  %667 = vmatprep.subr.mxu0 0.0
  %668 = vmatpush2.msra.mxu0 %v164
  %669 = vmatprep.subr.mxu0 0.0
  %670 = vmatpush2.msra.mxu0 %v163
  %671 = vmatprep.mubr.f32.mxu0 %v64
  %672 = vmatmul.mubr.f32.gmra.mxu0 %v63
  %v673 = vpop.f32.mrf.mxu0
  %v674 = vadd.f32 %v604, %v673
  %v675 = vpop.f32.mrf.mxu0
  %676 = vdwg.mxu0
  %677 = vmatprep.subr.mxu0 0.0
  %678 = vmatpush1.msra.mxu0 %v194
  %679 = vmatprep.subr.mxu0 0.0
  %680 = vmatpush1.msra.mxu0 %v193
  %681 = vmatprep.subr.mxu0 0.0
  %682 = vmatpush1.msra.mxu0 %v192
  %683 = vmatprep.subr.mxu0 0.0
  %684 = vmatpush1.msra.mxu0 %v191
  %685 = vmatprep.subr.mxu0 0.0
  %686 = vmatpush1.msra.mxu0 %v190
  %687 = vmatprep.subr.mxu0 0.0
  %688 = vmatpush1.msra.mxu0 %v189
  %689 = vmatprep.subr.mxu0 0.0
  %690 = vmatpush1.msra.mxu0 %v188
  %691 = vmatprep.subr.mxu0 0.0
  %692 = vmatpush1.msra.mxu0 %v187
  %693 = vmatprep.subr.mxu0 0.0
  %694 = vmatpush1.msra.mxu0 %v186
  %695 = vmatprep.subr.mxu0 0.0
  %696 = vmatpush1.msra.mxu0 %v185
  %697 = vmatprep.subr.mxu0 0.0
  %698 = vmatpush1.msra.mxu0 %v184
  %699 = vmatprep.subr.mxu0 0.0
  %700 = vmatpush1.msra.mxu0 %v183
  %701 = vmatprep.subr.mxu0 0.0
  %702 = vmatpush1.msra.mxu0 %v182
  %703 = vmatprep.subr.mxu0 0.0
  %704 = vmatpush1.msra.mxu0 %v181
  %705 = vmatprep.subr.mxu0 0.0
  %706 = vmatpush1.msra.mxu0 %v180
  %707 = vmatprep.subr.mxu0 0.0
  %708 = vmatpush1.msra.mxu0 %v179
  %709 = vmatprep.subr.mxu0 0.0
  %710 = vmatpush2.msra.mxu0 %v210
  %711 = vmatprep.subr.mxu0 0.0
  %712 = vmatpush2.msra.mxu0 %v209
  %713 = vmatprep.subr.mxu0 0.0
  %714 = vmatpush2.msra.mxu0 %v208
  %715 = vmatprep.subr.mxu0 0.0
  %716 = vmatpush2.msra.mxu0 %v207
  %717 = vmatprep.subr.mxu0 0.0
  %718 = vmatpush2.msra.mxu0 %v206
  %719 = vmatprep.subr.mxu0 0.0
  %720 = vmatpush2.msra.mxu0 %v205
  %721 = vmatprep.subr.mxu0 0.0
  %722 = vmatpush2.msra.mxu0 %v204
  %723 = vmatprep.subr.mxu0 0.0
  %724 = vmatpush2.msra.mxu0 %v203
  %725 = vmatprep.subr.mxu0 0.0
  %726 = vmatpush2.msra.mxu0 %v202
  %727 = vmatprep.subr.mxu0 0.0
  %728 = vmatpush2.msra.mxu0 %v201
  %729 = vmatprep.subr.mxu0 0.0
  %730 = vmatpush2.msra.mxu0 %v200
  %731 = vmatprep.subr.mxu0 0.0
  %732 = vmatpush2.msra.mxu0 %v199
  %733 = vmatprep.subr.mxu0 0.0
  %734 = vmatpush2.msra.mxu0 %v198
  %735 = vmatprep.subr.mxu0 0.0
  %736 = vmatpush2.msra.mxu0 %v197
  %737 = vmatprep.subr.mxu0 0.0
  %738 = vmatpush2.msra.mxu0 %v196
  %739 = vmatprep.subr.mxu0 0.0
  %740 = vmatpush2.msra.mxu0 %v195
  %741 = vmatprep.mubr.f32.mxu0 %v66
  %742 = vmatmul.mubr.f32.gmra.mxu0 %v65
  %v743 = vpop.f32.mrf.mxu0
  %v744 = vadd.f32 %v674, %v743
  %v745 = vpop.f32.mrf.mxu0
  %746 = vdwg.mxu0
  %747 = vmatprep.subr.mxu0 0.0
  %748 = vmatpush1.msra.mxu0 %v226
  %749 = vmatprep.subr.mxu0 0.0
  %750 = vmatpush1.msra.mxu0 %v225
  %751 = vmatprep.subr.mxu0 0.0
  %752 = vmatpush1.msra.mxu0 %v224
  %753 = vmatprep.subr.mxu0 0.0
  %754 = vmatpush1.msra.mxu0 %v223
  %755 = vmatprep.subr.mxu0 0.0
  %756 = vmatpush1.msra.mxu0 %v222
  %757 = vmatprep.subr.mxu0 0.0
  %758 = vmatpush1.msra.mxu0 %v221
  %759 = vmatprep.subr.mxu0 0.0
  %760 = vmatpush1.msra.mxu0 %v220
  %761 = vmatprep.subr.mxu0 0.0
  %762 = vmatpush1.msra.mxu0 %v219
  %763 = vmatprep.subr.mxu0 0.0
  %764 = vmatpush1.msra.mxu0 %v218
  %765 = vmatprep.subr.mxu0 0.0
  %766 = vmatpush1.msra.mxu0 %v217
  %767 = vmatprep.subr.mxu0 0.0
  %768 = vmatpush1.msra.mxu0 %v216
  %769 = vmatprep.subr.mxu0 0.0
  %770 = vmatpush1.msra.mxu0 %v215
  %771 = vmatprep.subr.mxu0 0.0
  %772 = vmatpush1.msra.mxu0 %v214
  %773 = vmatprep.subr.mxu0 0.0
  %774 = vmatpush1.msra.mxu0 %v213
  %775 = vmatprep.subr.mxu0 0.0
  %776 = vmatpush1.msra.mxu0 %v212
  %777 = vmatprep.subr.mxu0 0.0
  %778 = vmatpush1.msra.mxu0 %v211
  %779 = vmatprep.subr.mxu0 0.0
  %780 = vmatpush2.msra.mxu0 %v242
  %781 = vmatprep.subr.mxu0 0.0
  %782 = vmatpush2.msra.mxu0 %v241
  %783 = vmatprep.subr.mxu0 0.0
  %784 = vmatpush2.msra.mxu0 %v240
  %785 = vmatprep.subr.mxu0 0.0
  %786 = vmatpush2.msra.mxu0 %v239
  %787 = vmatprep.subr.mxu0 0.0
  %788 = vmatpush2.msra.mxu0 %v238
  %789 = vmatprep.subr.mxu0 0.0
  %790 = vmatpush2.msra.mxu0 %v237
  %791 = vmatprep.subr.mxu0 0.0
  %792 = vmatpush2.msra.mxu0 %v236
  %793 = vmatprep.subr.mxu0 0.0
  %794 = vmatpush2.msra.mxu0 %v235
  %795 = vmatprep.subr.mxu0 0.0
  %796 = vmatpush2.msra.mxu0 %v234
  %797 = vmatprep.subr.mxu0 0.0
  %798 = vmatpush2.msra.mxu0 %v233
  %799 = vmatprep.subr.mxu0 0.0
  %800 = vmatpush2.msra.mxu0 %v232
  %801 = vmatprep.subr.mxu0 0.0
  %802 = vmatpush2.msra.mxu0 %v231
  %803 = vmatprep.subr.mxu0 0.0
  %804 = vmatpush2.msra.mxu0 %v230
  %805 = vmatprep.subr.mxu0 0.0
  %806 = vmatpush2.msra.mxu0 %v229
  %807 = vmatprep.subr.mxu0 0.0
  %808 = vmatpush2.msra.mxu0 %v228
  %809 = vmatprep.subr.mxu0 0.0
  %810 = vmatpush2.msra.mxu0 %v227
  %811 = vmatprep.mubr.f32.mxu0 %v68
  %812 = vmatmul.mubr.f32.gmra.mxu0 %v67
  %v813 = vpop.f32.mrf.mxu0
  %v814 = vadd.f32 %v744, %v813
  %v815 = vpop.f32.mrf.mxu0
  %816 = vdwg.mxu0
  %817 = vmatprep.subr.mxu0 0.0
  %818 = vmatpush1.msra.mxu0 %v258
  %819 = vmatprep.subr.mxu0 0.0
  %820 = vmatpush1.msra.mxu0 %v257
  %821 = vmatprep.subr.mxu0 0.0
  %822 = vmatpush1.msra.mxu0 %v256
  %823 = vmatprep.subr.mxu0 0.0
  %824 = vmatpush1.msra.mxu0 %v255
  %825 = vmatprep.subr.mxu0 0.0
  %826 = vmatpush1.msra.mxu0 %v254
  %827 = vmatprep.subr.mxu0 0.0
  %828 = vmatpush1.msra.mxu0 %v253
  %829 = vmatprep.subr.mxu0 0.0
  %830 = vmatpush1.msra.mxu0 %v252
  %831 = vmatprep.subr.mxu0 0.0
  %832 = vmatpush1.msra.mxu0 %v251
  %833 = vmatprep.subr.mxu0 0.0
  %834 = vmatpush1.msra.mxu0 %v250
  %835 = vmatprep.subr.mxu0 0.0
  %836 = vmatpush1.msra.mxu0 %v249
  %837 = vmatprep.subr.mxu0 0.0
  %838 = vmatpush1.msra.mxu0 %v248
  %839 = vmatprep.subr.mxu0 0.0
  %840 = vmatpush1.msra.mxu0 %v247
  %841 = vmatprep.subr.mxu0 0.0
  %842 = vmatpush1.msra.mxu0 %v246
  %843 = vmatprep.subr.mxu0 0.0
  %844 = vmatpush1.msra.mxu0 %v245
  %845 = vmatprep.subr.mxu0 0.0
  %846 = vmatpush1.msra.mxu0 %v244
  %847 = vmatprep.subr.mxu0 0.0
  %848 = vmatpush1.msra.mxu0 %v243
  %849 = vmatprep.subr.mxu0 0.0
  %850 = vmatpush2.msra.mxu0 %v274
  %851 = vmatprep.subr.mxu0 0.0
  %852 = vmatpush2.msra.mxu0 %v273
  %853 = vmatprep.subr.mxu0 0.0
  %854 = vmatpush2.msra.mxu0 %v272
  %855 = vmatprep.subr.mxu0 0.0
  %856 = vmatpush2.msra.mxu0 %v271
  %857 = vmatprep.subr.mxu0 0.0
  %858 = vmatpush2.msra.mxu0 %v270
  %859 = vmatprep.subr.mxu0 0.0
  %860 = vmatpush2.msra.mxu0 %v269
  %861 = vmatprep.subr.mxu0 0.0
  %862 = vmatpush2.msra.mxu0 %v268
  %863 = vmatprep.subr.mxu0 0.0
  %864 = vmatpush2.msra.mxu0 %v267
  %865 = vmatprep.subr.mxu0 0.0
  %866 = vmatpush2.msra.mxu0 %v266
  %867 = vmatprep.subr.mxu0 0.0
  %868 = vmatpush2.msra.mxu0 %v265
  %869 = vmatprep.subr.mxu0 0.0
  %870 = vmatpush2.msra.mxu0 %v264
  %871 = vmatprep.subr.mxu0 0.0
  %872 = vmatpush2.msra.mxu0 %v263
  %873 = vmatprep.subr.mxu0 0.0
  %874 = vmatpush2.msra.mxu0 %v262
  %875 = vmatprep.subr.mxu0 0.0
  %876 = vmatpush2.msra.mxu0 %v261
  %877 = vmatprep.subr.mxu0 0.0
  %878 = vmatpush2.msra.mxu0 %v260
  %879 = vmatprep.subr.mxu0 0.0
  %880 = vmatpush2.msra.mxu0 %v259
  %881 = vmatprep.mubr.f32.mxu0 %v70
  %882 = vmatmul.mubr.f32.gmra.mxu0 %v69
  %v883 = vpop.f32.mrf.mxu0
  %v884 = vadd.f32 %v814, %v883
  %v885 = vpop.f32.mrf.mxu0
  %886 = vdwg.mxu0
  %887 = vmatprep.subr.mxu0 0.0
  %888 = vmatpush1.msra.mxu0 %v290
  %889 = vmatprep.subr.mxu0 0.0
  %890 = vmatpush1.msra.mxu0 %v289
  %891 = vmatprep.subr.mxu0 0.0
  %892 = vmatpush1.msra.mxu0 %v288
  %893 = vmatprep.subr.mxu0 0.0
  %894 = vmatpush1.msra.mxu0 %v287
  %895 = vmatprep.subr.mxu0 0.0
  %896 = vmatpush1.msra.mxu0 %v286
  %897 = vmatprep.subr.mxu0 0.0
  %898 = vmatpush1.msra.mxu0 %v285
  %899 = vmatprep.subr.mxu0 0.0
  %900 = vmatpush1.msra.mxu0 %v284
  %901 = vmatprep.subr.mxu0 0.0
  %902 = vmatpush1.msra.mxu0 %v283
  %903 = vmatprep.subr.mxu0 0.0
  %904 = vmatpush1.msra.mxu0 %v282
  %905 = vmatprep.subr.mxu0 0.0
  %906 = vmatpush1.msra.mxu0 %v281
  %907 = vmatprep.subr.mxu0 0.0
  %908 = vmatpush1.msra.mxu0 %v280
  %909 = vmatprep.subr.mxu0 0.0
  %910 = vmatpush1.msra.mxu0 %v279
  %911 = vmatprep.subr.mxu0 0.0
  %912 = vmatpush1.msra.mxu0 %v278
  %913 = vmatprep.subr.mxu0 0.0
  %914 = vmatpush1.msra.mxu0 %v277
  %915 = vmatprep.subr.mxu0 0.0
  %916 = vmatpush1.msra.mxu0 %v276
  %917 = vmatprep.subr.mxu0 0.0
  %918 = vmatpush1.msra.mxu0 %v275
  %919 = vmatprep.subr.mxu0 0.0
  %920 = vmatpush2.msra.mxu0 %v306
  %921 = vmatprep.subr.mxu0 0.0
  %922 = vmatpush2.msra.mxu0 %v305
  %923 = vmatprep.subr.mxu0 0.0
  %924 = vmatpush2.msra.mxu0 %v304
  %925 = vmatprep.subr.mxu0 0.0
  %926 = vmatpush2.msra.mxu0 %v303
  %927 = vmatprep.subr.mxu0 0.0
  %928 = vmatpush2.msra.mxu0 %v302
  %929 = vmatprep.subr.mxu0 0.0
  %930 = vmatpush2.msra.mxu0 %v301
  %931 = vmatprep.subr.mxu0 0.0
  %932 = vmatpush2.msra.mxu0 %v300
  %933 = vmatprep.subr.mxu0 0.0
  %934 = vmatpush2.msra.mxu0 %v299
  %935 = vmatprep.subr.mxu0 0.0
  %936 = vmatpush2.msra.mxu0 %v298
  %937 = vmatprep.subr.mxu0 0.0
  %938 = vmatpush2.msra.mxu0 %v297
  %939 = vmatprep.subr.mxu0 0.0
  %940 = vmatpush2.msra.mxu0 %v296
  %941 = vmatprep.subr.mxu0 0.0
  %942 = vmatpush2.msra.mxu0 %v295
  %943 = vmatprep.subr.mxu0 0.0
  %944 = vmatpush2.msra.mxu0 %v294
  %945 = vmatprep.subr.mxu0 0.0
  %946 = vmatpush2.msra.mxu0 %v293
  %947 = vmatprep.subr.mxu0 0.0
  %948 = vmatpush2.msra.mxu0 %v292
  %949 = vmatprep.subr.mxu0 0.0
  %950 = vmatpush2.msra.mxu0 %v291
  %951 = vmatprep.mubr.f32.mxu0 %v72
  %952 = vmatmul.mubr.f32.gmra.mxu0 %v71
  %v953 = vpop.f32.mrf.mxu0
  %v954 = vadd.f32 %v884, %v953
  %v955 = vpop.f32.mrf.mxu0
  %956 = vdwg.mxu0
  %957 = vmatprep.subr.mxu0 0.0
  %958 = vmatpush1.msra.mxu0 %v322
  %959 = vmatprep.subr.mxu0 0.0
  %960 = vmatpush1.msra.mxu0 %v321
  %961 = vmatprep.subr.mxu0 0.0
  %962 = vmatpush1.msra.mxu0 %v320
  %963 = vmatprep.subr.mxu0 0.0
  %964 = vmatpush1.msra.mxu0 %v319
  %965 = vmatprep.subr.mxu0 0.0
  %966 = vmatpush1.msra.mxu0 %v318
  %967 = vmatprep.subr.mxu0 0.0
  %968 = vmatpush1.msra.mxu0 %v317
  %969 = vmatprep.subr.mxu0 0.0
  %970 = vmatpush1.msra.mxu0 %v316
  %971 = vmatprep.subr.mxu0 0.0
  %972 = vmatpush1.msra.mxu0 %v315
  %973 = vmatprep.subr.mxu0 0.0
  %974 = vmatpush1.msra.mxu0 %v314
  %975 = vmatprep.subr.mxu0 0.0
  %976 = vmatpush1.msra.mxu0 %v313
  %977 = vmatprep.subr.mxu0 0.0
  %978 = vmatpush1.msra.mxu0 %v312
  %979 = vmatprep.subr.mxu0 0.0
  %980 = vmatpush1.msra.mxu0 %v311
  %981 = vmatprep.subr.mxu0 0.0
  %982 = vmatpush1.msra.mxu0 %v310
  %983 = vmatprep.subr.mxu0 0.0
  %984 = vmatpush1.msra.mxu0 %v309
  %985 = vmatprep.subr.mxu0 0.0
  %986 = vmatpush1.msra.mxu0 %v308
  %987 = vmatprep.subr.mxu0 0.0
  %988 = vmatpush1.msra.mxu0 %v307
  %989 = vmatprep.subr.mxu0 0.0
  %990 = vmatpush2.msra.mxu0 %v338
  %991 = vmatprep.subr.mxu0 0.0
  %992 = vmatpush2.msra.mxu0 %v337
  %993 = vmatprep.subr.mxu0 0.0
  %994 = vmatpush2.msra.mxu0 %v336
  %995 = vmatprep.subr.mxu0 0.0
  %996 = vmatpush2.msra.mxu0 %v335
  %997 = vmatprep.subr.mxu0 0.0
  %998 = vmatpush2.msra.mxu0 %v334
  %999 = vmatprep.subr.mxu0 0.0
  %1000 = vmatpush2.msra.mxu0 %v333
  %1001 = vmatprep.subr.mxu0 0.0
  %1002 = vmatpush2.msra.mxu0 %v332
  %1003 = vmatprep.subr.mxu0 0.0
  %1004 = vmatpush2.msra.mxu0 %v331
  %1005 = vmatprep.subr.mxu0 0.0
  %1006 = vmatpush2.msra.mxu0 %v330
  %1007 = vmatprep.subr.mxu0 0.0
  %1008 = vmatpush2.msra.mxu0 %v329
  %1009 = vmatprep.subr.mxu0 0.0
  %1010 = vmatpush2.msra.mxu0 %v328
  %1011 = vmatprep.subr.mxu0 0.0
  %1012 = vmatpush2.msra.mxu0 %v327
  %1013 = vmatprep.subr.mxu0 0.0
  %1014 = vmatpush2.msra.mxu0 %v326
  %1015 = vmatprep.subr.mxu0 0.0
  %1016 = vmatpush2.msra.mxu0 %v325
  %1017 = vmatprep.subr.mxu0 0.0
  %1018 = vmatpush2.msra.mxu0 %v324
  %1019 = vmatprep.subr.mxu0 0.0
  %1020 = vmatpush2.msra.mxu0 %v323
  %1021 = vmatprep.mubr.f32.mxu0 %v74
  %1022 = vmatmul.mubr.f32.gmra.mxu0 %v73
  %v1023 = vpop.f32.mrf.mxu0
  %v1024 = vadd.f32 %v954, %v1023
  %v1025 = vpop.f32.mrf.mxu0
  %1026 = vdwg.mxu0
  %1027 = vmatprep.subr.mxu0 0.0
  %1028 = vmatpush1.msra.mxu0 %v354
  %1029 = vmatprep.subr.mxu0 0.0
  %1030 = vmatpush1.msra.mxu0 %v353
  %1031 = vmatprep.subr.mxu0 0.0
  %1032 = vmatpush1.msra.mxu0 %v352
  %1033 = vmatprep.subr.mxu0 0.0
  %1034 = vmatpush1.msra.mxu0 %v351
  %1035 = vmatprep.subr.mxu0 0.0
  %1036 = vmatpush1.msra.mxu0 %v350
  %1037 = vmatprep.subr.mxu0 0.0
  %1038 = vmatpush1.msra.mxu0 %v349
  %1039 = vmatprep.subr.mxu0 0.0
  %1040 = vmatpush1.msra.mxu0 %v348
  %1041 = vmatprep.subr.mxu0 0.0
  %1042 = vmatpush1.msra.mxu0 %v347
  %1043 = vmatprep.subr.mxu0 0.0
  %1044 = vmatpush1.msra.mxu0 %v346
  %1045 = vmatprep.subr.mxu0 0.0
  %1046 = vmatpush1.msra.mxu0 %v345
  %1047 = vmatprep.subr.mxu0 0.0
  %1048 = vmatpush1.msra.mxu0 %v344
  %1049 = vmatprep.subr.mxu0 0.0
  %1050 = vmatpush1.msra.mxu0 %v343
  %1051 = vmatprep.subr.mxu0 0.0
  %1052 = vmatpush1.msra.mxu0 %v342
  %1053 = vmatprep.subr.mxu0 0.0
  %1054 = vmatpush1.msra.mxu0 %v341
  %1055 = vmatprep.subr.mxu0 0.0
  %1056 = vmatpush1.msra.mxu0 %v340
  %1057 = vmatprep.subr.mxu0 0.0
  %1058 = vmatpush1.msra.mxu0 %v339
  %1059 = vmatprep.subr.mxu0 0.0
  %1060 = vmatpush2.msra.mxu0 %v370
  %1061 = vmatprep.subr.mxu0 0.0
  %1062 = vmatpush2.msra.mxu0 %v369
  %1063 = vmatprep.subr.mxu0 0.0
  %1064 = vmatpush2.msra.mxu0 %v368
  %1065 = vmatprep.subr.mxu0 0.0
  %1066 = vmatpush2.msra.mxu0 %v367
  %1067 = vmatprep.subr.mxu0 0.0
  %1068 = vmatpush2.msra.mxu0 %v366
  %1069 = vmatprep.subr.mxu0 0.0
  %1070 = vmatpush2.msra.mxu0 %v365
  %1071 = vmatprep.subr.mxu0 0.0
  %1072 = vmatpush2.msra.mxu0 %v364
  %1073 = vmatprep.subr.mxu0 0.0
  %1074 = vmatpush2.msra.mxu0 %v363
  %1075 = vmatprep.subr.mxu0 0.0
  %1076 = vmatpush2.msra.mxu0 %v362
  %1077 = vmatprep.subr.mxu0 0.0
  %1078 = vmatpush2.msra.mxu0 %v361
  %1079 = vmatprep.subr.mxu0 0.0
  %1080 = vmatpush2.msra.mxu0 %v360
  %1081 = vmatprep.subr.mxu0 0.0
  %1082 = vmatpush2.msra.mxu0 %v359
  %1083 = vmatprep.subr.mxu0 0.0
  %1084 = vmatpush2.msra.mxu0 %v358
  %1085 = vmatprep.subr.mxu0 0.0
  %1086 = vmatpush2.msra.mxu0 %v357
  %1087 = vmatprep.subr.mxu0 0.0
  %1088 = vmatpush2.msra.mxu0 %v356
  %1089 = vmatprep.subr.mxu0 0.0
  %1090 = vmatpush2.msra.mxu0 %v355
  %1091 = vmatprep.mubr.f32.mxu0 %v76
  %1092 = vmatmul.mubr.f32.gmra.mxu0 %v75
  %v1093 = vpop.f32.mrf.mxu0
  %v1094 = vadd.f32 %v1024, %v1093
  %v1095 = vpop.f32.mrf.mxu0
  %1096 = vdwg.mxu0
  %1097 = vmatprep.subr.mxu0 0.0
  %1098 = vmatpush1.msra.mxu0 %v386
  %1099 = vmatprep.subr.mxu0 0.0
  %1100 = vmatpush1.msra.mxu0 %v385
  %1101 = vmatprep.subr.mxu0 0.0
  %1102 = vmatpush1.msra.mxu0 %v384
  %1103 = vmatprep.subr.mxu0 0.0
  %1104 = vmatpush1.msra.mxu0 %v383
  %1105 = vmatprep.subr.mxu0 0.0
  %1106 = vmatpush1.msra.mxu0 %v382
  %1107 = vmatprep.subr.mxu0 0.0
  %1108 = vmatpush1.msra.mxu0 %v381
  %1109 = vmatprep.subr.mxu0 0.0
  %1110 = vmatpush1.msra.mxu0 %v380
  %1111 = vmatprep.subr.mxu0 0.0
  %1112 = vmatpush1.msra.mxu0 %v379
  %1113 = vmatprep.subr.mxu0 0.0
  %1114 = vmatpush1.msra.mxu0 %v378
  %1115 = vmatprep.subr.mxu0 0.0
  %1116 = vmatpush1.msra.mxu0 %v377
  %1117 = vmatprep.subr.mxu0 0.0
  %1118 = vmatpush1.msra.mxu0 %v376
  %1119 = vmatprep.subr.mxu0 0.0
  %1120 = vmatpush1.msra.mxu0 %v375
  %1121 = vmatprep.subr.mxu0 0.0
  %1122 = vmatpush1.msra.mxu0 %v374
  %1123 = vmatprep.subr.mxu0 0.0
  %1124 = vmatpush1.msra.mxu0 %v373
  %1125 = vmatprep.subr.mxu0 0.0
  %1126 = vmatpush1.msra.mxu0 %v372
  %1127 = vmatprep.subr.mxu0 0.0
  %1128 = vmatpush1.msra.mxu0 %v371
  %1129 = vmatprep.subr.mxu0 0.0
  %1130 = vmatpush2.msra.mxu0 %v402
  %1131 = vmatprep.subr.mxu0 0.0
  %1132 = vmatpush2.msra.mxu0 %v401
  %1133 = vmatprep.subr.mxu0 0.0
  %1134 = vmatpush2.msra.mxu0 %v400
  %1135 = vmatprep.subr.mxu0 0.0
  %1136 = vmatpush2.msra.mxu0 %v399
  %1137 = vmatprep.subr.mxu0 0.0
  %1138 = vmatpush2.msra.mxu0 %v398
  %1139 = vmatprep.subr.mxu0 0.0
  %1140 = vmatpush2.msra.mxu0 %v397
  %1141 = vmatprep.subr.mxu0 0.0
  %1142 = vmatpush2.msra.mxu0 %v396
  %1143 = vmatprep.subr.mxu0 0.0
  %1144 = vmatpush2.msra.mxu0 %v395
  %1145 = vmatprep.subr.mxu0 0.0
  %1146 = vmatpush2.msra.mxu0 %v394
  %1147 = vmatprep.subr.mxu0 0.0
  %1148 = vmatpush2.msra.mxu0 %v393
  %1149 = vmatprep.subr.mxu0 0.0
  %1150 = vmatpush2.msra.mxu0 %v392
  %1151 = vmatprep.subr.mxu0 0.0
  %1152 = vmatpush2.msra.mxu0 %v391
  %1153 = vmatprep.subr.mxu0 0.0
  %1154 = vmatpush2.msra.mxu0 %v390
  %1155 = vmatprep.subr.mxu0 0.0
  %1156 = vmatpush2.msra.mxu0 %v389
  %1157 = vmatprep.subr.mxu0 0.0
  %1158 = vmatpush2.msra.mxu0 %v388
  %1159 = vmatprep.subr.mxu0 0.0
  %1160 = vmatpush2.msra.mxu0 %v387
  %1161 = vmatprep.mubr.f32.mxu0 %v78
  %1162 = vmatmul.mubr.f32.gmra.mxu0 %v77
  %v1163 = vpop.f32.mrf.mxu0
  %v1164 = vadd.f32 %v1094, %v1163
  %v1165 = vpop.f32.mrf.mxu0
  %1166 = vdwg.mxu0
  %1167 = vmatprep.subr.mxu0 0.0
  %1168 = vmatpush1.msra.mxu0 %v418
  %1169 = vmatprep.subr.mxu0 0.0
  %1170 = vmatpush1.msra.mxu0 %v417
  %1171 = vmatprep.subr.mxu0 0.0
  %1172 = vmatpush1.msra.mxu0 %v416
  %1173 = vmatprep.subr.mxu0 0.0
  %1174 = vmatpush1.msra.mxu0 %v415
  %1175 = vmatprep.subr.mxu0 0.0
  %1176 = vmatpush1.msra.mxu0 %v414
  %1177 = vmatprep.subr.mxu0 0.0
  %1178 = vmatpush1.msra.mxu0 %v413
  %1179 = vmatprep.subr.mxu0 0.0
  %1180 = vmatpush1.msra.mxu0 %v412
  %1181 = vmatprep.subr.mxu0 0.0
  %1182 = vmatpush1.msra.mxu0 %v411
  %1183 = vmatprep.subr.mxu0 0.0
  %1184 = vmatpush1.msra.mxu0 %v410
  %1185 = vmatprep.subr.mxu0 0.0
  %1186 = vmatpush1.msra.mxu0 %v409
  %1187 = vmatprep.subr.mxu0 0.0
  %1188 = vmatpush1.msra.mxu0 %v408
  %1189 = vmatprep.subr.mxu0 0.0
  %1190 = vmatpush1.msra.mxu0 %v407
  %1191 = vmatprep.subr.mxu0 0.0
  %1192 = vmatpush1.msra.mxu0 %v406
  %1193 = vmatprep.subr.mxu0 0.0
  %1194 = vmatpush1.msra.mxu0 %v405
  %1195 = vmatprep.subr.mxu0 0.0
  %1196 = vmatpush1.msra.mxu0 %v404
  %1197 = vmatprep.subr.mxu0 0.0
  %1198 = vmatpush1.msra.mxu0 %v403
  %1199 = vmatprep.subr.mxu0 0.0
  %1200 = vmatpush2.msra.mxu0 %v434
  %1201 = vmatprep.subr.mxu0 0.0
  %1202 = vmatpush2.msra.mxu0 %v433
  %1203 = vmatprep.subr.mxu0 0.0
  %1204 = vmatpush2.msra.mxu0 %v432
  %1205 = vmatprep.subr.mxu0 0.0
  %1206 = vmatpush2.msra.mxu0 %v431
  %1207 = vmatprep.subr.mxu0 0.0
  %1208 = vmatpush2.msra.mxu0 %v430
  %1209 = vmatprep.subr.mxu0 0.0
  %1210 = vmatpush2.msra.mxu0 %v429
  %1211 = vmatprep.subr.mxu0 0.0
  %1212 = vmatpush2.msra.mxu0 %v428
  %1213 = vmatprep.subr.mxu0 0.0
  %1214 = vmatpush2.msra.mxu0 %v427
  %1215 = vmatprep.subr.mxu0 0.0
  %1216 = vmatpush2.msra.mxu0 %v426
  %1217 = vmatprep.subr.mxu0 0.0
  %1218 = vmatpush2.msra.mxu0 %v425
  %1219 = vmatprep.subr.mxu0 0.0
  %1220 = vmatpush2.msra.mxu0 %v424
  %1221 = vmatprep.subr.mxu0 0.0
  %1222 = vmatpush2.msra.mxu0 %v423
  %1223 = vmatprep.subr.mxu0 0.0
  %1224 = vmatpush2.msra.mxu0 %v422
  %1225 = vmatprep.subr.mxu0 0.0
  %1226 = vmatpush2.msra.mxu0 %v421
  %1227 = vmatprep.subr.mxu0 0.0
  %1228 = vmatpush2.msra.mxu0 %v420
  %1229 = vmatprep.subr.mxu0 0.0
  %1230 = vmatpush2.msra.mxu0 %v419
  %1231 = vmatprep.mubr.f32.mxu0 %v80
  %1232 = vmatmul.mubr.f32.gmra.mxu0 %v79
  %v1233 = vpop.f32.mrf.mxu0
  %v1234 = vadd.f32 %v1164, %v1233
  %v1235 = vpop.f32.mrf.mxu0
  %1236 = vdwg.mxu0
  %1237 = vmatprep.subr.mxu0 0.0
  %1238 = vmatpush1.msra.mxu0 %v450
  %1239 = vmatprep.subr.mxu0 0.0
  %1240 = vmatpush1.msra.mxu0 %v449
  %1241 = vmatprep.subr.mxu0 0.0
  %1242 = vmatpush1.msra.mxu0 %v448
  %1243 = vmatprep.subr.mxu0 0.0
  %1244 = vmatpush1.msra.mxu0 %v447
  %1245 = vmatprep.subr.mxu0 0.0
  %1246 = vmatpush1.msra.mxu0 %v446
  %1247 = vmatprep.subr.mxu0 0.0
  %1248 = vmatpush1.msra.mxu0 %v445
  %1249 = vmatprep.subr.mxu0 0.0
  %1250 = vmatpush1.msra.mxu0 %v444
  %1251 = vmatprep.subr.mxu0 0.0
  %1252 = vmatpush1.msra.mxu0 %v443
  %1253 = vmatprep.subr.mxu0 0.0
  %1254 = vmatpush1.msra.mxu0 %v442
  %1255 = vmatprep.subr.mxu0 0.0
  %1256 = vmatpush1.msra.mxu0 %v441
  %1257 = vmatprep.subr.mxu0 0.0
  %1258 = vmatpush1.msra.mxu0 %v440
  %1259 = vmatprep.subr.mxu0 0.0
  %1260 = vmatpush1.msra.mxu0 %v439
  %1261 = vmatprep.subr.mxu0 0.0
  %1262 = vmatpush1.msra.mxu0 %v438
  %1263 = vmatprep.subr.mxu0 0.0
  %1264 = vmatpush1.msra.mxu0 %v437
  %1265 = vmatprep.subr.mxu0 0.0
  %1266 = vmatpush1.msra.mxu0 %v436
  %1267 = vmatprep.subr.mxu0 0.0
  %1268 = vmatpush1.msra.mxu0 %v435
  %1269 = vmatprep.subr.mxu0 0.0
  %1270 = vmatpush2.msra.mxu0 %v466
  %1271 = vmatprep.subr.mxu0 0.0
  %1272 = vmatpush2.msra.mxu0 %v465
  %1273 = vmatprep.subr.mxu0 0.0
  %1274 = vmatpush2.msra.mxu0 %v464
  %1275 = vmatprep.subr.mxu0 0.0
  %1276 = vmatpush2.msra.mxu0 %v463
  %1277 = vmatprep.subr.mxu0 0.0
  %1278 = vmatpush2.msra.mxu0 %v462
  %1279 = vmatprep.subr.mxu0 0.0
  %1280 = vmatpush2.msra.mxu0 %v461
  %1281 = vmatprep.subr.mxu0 0.0
  %1282 = vmatpush2.msra.mxu0 %v460
  %1283 = vmatprep.subr.mxu0 0.0
  %1284 = vmatpush2.msra.mxu0 %v459
  %1285 = vmatprep.subr.mxu0 0.0
  %1286 = vmatpush2.msra.mxu0 %v458
  %1287 = vmatprep.subr.mxu0 0.0
  %1288 = vmatpush2.msra.mxu0 %v457
  %1289 = vmatprep.subr.mxu0 0.0
  %1290 = vmatpush2.msra.mxu0 %v456
  %1291 = vmatprep.subr.mxu0 0.0
  %1292 = vmatpush2.msra.mxu0 %v455
  %1293 = vmatprep.subr.mxu0 0.0
  %1294 = vmatpush2.msra.mxu0 %v454
  %1295 = vmatprep.subr.mxu0 0.0
  %1296 = vmatpush2.msra.mxu0 %v453
  %1297 = vmatprep.subr.mxu0 0.0
  %1298 = vmatpush2.msra.mxu0 %v452
  %1299 = vmatprep.subr.mxu0 0.0
  %1300 = vmatpush2.msra.mxu0 %v451
  %1301 = vmatprep.mubr.f32.mxu0 %v82
  %1302 = vmatmul.mubr.f32.gmra.mxu0 %v81
  %v1303 = vpop.f32.mrf.mxu0
  %v1304 = vadd.f32 %v1234, %v1303
  %v1305 = vpop.f32.mrf.mxu0
  %1306 = vdwg.mxu0
  %v1307 = vld [vmem:[%s2] sm:$0x1]
  %v1308 = vld [vmem:[%s3] sm:$0x1f]
  %v1310 = vrot.slane %v1304, 7
  %vm1312 = vcmask 1040384
  %v1313 = vsel %vm1312, %v1307, %v1310
  %v1314 = vadd.f32 %v1313, %v1308
  %v1315 = vrot.slane %v1304, 3
  %v1317 = vsel %vm1312, %v1307, %v1315
  %v1318 = vadd.f32 %v1317, %v1308
  %v1320 = vrot.slane %v1318, 3
  %vm1322 = vcmask 1044480
  %v1323 = vsel %vm1322, %v1314, %v1320
  %v1324 = vld [vmem:[%s4] sm:$0x1]
  %v1325 = vld [vmem:[%s5] sm:$0x1]
  %vm1326 = vcmask 261120
  %v1327 = vsel %vm1326, %v1323, 0.0
  %1328 = vadd.xlane.f32.xlu0 %v1327
  %v1329 = vpop.xlane.xlu0 %1328
  %vm1330 = vcmask 254976
  %v1331 = vsel %vm1330, %v1320, 0.0
  %1332 = vadd.xlane.f32.xlu0 %v1331
  %v1333 = vpop.xlane.xlu0 %1332
  %v1334 = vrcp.pop 32.0
  %v1335 = vmul.f32 %v1329, %v1334
  %v1336 = vmul.f32 %v1333, %v1334
  %v1337 = vsub.f32 %v1323, %v1335
  %v1338 = vsub.f32 %v1320, %v1336
  %v1339 = vmul.f32 %v1337, %v1337
  %v1340 = vmul.f32 %v1338, %v1338
  %v1341 = vsel %vm1326, %v1339, 0.0
  %1342 = vadd.xlane.f32.xlu0 %v1341
  %v1343 = vpop.xlane.xlu0 %1342
  %v1344 = vsel %vm1330, %v1340, 0.0
  %1345 = vadd.xlane.f32.xlu0 %v1344
  %v1346 = vpop.xlane.xlu0 %1345
  %v1347 = vmul.f32 %v1343, %v1334
  %v1348 = vmul.f32 %v1346, %v1334
  %v1349 = vadd.f32 %v1347, 1e-05
  %v1350 = vadd.f32 %v1348, 1e-05
  %v1351 = vrsqrt.pop %v1349
  %v1352 = vrsqrt.pop %v1350
  %v1353 = vmul.f32 %v1337, %v1351
  %v1354 = vmul.f32 %v1338, %v1352
  %v1356 = vlaneseq
  %v1357 = vshrl.u32 %v1356, 7
  %v1358 = vsub.s32 0, %v1357
  %v1359 = vrot.slane %v1324, %v1358
  %v1361 = vmul.f32 %v1353, %v1359
  %v1362 = vmul.f32 %v1354, %v1359
  %v1364 = vlaneseq
  %v1365 = vshrl.u32 %v1364, 7
  %v1366 = vsub.s32 0, %v1365
  %v1367 = vrot.slane %v1325, %v1366
  %v1369 = vadd.f32 %v1361, %v1367
  %v1370 = vadd.f32 %v1362, %v1367
  %v1371 = vld [vmem:[%s6] sm:$0x1]
  %v1372 = vld [vmem:[%s7] sm:$0x1]
  %v1373 = vsel %vm1326, %v1369, 0.0
  %1374 = vadd.xlane.f32.xlu0 %v1373
  %v1375 = vpop.xlane.xlu0 %1374
  %v1376 = vsel %vm1330, %v1370, 0.0
  %1377 = vadd.xlane.f32.xlu0 %v1376
  %v1378 = vpop.xlane.xlu0 %1377
  %v1379 = vmul.f32 %v1375, %v1334
  %v1380 = vmul.f32 %v1378, %v1334
  %v1381 = vsub.f32 %v1369, %v1379
  %v1382 = vsub.f32 %v1370, %v1380
  %v1383 = vmul.f32 %v1381, %v1381
  %v1384 = vmul.f32 %v1382, %v1382
  %v1385 = vsel %vm1326, %v1383, 0.0
  %1386 = vadd.xlane.f32.xlu0 %v1385
  %v1387 = vpop.xlane.xlu0 %1386
  %v1388 = vsel %vm1330, %v1384, 0.0
  %1389 = vadd.xlane.f32.xlu0 %v1388
  %v1390 = vpop.xlane.xlu0 %1389
  %v1391 = vmul.f32 %v1387, %v1334
  %v1392 = vmul.f32 %v1390, %v1334
  %v1393 = vadd.f32 %v1391, 1e-05
  %v1394 = vadd.f32 %v1392, 1e-05
  %v1395 = vrsqrt.pop %v1393
  %v1396 = vrsqrt.pop %v1394
  %v1397 = vmul.f32 %v1381, %v1395
  %v1398 = vmul.f32 %v1382, %v1396
  %v1400 = vlaneseq
  %v1401 = vshrl.u32 %v1400, 7
  %v1402 = vsub.s32 0, %v1401
  %v1403 = vrot.slane %v1371, %v1402
  %v1405 = vmul.f32 %v1397, %v1403
  %v1406 = vmul.f32 %v1398, %v1403
  %v1408 = vlaneseq
  %v1409 = vshrl.u32 %v1408, 7
  %v1410 = vsub.s32 0, %v1409
  %v1411 = vrot.slane %v1372, %v1410
  %v1413 = vadd.f32 %v1405, %v1411
  %v1414 = vadd.f32 %v1406, %v1411
  %v1415 = vld [vmem:[%s8] sm:$0xff]
  %v1416 = vld [vmem:[%s8 + $0x8] sm:$0xff]
  %v1417 = vld [vmem:[%s8 + $0x10] sm:$0xff]
  %v1418 = vld [vmem:[%s8 + $0x18] sm:$0xff]
  %v1419 = vld [vmem:[%s9] sm:$0x1]
  %v1421 = vlaneseq
  %v1422 = vshrl.u32 %v1421, 7
  %v1423 = vsub.s32 0, %v1422
  %v1424 = vrot.slane %v1419, %v1423
  %v1427 = vsel %vm1326, %v1413, 0
  %v1430 = vsel %vm1326, %v1414, 0
  %1432 = vmatprep.subr.mxu0 0.0
  %1433 = vmatpush1.msra.mxu0 0.0
  %1434 = vmatprep.subr.mxu0 0.0
  %1435 = vmatpush1.msra.mxu0 0.0
  %1436 = vmatprep.subr.mxu0 0.0
  %1437 = vmatpush1.msra.mxu0 0.0
  %1438 = vmatprep.subr.mxu0 0.0
  %1439 = vmatpush1.msra.mxu0 0.0
  %1440 = vmatprep.subr.mxu0 0.0
  %1441 = vmatpush1.msra.mxu0 0.0
  %1442 = vmatprep.subr.mxu0 0.0
  %1443 = vmatpush1.msra.mxu0 0.0
  %1444 = vmatprep.subr.mxu0 0.0
  %1445 = vmatpush1.msra.mxu0 0.0
  %1446 = vmatprep.subr.mxu0 0.0
  %1447 = vmatpush1.msra.mxu0 0.0
  %1448 = vmatprep.subr.mxu0 0.0
  %1449 = vmatpush1.msra.mxu0 0.0
  %1450 = vmatprep.subr.mxu0 0.0
  %1451 = vmatpush1.msra.mxu0 0.0
  %1452 = vmatprep.subr.mxu0 0.0
  %1453 = vmatpush1.msra.mxu0 0.0
  %1454 = vmatprep.subr.mxu0 0.0
  %1455 = vmatpush1.msra.mxu0 0.0
  %1456 = vmatprep.subr.mxu0 0.0
  %1457 = vmatpush1.msra.mxu0 %v1418
  %1458 = vmatprep.subr.mxu0 0.0
  %1459 = vmatpush1.msra.mxu0 %v1417
  %1460 = vmatprep.subr.mxu0 0.0
  %1461 = vmatpush1.msra.mxu0 %v1416
  %1462 = vmatprep.subr.mxu0 0.0
  %1463 = vmatpush1.msra.mxu0 %v1415
  %1464 = vmatprep.subr.mxu0 0.0
  %1465 = vmatpush2.msra.mxu0 0.0
  %1466 = vmatprep.subr.mxu0 0.0
  %1467 = vmatpush2.msra.mxu0 0.0
  %1468 = vmatprep.subr.mxu0 0.0
  %1469 = vmatpush2.msra.mxu0 0.0
  %1470 = vmatprep.subr.mxu0 0.0
  %1471 = vmatpush2.msra.mxu0 0.0
  %1472 = vmatprep.subr.mxu0 0.0
  %1473 = vmatpush2.msra.mxu0 0.0
  %1474 = vmatprep.subr.mxu0 0.0
  %1475 = vmatpush2.msra.mxu0 0.0
  %1476 = vmatprep.subr.mxu0 0.0
  %1477 = vmatpush2.msra.mxu0 0.0
  %1478 = vmatprep.subr.mxu0 0.0
  %1479 = vmatpush2.msra.mxu0 0.0
  %1480 = vmatprep.subr.mxu0 0.0
  %1481 = vmatpush2.msra.mxu0 0.0
  %1482 = vmatprep.subr.mxu0 0.0
  %1483 = vmatpush2.msra.mxu0 0.0
  %1484 = vmatprep.subr.mxu0 0.0
  %1485 = vmatpush2.msra.mxu0 0.0
  %1486 = vmatprep.subr.mxu0 0.0
  %1487 = vmatpush2.msra.mxu0 0.0
  %1488 = vmatprep.subr.mxu0 0.0
  %1489 = vmatpush2.msra.mxu0 0.0
  %1490 = vmatprep.subr.mxu0 0.0
  %1491 = vmatpush2.msra.mxu0 0.0
  %1492 = vmatprep.subr.mxu0 0.0
  %1493 = vmatpush2.msra.mxu0 0.0
  %1494 = vmatprep.subr.mxu0 0.0
  %1495 = vmatpush2.msra.mxu0 0.0
  %1496 = vmatprep.mubr.f32.mxu0 0.0
  %1497 = vmatmul.mubr.f32.gmra.mxu0 %v1427
  %v1498 = vpop.f32.mrf.mxu0
  %v1499 = vadd.f32 %v1424, %v1498
  %v1500 = vpop.f32.mrf.mxu0
  %1501 = vmatprep.mubr.f32.mxu0 0.0
  %1502 = vmatmul.mubr.f32.gmra.mxu0 %v1430
  %v1503 = vpop.f32.mrf.mxu0
  %v1504 = vadd.f32 %v1424, %v1503
  %v1505 = vpop.f32.mrf.mxu0
  %1506 = vdwg.mxu0
  %1508 = vrot.lane.b32.xlu0 %v1499, 96
  %v1509 = vpop.permute.xlu0 %1508
  %vm1510 = vcmask 64512
  %v1511 = vsel %vm1510, %v1499, 0
  %v1513 = vsel %vm1510, %v1509, 0
  %1515 = vmatprep.subr.mxu0 0.0
  %1516 = vmatpush1.xpose.msra.mxu0 0.0
  %1517 = vmatprep.subr.mxu0 0.0
  %1518 = vmatpush1.xpose.msra.mxu0 0.0
  %1519 = vmatprep.subr.mxu0 0.0
  %1520 = vmatpush1.xpose.msra.mxu0 0.0
  %1521 = vmatprep.subr.mxu0 0.0
  %1522 = vmatpush1.xpose.msra.mxu0 0.0
  %1523 = vmatprep.subr.mxu0 0.0
  %1524 = vmatpush1.xpose.msra.mxu0 0.0
  %1525 = vmatprep.subr.mxu0 0.0
  %1526 = vmatpush1.xpose.msra.mxu0 0.0
  %1527 = vmatprep.subr.mxu0 0.0
  %1528 = vmatpush1.xpose.msra.mxu0 0.0
  %1529 = vmatprep.subr.mxu0 0.0
  %1530 = vmatpush1.xpose.msra.mxu0 0.0
  %1531 = vmatprep.subr.mxu0 0.0
  %1532 = vmatpush1.xpose.msra.mxu0 0.0
  %1533 = vmatprep.subr.mxu0 0.0
  %1534 = vmatpush1.xpose.msra.mxu0 0.0
  %1535 = vmatprep.subr.mxu0 0.0
  %1536 = vmatpush1.xpose.msra.mxu0 0.0
  %1537 = vmatprep.subr.mxu0 0.0
  %1538 = vmatpush1.xpose.msra.mxu0 0.0
  %1539 = vmatprep.subr.mxu0 0.0
  %1540 = vmatpush1.xpose.msra.mxu0 0.0
  %1541 = vmatprep.subr.mxu0 0.0
  %1542 = vmatpush1.xpose.msra.mxu0 0.0
  %1543 = vmatprep.subr.mxu0 0.0
  %1544 = vmatpush1.xpose.msra.mxu0 0.0
  %1545 = vmatprep.subr.mxu0 0.0
  %1546 = vmatpush1.xpose.msra.mxu0 %v1513
  %1547 = vmatprep.subr.mxu0 0.0
  %1548 = vmatpush2.xpose.msra.mxu0 0.0
  %1549 = vmatprep.subr.mxu0 0.0
  %1550 = vmatpush2.xpose.msra.mxu0 0.0
  %1551 = vmatprep.subr.mxu0 0.0
  %1552 = vmatpush2.xpose.msra.mxu0 0.0
  %1553 = vmatprep.subr.mxu0 0.0
  %1554 = vmatpush2.xpose.msra.mxu0 0.0
  %1555 = vmatprep.subr.mxu0 0.0
  %1556 = vmatpush2.xpose.msra.mxu0 0.0
  %1557 = vmatprep.subr.mxu0 0.0
  %1558 = vmatpush2.xpose.msra.mxu0 0.0
  %1559 = vmatprep.subr.mxu0 0.0
  %1560 = vmatpush2.xpose.msra.mxu0 0.0
  %1561 = vmatprep.subr.mxu0 0.0
  %1562 = vmatpush2.xpose.msra.mxu0 0.0
  %1563 = vmatprep.subr.mxu0 0.0
  %1564 = vmatpush2.xpose.msra.mxu0 0.0
  %1565 = vmatprep.subr.mxu0 0.0
  %1566 = vmatpush2.xpose.msra.mxu0 0.0
  %1567 = vmatprep.subr.mxu0 0.0
  %1568 = vmatpush2.xpose.msra.mxu0 0.0
  %1569 = vmatprep.subr.mxu0 0.0
  %1570 = vmatpush2.xpose.msra.mxu0 0.0
  %1571 = vmatprep.subr.mxu0 0.0
  %1572 = vmatpush2.xpose.msra.mxu0 0.0
  %1573 = vmatprep.subr.mxu0 0.0
  %1574 = vmatpush2.xpose.msra.mxu0 0.0
  %1575 = vmatprep.subr.mxu0 0.0
  %1576 = vmatpush2.xpose.msra.mxu0 0.0
  %1577 = vmatprep.subr.mxu0 0.0
  %1578 = vmatpush2.xpose.msra.mxu0 0.0
  %1579 = vmatprep.mubr.f32.mxu0 0.0
  %1580 = vmatmul.mubr.f32.gmra.mxu0 %v1511
  %v1581 = vpop.f32.mrf.mxu0
  %v1582 = vadd.f32 0.0, %v1581
  %v1583 = vpop.f32.mrf.mxu0
  %1584 = vdwg.mxu0
  %v1585 = vmul.f32 %v1582, 0.35355338
  %vm1586 = vcmask 36864
  %v1587 = vsel %vm1586, %v1585, -inf
  %1588 = vmax.xlane.f32.xlu0 %v1587
  %v1589 = vpop.xlane.xlu0 %1588
  %v1590 = vsub.f32 %v1585, %v1589
  %v1591 = vmul.f32 %v1590, 1.442695
  %v1592 = vpow.pop %v1591
  %v1593 = vsel %vm1586, %v1592, 0.0
  %1594 = vadd.xlane.f32.xlu0 %v1593
  %v1595 = vpop.xlane.xlu0 %1594
  %v1596 = vrcp.pop %v1595
  %v1597 = vmul.f32 %v1592, %v1596
  %1598 = vrot.lane.b32.xlu0 %v1499, 64
  %v1599 = vpop.permute.xlu0 %1598
  %vm1600 = vcmask 39936
  %v1602 = vsel %vm1600, %v1597, 0
  %v1604 = vsel %vm1322, %v1599, 0
  %1606 = vmatprep.subr.mxu0 0.0
  %1607 = vmatpush1.msra.mxu0 0.0
  %1608 = vmatprep.subr.mxu0 0.0
  %1609 = vmatpush1.msra.mxu0 0.0
  %1610 = vmatprep.subr.mxu0 0.0
  %1611 = vmatpush1.msra.mxu0 0.0
  %1612 = vmatprep.subr.mxu0 0.0
  %1613 = vmatpush1.msra.mxu0 0.0
  %1614 = vmatprep.subr.mxu0 0.0
  %1615 = vmatpush1.msra.mxu0 0.0
  %1616 = vmatprep.subr.mxu0 0.0
  %1617 = vmatpush1.msra.mxu0 0.0
  %1618 = vmatprep.subr.mxu0 0.0
  %1619 = vmatpush1.msra.mxu0 0.0
  %1620 = vmatprep.subr.mxu0 0.0
  %1621 = vmatpush1.msra.mxu0 0.0
  %1622 = vmatprep.subr.mxu0 0.0
  %1623 = vmatpush1.msra.mxu0 0.0
  %1624 = vmatprep.subr.mxu0 0.0
  %1625 = vmatpush1.msra.mxu0 0.0
  %1626 = vmatprep.subr.mxu0 0.0
  %1627 = vmatpush1.msra.mxu0 0.0
  %1628 = vmatprep.subr.mxu0 0.0
  %1629 = vmatpush1.msra.mxu0 0.0
  %1630 = vmatprep.subr.mxu0 0.0
  %1631 = vmatpush1.msra.mxu0 0.0
  %1632 = vmatprep.subr.mxu0 0.0
  %1633 = vmatpush1.msra.mxu0 0.0
  %1634 = vmatprep.subr.mxu0 0.0
  %1635 = vmatpush1.msra.mxu0 0.0
  %1636 = vmatprep.subr.mxu0 0.0
  %1637 = vmatpush1.msra.mxu0 %v1604
  %1638 = vmatprep.subr.mxu0 0.0
  %1639 = vmatpush2.msra.mxu0 0.0
  %1640 = vmatprep.subr.mxu0 0.0
  %1641 = vmatpush2.msra.mxu0 0.0
  %1642 = vmatprep.subr.mxu0 0.0
  %1643 = vmatpush2.msra.mxu0 0.0
  %1644 = vmatprep.subr.mxu0 0.0
  %1645 = vmatpush2.msra.mxu0 0.0
  %1646 = vmatprep.subr.mxu0 0.0
  %1647 = vmatpush2.msra.mxu0 0.0
  %1648 = vmatprep.subr.mxu0 0.0
  %1649 = vmatpush2.msra.mxu0 0.0
  %1650 = vmatprep.subr.mxu0 0.0
  %1651 = vmatpush2.msra.mxu0 0.0
  %1652 = vmatprep.subr.mxu0 0.0
  %1653 = vmatpush2.msra.mxu0 0.0
  %1654 = vmatprep.subr.mxu0 0.0
  %1655 = vmatpush2.msra.mxu0 0.0
  %1656 = vmatprep.subr.mxu0 0.0
  %1657 = vmatpush2.msra.mxu0 0.0
  %1658 = vmatprep.subr.mxu0 0.0
  %1659 = vmatpush2.msra.mxu0 0.0
  %1660 = vmatprep.subr.mxu0 0.0
  %1661 = vmatpush2.msra.mxu0 0.0
  %1662 = vmatprep.subr.mxu0 0.0
  %1663 = vmatpush2.msra.mxu0 0.0
  %1664 = vmatprep.subr.mxu0 0.0
  %1665 = vmatpush2.msra.mxu0 0.0
  %1666 = vmatprep.subr.mxu0 0.0
  %1667 = vmatpush2.msra.mxu0 0.0
  %1668 = vmatprep.subr.mxu0 0.0
  %1669 = vmatpush2.msra.mxu0 0.0
  %1670 = vmatprep.mubr.f32.mxu0 0.0
  %1671 = vmatmul.mubr.f32.gmra.mxu0 %v1602
  %v1672 = vpop.f32.mrf.mxu0
  %v1673 = vadd.f32 0.0, %v1672
  %v1674 = vpop.f32.mrf.mxu0
  %1675 = vdwg.mxu0
  %1676 = vrot.lane.b32.xlu0 %v1499, 120
  %v1677 = vpop.permute.xlu0 %1676
  %1678 = vrot.lane.b32.xlu0 %v1499, 88
  %v1679 = vpop.permute.xlu0 %1678
  %v1680 = vsel %vm1510, %v1677, 0
  %v1682 = vsel %vm1510, %v1679, 0
  %1684 = vmatprep.subr.mxu0 0.0
  %1685 = vmatpush1.xpose.msra.mxu0 0.0
  %1686 = vmatprep.subr.mxu0 0.0
  %1687 = vmatpush1.xpose.msra.mxu0 0.0
  %1688 = vmatprep.subr.mxu0 0.0
  %1689 = vmatpush1.xpose.msra.mxu0 0.0
  %1690 = vmatprep.subr.mxu0 0.0
  %1691 = vmatpush1.xpose.msra.mxu0 0.0
  %1692 = vmatprep.subr.mxu0 0.0
  %1693 = vmatpush1.xpose.msra.mxu0 0.0
  %1694 = vmatprep.subr.mxu0 0.0
  %1695 = vmatpush1.xpose.msra.mxu0 0.0
  %1696 = vmatprep.subr.mxu0 0.0
  %1697 = vmatpush1.xpose.msra.mxu0 0.0
  %1698 = vmatprep.subr.mxu0 0.0
  %1699 = vmatpush1.xpose.msra.mxu0 0.0
  %1700 = vmatprep.subr.mxu0 0.0
  %1701 = vmatpush1.xpose.msra.mxu0 0.0
  %1702 = vmatprep.subr.mxu0 0.0
  %1703 = vmatpush1.xpose.msra.mxu0 0.0
  %1704 = vmatprep.subr.mxu0 0.0
  %1705 = vmatpush1.xpose.msra.mxu0 0.0
  %1706 = vmatprep.subr.mxu0 0.0
  %1707 = vmatpush1.xpose.msra.mxu0 0.0
  %1708 = vmatprep.subr.mxu0 0.0
  %1709 = vmatpush1.xpose.msra.mxu0 0.0
  %1710 = vmatprep.subr.mxu0 0.0
  %1711 = vmatpush1.xpose.msra.mxu0 0.0
  %1712 = vmatprep.subr.mxu0 0.0
  %1713 = vmatpush1.xpose.msra.mxu0 0.0
  %1714 = vmatprep.subr.mxu0 0.0
  %1715 = vmatpush1.xpose.msra.mxu0 %v1682
  %1716 = vmatprep.subr.mxu0 0.0
  %1717 = vmatpush2.xpose.msra.mxu0 0.0
  %1718 = vmatprep.subr.mxu0 0.0
  %1719 = vmatpush2.xpose.msra.mxu0 0.0
  %1720 = vmatprep.subr.mxu0 0.0
  %1721 = vmatpush2.xpose.msra.mxu0 0.0
  %1722 = vmatprep.subr.mxu0 0.0
  %1723 = vmatpush2.xpose.msra.mxu0 0.0
  %1724 = vmatprep.subr.mxu0 0.0
  %1725 = vmatpush2.xpose.msra.mxu0 0.0
  %1726 = vmatprep.subr.mxu0 0.0
  %1727 = vmatpush2.xpose.msra.mxu0 0.0
  %1728 = vmatprep.subr.mxu0 0.0
  %1729 = vmatpush2.xpose.msra.mxu0 0.0
  %1730 = vmatprep.subr.mxu0 0.0
  %1731 = vmatpush2.xpose.msra.mxu0 0.0
  %1732 = vmatprep.subr.mxu0 0.0
  %1733 = vmatpush2.xpose.msra.mxu0 0.0
  %1734 = vmatprep.subr.mxu0 0.0
  %1735 = vmatpush2.xpose.msra.mxu0 0.0
  %1736 = vmatprep.subr.mxu0 0.0
  %1737 = vmatpush2.xpose.msra.mxu0 0.0
  %1738 = vmatprep.subr.mxu0 0.0
  %1739 = vmatpush2.xpose.msra.mxu0 0.0
  %1740 = vmatprep.subr.mxu0 0.0
  %1741 = vmatpush2.xpose.msra.mxu0 0.0
  %1742 = vmatprep.subr.mxu0 0.0
  %1743 = vmatpush2.xpose.msra.mxu0 0.0
  %1744 = vmatprep.subr.mxu0 0.0
  %1745 = vmatpush2.xpose.msra.mxu0 0.0
  %1746 = vmatprep.subr.mxu0 0.0
  %1747 = vmatpush2.xpose.msra.mxu0 0.0
  %1748 = vmatprep.mubr.f32.mxu0 0.0
  %1749 = vmatmul.mubr.f32.gmra.mxu0 %v1680
  %v1750 = vpop.f32.mrf.mxu0
  %v1751 = vadd.f32 0.0, %v1750
  %v1752 = vpop.f32.mrf.mxu0
  %1753 = vdwg.mxu0
  %v1754 = vmul.f32 %v1751, 0.35355338
  %v1755 = vsel %vm1586, %v1754, -inf
  %1756 = vmax.xlane.f32.xlu0 %v1755
  %v1757 = vpop.xlane.xlu0 %1756
  %v1758 = vsub.f32 %v1754, %v1757
  %v1759 = vmul.f32 %v1758, 1.442695
  %v1760 = vpow.pop %v1759
  %v1761 = vsel %vm1586, %v1760, 0.0
  %1762 = vadd.xlane.f32.xlu0 %v1761
  %v1763 = vpop.xlane.xlu0 %1762
  %v1764 = vrcp.pop %v1763
  %v1765 = vmul.f32 %v1760, %v1764
  %1766 = vrot.lane.b32.xlu0 %v1499, 56
  %v1767 = vpop.permute.xlu0 %1766
  %v1769 = vsel %vm1600, %v1765, 0
  %v1771 = vsel %vm1322, %v1767, 0
  %1773 = vmatprep.subr.mxu0 0.0
  %1774 = vmatpush1.msra.mxu0 0.0
  %1775 = vmatprep.subr.mxu0 0.0
  %1776 = vmatpush1.msra.mxu0 0.0
  %1777 = vmatprep.subr.mxu0 0.0
  %1778 = vmatpush1.msra.mxu0 0.0
  %1779 = vmatprep.subr.mxu0 0.0
  %1780 = vmatpush1.msra.mxu0 0.0
  %1781 = vmatprep.subr.mxu0 0.0
  %1782 = vmatpush1.msra.mxu0 0.0
  %1783 = vmatprep.subr.mxu0 0.0
  %1784 = vmatpush1.msra.mxu0 0.0
  %1785 = vmatprep.subr.mxu0 0.0
  %1786 = vmatpush1.msra.mxu0 0.0
  %1787 = vmatprep.subr.mxu0 0.0
  %1788 = vmatpush1.msra.mxu0 0.0
  %1789 = vmatprep.subr.mxu0 0.0
  %1790 = vmatpush1.msra.mxu0 0.0
  %1791 = vmatprep.subr.mxu0 0.0
  %1792 = vmatpush1.msra.mxu0 0.0
  %1793 = vmatprep.subr.mxu0 0.0
  %1794 = vmatpush1.msra.mxu0 0.0
  %1795 = vmatprep.subr.mxu0 0.0
  %1796 = vmatpush1.msra.mxu0 0.0
  %1797 = vmatprep.subr.mxu0 0.0
  %1798 = vmatpush1.msra.mxu0 0.0
  %1799 = vmatprep.subr.mxu0 0.0
  %1800 = vmatpush1.msra.mxu0 0.0
  %1801 = vmatprep.subr.mxu0 0.0
  %1802 = vmatpush1.msra.mxu0 0.0
  %1803 = vmatprep.subr.mxu0 0.0
  %1804 = vmatpush1.msra.mxu0 %v1771
  %1805 = vmatprep.subr.mxu0 0.0
  %1806 = vmatpush2.msra.mxu0 0.0
  %1807 = vmatprep.subr.mxu0 0.0
  %1808 = vmatpush2.msra.mxu0 0.0
  %1809 = vmatprep.subr.mxu0 0.0
  %1810 = vmatpush2.msra.mxu0 0.0
  %1811 = vmatprep.subr.mxu0 0.0
  %1812 = vmatpush2.msra.mxu0 0.0
  %1813 = vmatprep.subr.mxu0 0.0
  %1814 = vmatpush2.msra.mxu0 0.0
  %1815 = vmatprep.subr.mxu0 0.0
  %1816 = vmatpush2.msra.mxu0 0.0
  %1817 = vmatprep.subr.mxu0 0.0
  %1818 = vmatpush2.msra.mxu0 0.0
  %1819 = vmatprep.subr.mxu0 0.0
  %1820 = vmatpush2.msra.mxu0 0.0
  %1821 = vmatprep.subr.mxu0 0.0
  %1822 = vmatpush2.msra.mxu0 0.0
  %1823 = vmatprep.subr.mxu0 0.0
  %1824 = vmatpush2.msra.mxu0 0.0
  %1825 = vmatprep.subr.mxu0 0.0
  %1826 = vmatpush2.msra.mxu0 0.0
  %1827 = vmatprep.subr.mxu0 0.0
  %1828 = vmatpush2.msra.mxu0 0.0
  %1829 = vmatprep.subr.mxu0 0.0
  %1830 = vmatpush2.msra.mxu0 0.0
  %1831 = vmatprep.subr.mxu0 0.0
  %1832 = vmatpush2.msra.mxu0 0.0
  %1833 = vmatprep.subr.mxu0 0.0
  %1834 = vmatpush2.msra.mxu0 0.0
  %1835 = vmatprep.subr.mxu0 0.0
  %1836 = vmatpush2.msra.mxu0 0.0
  %1837 = vmatprep.mubr.f32.mxu0 0.0
  %1838 = vmatmul.mubr.f32.gmra.mxu0 %v1769
  %v1839 = vpop.f32.mrf.mxu0
  %v1840 = vadd.f32 0.0, %v1839
  %v1841 = vpop.f32.mrf.mxu0
  %1842 = vdwg.mxu0
  %1843 = vrot.lane.b32.xlu0 %v1499, 112
  %v1844 = vpop.permute.xlu0 %1843
  %1845 = vrot.lane.b32.xlu0 %v1499, 80
  %v1846 = vpop.permute.xlu0 %1845
  %v1847 = vsel %vm1510, %v1844, 0
  %v1849 = vsel %vm1510, %v1846, 0
  %1851 = vmatprep.subr.mxu0 0.0
  %1852 = vmatpush1.xpose.msra.mxu0 0.0
  %1853 = vmatprep.subr.mxu0 0.0
  %1854 = vmatpush1.xpose.msra.mxu0 0.0
  %1855 = vmatprep.subr.mxu0 0.0
  %1856 = vmatpush1.xpose.msra.mxu0 0.0
  %1857 = vmatprep.subr.mxu0 0.0
  %1858 = vmatpush1.xpose.msra.mxu0 0.0
  %1859 = vmatprep.subr.mxu0 0.0
  %1860 = vmatpush1.xpose.msra.mxu0 0.0
  %1861 = vmatprep.subr.mxu0 0.0
  %1862 = vmatpush1.xpose.msra.mxu0 0.0
  %1863 = vmatprep.subr.mxu0 0.0
  %1864 = vmatpush1.xpose.msra.mxu0 0.0
  %1865 = vmatprep.subr.mxu0 0.0
  %1866 = vmatpush1.xpose.msra.mxu0 0.0
  %1867 = vmatprep.subr.mxu0 0.0
  %1868 = vmatpush1.xpose.msra.mxu0 0.0
  %1869 = vmatprep.subr.mxu0 0.0
  %1870 = vmatpush1.xpose.msra.mxu0 0.0
  %1871 = vmatprep.subr.mxu0 0.0
  %1872 = vmatpush1.xpose.msra.mxu0 0.0
  %1873 = vmatprep.subr.mxu0 0.0
  %1874 = vmatpush1.xpose.msra.mxu0 0.0
  %1875 = vmatprep.subr.mxu0 0.0
  %1876 = vmatpush1.xpose.msra.mxu0 0.0
  %1877 = vmatprep.subr.mxu0 0.0
  %1878 = vmatpush1.xpose.msra.mxu0 0.0
  %1879 = vmatprep.subr.mxu0 0.0
  %1880 = vmatpush1.xpose.msra.mxu0 0.0
  %1881 = vmatprep.subr.mxu0 0.0
  %1882 = vmatpush1.xpose.msra.mxu0 %v1849
  %1883 = vmatprep.subr.mxu0 0.0
  %1884 = vmatpush2.xpose.msra.mxu0 0.0
  %1885 = vmatprep.subr.mxu0 0.0
  %1886 = vmatpush2.xpose.msra.mxu0 0.0
  %1887 = vmatprep.subr.mxu0 0.0
  %1888 = vmatpush2.xpose.msra.mxu0 0.0
  %1889 = vmatprep.subr.mxu0 0.0
  %1890 = vmatpush2.xpose.msra.mxu0 0.0
  %1891 = vmatprep.subr.mxu0 0.0
  %1892 = vmatpush2.xpose.msra.mxu0 0.0
  %1893 = vmatprep.subr.mxu0 0.0
  %1894 = vmatpush2.xpose.msra.mxu0 0.0
  %1895 = vmatprep.subr.mxu0 0.0
  %1896 = vmatpush2.xpose.msra.mxu0 0.0
  %1897 = vmatprep.subr.mxu0 0.0
  %1898 = vmatpush2.xpose.msra.mxu0 0.0
  %1899 = vmatprep.subr.mxu0 0.0
  %1900 = vmatpush2.xpose.msra.mxu0 0.0
  %1901 = vmatprep.subr.mxu0 0.0
  %1902 = vmatpush2.xpose.msra.mxu0 0.0
  %1903 = vmatprep.subr.mxu0 0.0
  %1904 = vmatpush2.xpose.msra.mxu0 0.0
  %1905 = vmatprep.subr.mxu0 0.0
  %1906 = vmatpush2.xpose.msra.mxu0 0.0
  %1907 = vmatprep.subr.mxu0 0.0
  %1908 = vmatpush2.xpose.msra.mxu0 0.0
  %1909 = vmatprep.subr.mxu0 0.0
  %1910 = vmatpush2.xpose.msra.mxu0 0.0
  %1911 = vmatprep.subr.mxu0 0.0
  %1912 = vmatpush2.xpose.msra.mxu0 0.0
  %1913 = vmatprep.subr.mxu0 0.0
  %1914 = vmatpush2.xpose.msra.mxu0 0.0
  %1915 = vmatprep.mubr.f32.mxu0 0.0
  %1916 = vmatmul.mubr.f32.gmra.mxu0 %v1847
  %v1917 = vpop.f32.mrf.mxu0
  %v1918 = vadd.f32 0.0, %v1917
  %v1919 = vpop.f32.mrf.mxu0
  %1920 = vdwg.mxu0
  %v1921 = vmul.f32 %v1918, 0.35355338
  %v1922 = vsel %vm1586, %v1921, -inf
  %1923 = vmax.xlane.f32.xlu0 %v1922
  %v1924 = vpop.xlane.xlu0 %1923
  %v1925 = vsub.f32 %v1921, %v1924
  %v1926 = vmul.f32 %v1925, 1.442695
  %v1927 = vpow.pop %v1926
  %v1928 = vsel %vm1586, %v1927, 0.0
  %1929 = vadd.xlane.f32.xlu0 %v1928
  %v1930 = vpop.xlane.xlu0 %1929
  %v1931 = vrcp.pop %v1930
  %v1932 = vmul.f32 %v1927, %v1931
  %1933 = vrot.lane.b32.xlu0 %v1499, 48
  %v1934 = vpop.permute.xlu0 %1933
  %v1936 = vsel %vm1600, %v1932, 0
  %v1938 = vsel %vm1322, %v1934, 0
  %1940 = vmatprep.subr.mxu0 0.0
  %1941 = vmatpush1.msra.mxu0 0.0
  %1942 = vmatprep.subr.mxu0 0.0
  %1943 = vmatpush1.msra.mxu0 0.0
  %1944 = vmatprep.subr.mxu0 0.0
  %1945 = vmatpush1.msra.mxu0 0.0
  %1946 = vmatprep.subr.mxu0 0.0
  %1947 = vmatpush1.msra.mxu0 0.0
  %1948 = vmatprep.subr.mxu0 0.0
  %1949 = vmatpush1.msra.mxu0 0.0
  %1950 = vmatprep.subr.mxu0 0.0
  %1951 = vmatpush1.msra.mxu0 0.0
  %1952 = vmatprep.subr.mxu0 0.0
  %1953 = vmatpush1.msra.mxu0 0.0
  %1954 = vmatprep.subr.mxu0 0.0
  %1955 = vmatpush1.msra.mxu0 0.0
  %1956 = vmatprep.subr.mxu0 0.0
  %1957 = vmatpush1.msra.mxu0 0.0
  %1958 = vmatprep.subr.mxu0 0.0
  %1959 = vmatpush1.msra.mxu0 0.0
  %1960 = vmatprep.subr.mxu0 0.0
  %1961 = vmatpush1.msra.mxu0 0.0
  %1962 = vmatprep.subr.mxu0 0.0
  %1963 = vmatpush1.msra.mxu0 0.0
  %1964 = vmatprep.subr.mxu0 0.0
  %1965 = vmatpush1.msra.mxu0 0.0
  %1966 = vmatprep.subr.mxu0 0.0
  %1967 = vmatpush1.msra.mxu0 0.0
  %1968 = vmatprep.subr.mxu0 0.0
  %1969 = vmatpush1.msra.mxu0 0.0
  %1970 = vmatprep.subr.mxu0 0.0
  %1971 = vmatpush1.msra.mxu0 %v1938
  %1972 = vmatprep.subr.mxu0 0.0
  %1973 = vmatpush2.msra.mxu0 0.0
  %1974 = vmatprep.subr.mxu0 0.0
  %1975 = vmatpush2.msra.mxu0 0.0
  %1976 = vmatprep.subr.mxu0 0.0
  %1977 = vmatpush2.msra.mxu0 0.0
  %1978 = vmatprep.subr.mxu0 0.0
  %1979 = vmatpush2.msra.mxu0 0.0
  %1980 = vmatprep.subr.mxu0 0.0
  %1981 = vmatpush2.msra.mxu0 0.0
  %1982 = vmatprep.subr.mxu0 0.0
  %1983 = vmatpush2.msra.mxu0 0.0
  %1984 = vmatprep.subr.mxu0 0.0
  %1985 = vmatpush2.msra.mxu0 0.0
  %1986 = vmatprep.subr.mxu0 0.0
  %1987 = vmatpush2.msra.mxu0 0.0
  %1988 = vmatprep.subr.mxu0 0.0
  %1989 = vmatpush2.msra.mxu0 0.0
  %1990 = vmatprep.subr.mxu0 0.0
  %1991 = vmatpush2.msra.mxu0 0.0
  %1992 = vmatprep.subr.mxu0 0.0
  %1993 = vmatpush2.msra.mxu0 0.0
  %1994 = vmatprep.subr.mxu0 0.0
  %1995 = vmatpush2.msra.mxu0 0.0
  %1996 = vmatprep.subr.mxu0 0.0
  %1997 = vmatpush2.msra.mxu0 0.0
  %1998 = vmatprep.subr.mxu0 0.0
  %1999 = vmatpush2.msra.mxu0 0.0
  %2000 = vmatprep.subr.mxu0 0.0
  %2001 = vmatpush2.msra.mxu0 0.0
  %2002 = vmatprep.subr.mxu0 0.0
  %2003 = vmatpush2.msra.mxu0 0.0
  %2004 = vmatprep.mubr.f32.mxu0 0.0
  %2005 = vmatmul.mubr.f32.gmra.mxu0 %v1936
  %v2006 = vpop.f32.mrf.mxu0
  %v2007 = vadd.f32 0.0, %v2006
  %v2008 = vpop.f32.mrf.mxu0
  %2009 = vdwg.mxu0
  %2010 = vrot.lane.b32.xlu0 %v1499, 104
  %v2011 = vpop.permute.xlu0 %2010
  %2012 = vrot.lane.b32.xlu0 %v1499, 72
  %v2013 = vpop.permute.xlu0 %2012
  %v2014 = vsel %vm1510, %v2011, 0
  %v2016 = vsel %vm1510, %v2013, 0
  %2018 = vmatprep.subr.mxu0 0.0
  %2019 = vmatpush1.xpose.msra.mxu0 0.0
  %2020 = vmatprep.subr.mxu0 0.0
  %2021 = vmatpush1.xpose.msra.mxu0 0.0
  %2022 = vmatprep.subr.mxu0 0.0
  %2023 = vmatpush1.xpose.msra.mxu0 0.0
  %2024 = vmatprep.subr.mxu0 0.0
  %2025 = vmatpush1.xpose.msra.mxu0 0.0
  %2026 = vmatprep.subr.mxu0 0.0
  %2027 = vmatpush1.xpose.msra.mxu0 0.0
  %2028 = vmatprep.subr.mxu0 0.0
  %2029 = vmatpush1.xpose.msra.mxu0 0.0
  %2030 = vmatprep.subr.mxu0 0.0
  %2031 = vmatpush1.xpose.msra.mxu0 0.0
  %2032 = vmatprep.subr.mxu0 0.0
  %2033 = vmatpush1.xpose.msra.mxu0 0.0
  %2034 = vmatprep.subr.mxu0 0.0
  %2035 = vmatpush1.xpose.msra.mxu0 0.0
  %2036 = vmatprep.subr.mxu0 0.0
  %2037 = vmatpush1.xpose.msra.mxu0 0.0
  %2038 = vmatprep.subr.mxu0 0.0
  %2039 = vmatpush1.xpose.msra.mxu0 0.0
  %2040 = vmatprep.subr.mxu0 0.0
  %2041 = vmatpush1.xpose.msra.mxu0 0.0
  %2042 = vmatprep.subr.mxu0 0.0
  %2043 = vmatpush1.xpose.msra.mxu0 0.0
  %2044 = vmatprep.subr.mxu0 0.0
  %2045 = vmatpush1.xpose.msra.mxu0 0.0
  %2046 = vmatprep.subr.mxu0 0.0
  %2047 = vmatpush1.xpose.msra.mxu0 0.0
  %2048 = vmatprep.subr.mxu0 0.0
  %2049 = vmatpush1.xpose.msra.mxu0 %v2016
  %2050 = vmatprep.subr.mxu0 0.0
  %2051 = vmatpush2.xpose.msra.mxu0 0.0
  %2052 = vmatprep.subr.mxu0 0.0
  %2053 = vmatpush2.xpose.msra.mxu0 0.0
  %2054 = vmatprep.subr.mxu0 0.0
  %2055 = vmatpush2.xpose.msra.mxu0 0.0
  %2056 = vmatprep.subr.mxu0 0.0
  %2057 = vmatpush2.xpose.msra.mxu0 0.0
  %2058 = vmatprep.subr.mxu0 0.0
  %2059 = vmatpush2.xpose.msra.mxu0 0.0
  %2060 = vmatprep.subr.mxu0 0.0
  %2061 = vmatpush2.xpose.msra.mxu0 0.0
  %2062 = vmatprep.subr.mxu0 0.0
  %2063 = vmatpush2.xpose.msra.mxu0 0.0
  %2064 = vmatprep.subr.mxu0 0.0
  %2065 = vmatpush2.xpose.msra.mxu0 0.0
  %2066 = vmatprep.subr.mxu0 0.0
  %2067 = vmatpush2.xpose.msra.mxu0 0.0
  %2068 = vmatprep.subr.mxu0 0.0
  %2069 = vmatpush2.xpose.msra.mxu0 0.0
  %2070 = vmatprep.subr.mxu0 0.0
  %2071 = vmatpush2.xpose.msra.mxu0 0.0
  %2072 = vmatprep.subr.mxu0 0.0
  %2073 = vmatpush2.xpose.msra.mxu0 0.0
  %2074 = vmatprep.subr.mxu0 0.0
  %2075 = vmatpush2.xpose.msra.mxu0 0.0
  %2076 = vmatprep.subr.mxu0 0.0
  %2077 = vmatpush2.xpose.msra.mxu0 0.0
  %2078 = vmatprep.subr.mxu0 0.0
  %2079 = vmatpush2.xpose.msra.mxu0 0.0
  %2080 = vmatprep.subr.mxu0 0.0
  %2081 = vmatpush2.xpose.msra.mxu0 0.0
  %2082 = vmatprep.mubr.f32.mxu0 0.0
  %2083 = vmatmul.mubr.f32.gmra.mxu0 %v2014
  %v2084 = vpop.f32.mrf.mxu0
  %v2085 = vadd.f32 0.0, %v2084
  %v2086 = vpop.f32.mrf.mxu0
  %2087 = vdwg.mxu0
  %v2088 = vmul.f32 %v2085, 0.35355338
  %v2089 = vsel %vm1586, %v2088, -inf
  %2090 = vmax.xlane.f32.xlu0 %v2089
  %v2091 = vpop.xlane.xlu0 %2090
  %v2092 = vsub.f32 %v2088, %v2091
  %v2093 = vmul.f32 %v2092, 1.442695
  %v2094 = vpow.pop %v2093
  %v2095 = vsel %vm1586, %v2094, 0.0
  %2096 = vadd.xlane.f32.xlu0 %v2095
  %v2097 = vpop.xlane.xlu0 %2096
  %v2098 = vrcp.pop %v2097
  %v2099 = vmul.f32 %v2094, %v2098
  %2100 = vrot.lane.b32.xlu0 %v1499, 40
  %v2101 = vpop.permute.xlu0 %2100
  %v2103 = vsel %vm1600, %v2099, 0
  %v2105 = vsel %vm1322, %v2101, 0
  %2107 = vmatprep.subr.mxu0 0.0
  %2108 = vmatpush1.msra.mxu0 0.0
  %2109 = vmatprep.subr.mxu0 0.0
  %2110 = vmatpush1.msra.mxu0 0.0
  %2111 = vmatprep.subr.mxu0 0.0
  %2112 = vmatpush1.msra.mxu0 0.0
  %2113 = vmatprep.subr.mxu0 0.0
  %2114 = vmatpush1.msra.mxu0 0.0
  %2115 = vmatprep.subr.mxu0 0.0
  %2116 = vmatpush1.msra.mxu0 0.0
  %2117 = vmatprep.subr.mxu0 0.0
  %2118 = vmatpush1.msra.mxu0 0.0
  %2119 = vmatprep.subr.mxu0 0.0
  %2120 = vmatpush1.msra.mxu0 0.0
  %2121 = vmatprep.subr.mxu0 0.0
  %2122 = vmatpush1.msra.mxu0 0.0
  %2123 = vmatprep.subr.mxu0 0.0
  %2124 = vmatpush1.msra.mxu0 0.0
  %2125 = vmatprep.subr.mxu0 0.0
  %2126 = vmatpush1.msra.mxu0 0.0
  %2127 = vmatprep.subr.mxu0 0.0
  %2128 = vmatpush1.msra.mxu0 0.0
  %2129 = vmatprep.subr.mxu0 0.0
  %2130 = vmatpush1.msra.mxu0 0.0
  %2131 = vmatprep.subr.mxu0 0.0
  %2132 = vmatpush1.msra.mxu0 0.0
  %2133 = vmatprep.subr.mxu0 0.0
  %2134 = vmatpush1.msra.mxu0 0.0
  %2135 = vmatprep.subr.mxu0 0.0
  %2136 = vmatpush1.msra.mxu0 0.0
  %2137 = vmatprep.subr.mxu0 0.0
  %2138 = vmatpush1.msra.mxu0 %v2105
  %2139 = vmatprep.subr.mxu0 0.0
  %2140 = vmatpush2.msra.mxu0 0.0
  %2141 = vmatprep.subr.mxu0 0.0
  %2142 = vmatpush2.msra.mxu0 0.0
  %2143 = vmatprep.subr.mxu0 0.0
  %2144 = vmatpush2.msra.mxu0 0.0
  %2145 = vmatprep.subr.mxu0 0.0
  %2146 = vmatpush2.msra.mxu0 0.0
  %2147 = vmatprep.subr.mxu0 0.0
  %2148 = vmatpush2.msra.mxu0 0.0
  %2149 = vmatprep.subr.mxu0 0.0
  %2150 = vmatpush2.msra.mxu0 0.0
  %2151 = vmatprep.subr.mxu0 0.0
  %2152 = vmatpush2.msra.mxu0 0.0
  %2153 = vmatprep.subr.mxu0 0.0
  %2154 = vmatpush2.msra.mxu0 0.0
  %2155 = vmatprep.subr.mxu0 0.0
  %2156 = vmatpush2.msra.mxu0 0.0
  %2157 = vmatprep.subr.mxu0 0.0
  %2158 = vmatpush2.msra.mxu0 0.0
  %2159 = vmatprep.subr.mxu0 0.0
  %2160 = vmatpush2.msra.mxu0 0.0
  %2161 = vmatprep.subr.mxu0 0.0
  %2162 = vmatpush2.msra.mxu0 0.0
  %2163 = vmatprep.subr.mxu0 0.0
  %2164 = vmatpush2.msra.mxu0 0.0
  %2165 = vmatprep.subr.mxu0 0.0
  %2166 = vmatpush2.msra.mxu0 0.0
  %2167 = vmatprep.subr.mxu0 0.0
  %2168 = vmatpush2.msra.mxu0 0.0
  %2169 = vmatprep.subr.mxu0 0.0
  %2170 = vmatpush2.msra.mxu0 0.0
  %2171 = vmatprep.mubr.f32.mxu0 0.0
  %2172 = vmatmul.mubr.f32.gmra.mxu0 %v2103
  %v2173 = vpop.f32.mrf.mxu0
  %v2174 = vadd.f32 0.0, %v2173
  %v2175 = vpop.f32.mrf.mxu0
  %2176 = vdwg.mxu0
  %2178 = vrot.lane.b32.xlu0 %v1840, 8
  %v2179 = vpop.permute.xlu0 %2178
  %2182 = vrot.lane.b32.xlu0 %v2007, 16
  %v2183 = vpop.permute.xlu0 %2182
  %2186 = vrot.lane.b32.xlu0 %v2174, 24
  %v2187 = vpop.permute.xlu0 %2186
  %v2189 = vsel %vm1510, %v1673, %v2179
  %vm2190 = vcmask 130048
  %v2191 = vsel %vm2190, %v2189, %v2183
  %vm2192 = vcmask 195584
  %v2193 = vsel %vm2192, %v2191, %v2187
  %vm2195 = vcmask 1042432
  %v2196 = vrot.slane %v1499, 5
  %v2197 = vrot.slane %v1504, 5
  %v2198 = vsel %vm2195, %v2196, %v2197
  %2199 = vrot.lane.b32.xlu0 %v2198, 96
  %v2200 = vpop.permute.xlu0 %2199
  %v2201 = vsel %vm1510, %v2198, 0
  %v2203 = vsel %vm1510, %v2200, 0
  %2205 = vmatprep.subr.mxu0 0.0
  %2206 = vmatpush1.xpose.msra.mxu0 0.0
  %2207 = vmatprep.subr.mxu0 0.0
  %2208 = vmatpush1.xpose.msra.mxu0 0.0
  %2209 = vmatprep.subr.mxu0 0.0
  %2210 = vmatpush1.xpose.msra.mxu0 0.0
  %2211 = vmatprep.subr.mxu0 0.0
  %2212 = vmatpush1.xpose.msra.mxu0 0.0
  %2213 = vmatprep.subr.mxu0 0.0
  %2214 = vmatpush1.xpose.msra.mxu0 0.0
  %2215 = vmatprep.subr.mxu0 0.0
  %2216 = vmatpush1.xpose.msra.mxu0 0.0
  %2217 = vmatprep.subr.mxu0 0.0
  %2218 = vmatpush1.xpose.msra.mxu0 0.0
  %2219 = vmatprep.subr.mxu0 0.0
  %2220 = vmatpush1.xpose.msra.mxu0 0.0
  %2221 = vmatprep.subr.mxu0 0.0
  %2222 = vmatpush1.xpose.msra.mxu0 0.0
  %2223 = vmatprep.subr.mxu0 0.0
  %2224 = vmatpush1.xpose.msra.mxu0 0.0
  %2225 = vmatprep.subr.mxu0 0.0
  %2226 = vmatpush1.xpose.msra.mxu0 0.0
  %2227 = vmatprep.subr.mxu0 0.0
  %2228 = vmatpush1.xpose.msra.mxu0 0.0
  %2229 = vmatprep.subr.mxu0 0.0
  %2230 = vmatpush1.xpose.msra.mxu0 0.0
  %2231 = vmatprep.subr.mxu0 0.0
  %2232 = vmatpush1.xpose.msra.mxu0 0.0
  %2233 = vmatprep.subr.mxu0 0.0
  %2234 = vmatpush1.xpose.msra.mxu0 0.0
  %2235 = vmatprep.subr.mxu0 0.0
  %2236 = vmatpush1.xpose.msra.mxu0 %v2203
  %2237 = vmatprep.subr.mxu0 0.0
  %2238 = vmatpush2.xpose.msra.mxu0 0.0
  %2239 = vmatprep.subr.mxu0 0.0
  %2240 = vmatpush2.xpose.msra.mxu0 0.0
  %2241 = vmatprep.subr.mxu0 0.0
  %2242 = vmatpush2.xpose.msra.mxu0 0.0
  %2243 = vmatprep.subr.mxu0 0.0
  %2244 = vmatpush2.xpose.msra.mxu0 0.0
  %2245 = vmatprep.subr.mxu0 0.0
  %2246 = vmatpush2.xpose.msra.mxu0 0.0
  %2247 = vmatprep.subr.mxu0 0.0
  %2248 = vmatpush2.xpose.msra.mxu0 0.0
  %2249 = vmatprep.subr.mxu0 0.0
  %2250 = vmatpush2.xpose.msra.mxu0 0.0
  %2251 = vmatprep.subr.mxu0 0.0
  %2252 = vmatpush2.xpose.msra.mxu0 0.0
  %2253 = vmatprep.subr.mxu0 0.0
  %2254 = vmatpush2.xpose.msra.mxu0 0.0
  %2255 = vmatprep.subr.mxu0 0.0
  %2256 = vmatpush2.xpose.msra.mxu0 0.0
  %2257 = vmatprep.subr.mxu0 0.0
  %2258 = vmatpush2.xpose.msra.mxu0 0.0
  %2259 = vmatprep.subr.mxu0 0.0
  %2260 = vmatpush2.xpose.msra.mxu0 0.0
  %2261 = vmatprep.subr.mxu0 0.0
  %2262 = vmatpush2.xpose.msra.mxu0 0.0
  %2263 = vmatprep.subr.mxu0 0.0
  %2264 = vmatpush2.xpose.msra.mxu0 0.0
  %2265 = vmatprep.subr.mxu0 0.0
  %2266 = vmatpush2.xpose.msra.mxu0 0.0
  %2267 = vmatprep.subr.mxu0 0.0
  %2268 = vmatpush2.xpose.msra.mxu0 0.0
  %2269 = vmatprep.mubr.f32.mxu0 0.0
  %2270 = vmatmul.mubr.f32.gmra.mxu0 %v2201
  %v2271 = vpop.f32.mrf.mxu0
  %v2272 = vadd.f32 0.0, %v2271
  %v2273 = vpop.f32.mrf.mxu0
  %2274 = vdwg.mxu0
  %v2275 = vmul.f32 %v2272, 0.35355338
  %v2276 = vsel %vm1586, %v2275, -inf
  %2277 = vmax.xlane.f32.xlu0 %v2276
  %v2278 = vpop.xlane.xlu0 %2277
  %v2279 = vsub.f32 %v2275, %v2278
  %v2280 = vmul.f32 %v2279, 1.442695
  %v2281 = vpow.pop %v2280
  %v2282 = vsel %vm1586, %v2281, 0.0
  %2283 = vadd.xlane.f32.xlu0 %v2282
  %v2284 = vpop.xlane.xlu0 %2283
  %v2285 = vrcp.pop %v2284
  %v2286 = vmul.f32 %v2281, %v2285
  %2287 = vrot.lane.b32.xlu0 %v2198, 64
  %v2288 = vpop.permute.xlu0 %2287
  %v2290 = vsel %vm1600, %v2286, 0
  %v2292 = vsel %vm1322, %v2288, 0
  %2294 = vmatprep.subr.mxu0 0.0
  %2295 = vmatpush1.msra.mxu0 0.0
  %2296 = vmatprep.subr.mxu0 0.0
  %2297 = vmatpush1.msra.mxu0 0.0
  %2298 = vmatprep.subr.mxu0 0.0
  %2299 = vmatpush1.msra.mxu0 0.0
  %2300 = vmatprep.subr.mxu0 0.0
  %2301 = vmatpush1.msra.mxu0 0.0
  %2302 = vmatprep.subr.mxu0 0.0
  %2303 = vmatpush1.msra.mxu0 0.0
  %2304 = vmatprep.subr.mxu0 0.0
  %2305 = vmatpush1.msra.mxu0 0.0
  %2306 = vmatprep.subr.mxu0 0.0
  %2307 = vmatpush1.msra.mxu0 0.0
  %2308 = vmatprep.subr.mxu0 0.0
  %2309 = vmatpush1.msra.mxu0 0.0
  %2310 = vmatprep.subr.mxu0 0.0
  %2311 = vmatpush1.msra.mxu0 0.0
  %2312 = vmatprep.subr.mxu0 0.0
  %2313 = vmatpush1.msra.mxu0 0.0
  %2314 = vmatprep.subr.mxu0 0.0
  %2315 = vmatpush1.msra.mxu0 0.0
  %2316 = vmatprep.subr.mxu0 0.0
  %2317 = vmatpush1.msra.mxu0 0.0
  %2318 = vmatprep.subr.mxu0 0.0
  %2319 = vmatpush1.msra.mxu0 0.0
  %2320 = vmatprep.subr.mxu0 0.0
  %2321 = vmatpush1.msra.mxu0 0.0
  %2322 = vmatprep.subr.mxu0 0.0
  %2323 = vmatpush1.msra.mxu0 0.0
  %2324 = vmatprep.subr.mxu0 0.0
  %2325 = vmatpush1.msra.mxu0 %v2292
  %2326 = vmatprep.subr.mxu0 0.0
  %2327 = vmatpush2.msra.mxu0 0.0
  %2328 = vmatprep.subr.mxu0 0.0
  %2329 = vmatpush2.msra.mxu0 0.0
  %2330 = vmatprep.subr.mxu0 0.0
  %2331 = vmatpush2.msra.mxu0 0.0
  %2332 = vmatprep.subr.mxu0 0.0
  %2333 = vmatpush2.msra.mxu0 0.0
  %2334 = vmatprep.subr.mxu0 0.0
  %2335 = vmatpush2.msra.mxu0 0.0
  %2336 = vmatprep.subr.mxu0 0.0
  %2337 = vmatpush2.msra.mxu0 0.0
  %2338 = vmatprep.subr.mxu0 0.0
  %2339 = vmatpush2.msra.mxu0 0.0
  %2340 = vmatprep.subr.mxu0 0.0
  %2341 = vmatpush2.msra.mxu0 0.0
  %2342 = vmatprep.subr.mxu0 0.0
  %2343 = vmatpush2.msra.mxu0 0.0
  %2344 = vmatprep.subr.mxu0 0.0
  %2345 = vmatpush2.msra.mxu0 0.0
  %2346 = vmatprep.subr.mxu0 0.0
  %2347 = vmatpush2.msra.mxu0 0.0
  %2348 = vmatprep.subr.mxu0 0.0
  %2349 = vmatpush2.msra.mxu0 0.0
  %2350 = vmatprep.subr.mxu0 0.0
  %2351 = vmatpush2.msra.mxu0 0.0
  %2352 = vmatprep.subr.mxu0 0.0
  %2353 = vmatpush2.msra.mxu0 0.0
  %2354 = vmatprep.subr.mxu0 0.0
  %2355 = vmatpush2.msra.mxu0 0.0
  %2356 = vmatprep.subr.mxu0 0.0
  %2357 = vmatpush2.msra.mxu0 0.0
  %2358 = vmatprep.mubr.f32.mxu0 0.0
  %2359 = vmatmul.mubr.f32.gmra.mxu0 %v2290
  %v2360 = vpop.f32.mrf.mxu0
  %v2361 = vadd.f32 0.0, %v2360
  %v2362 = vpop.f32.mrf.mxu0
  %2363 = vdwg.mxu0
  %2364 = vrot.lane.b32.xlu0 %v2198, 120
  %v2365 = vpop.permute.xlu0 %2364
  %2366 = vrot.lane.b32.xlu0 %v2198, 88
  %v2367 = vpop.permute.xlu0 %2366
  %v2368 = vsel %vm1510, %v2365, 0
  %v2370 = vsel %vm1510, %v2367, 0
  %2372 = vmatprep.subr.mxu0 0.0
  %2373 = vmatpush1.xpose.msra.mxu0 0.0
  %2374 = vmatprep.subr.mxu0 0.0
  %2375 = vmatpush1.xpose.msra.mxu0 0.0
  %2376 = vmatprep.subr.mxu0 0.0
  %2377 = vmatpush1.xpose.msra.mxu0 0.0
  %2378 = vmatprep.subr.mxu0 0.0
  %2379 = vmatpush1.xpose.msra.mxu0 0.0
  %2380 = vmatprep.subr.mxu0 0.0
  %2381 = vmatpush1.xpose.msra.mxu0 0.0
  %2382 = vmatprep.subr.mxu0 0.0
  %2383 = vmatpush1.xpose.msra.mxu0 0.0
  %2384 = vmatprep.subr.mxu0 0.0
  %2385 = vmatpush1.xpose.msra.mxu0 0.0
  %2386 = vmatprep.subr.mxu0 0.0
  %2387 = vmatpush1.xpose.msra.mxu0 0.0
  %2388 = vmatprep.subr.mxu0 0.0
  %2389 = vmatpush1.xpose.msra.mxu0 0.0
  %2390 = vmatprep.subr.mxu0 0.0
  %2391 = vmatpush1.xpose.msra.mxu0 0.0
  %2392 = vmatprep.subr.mxu0 0.0
  %2393 = vmatpush1.xpose.msra.mxu0 0.0
  %2394 = vmatprep.subr.mxu0 0.0
  %2395 = vmatpush1.xpose.msra.mxu0 0.0
  %2396 = vmatprep.subr.mxu0 0.0
  %2397 = vmatpush1.xpose.msra.mxu0 0.0
  %2398 = vmatprep.subr.mxu0 0.0
  %2399 = vmatpush1.xpose.msra.mxu0 0.0
  %2400 = vmatprep.subr.mxu0 0.0
  %2401 = vmatpush1.xpose.msra.mxu0 0.0
  %2402 = vmatprep.subr.mxu0 0.0
  %2403 = vmatpush1.xpose.msra.mxu0 %v2370
  %2404 = vmatprep.subr.mxu0 0.0
  %2405 = vmatpush2.xpose.msra.mxu0 0.0
  %2406 = vmatprep.subr.mxu0 0.0
  %2407 = vmatpush2.xpose.msra.mxu0 0.0
  %2408 = vmatprep.subr.mxu0 0.0
  %2409 = vmatpush2.xpose.msra.mxu0 0.0
  %2410 = vmatprep.subr.mxu0 0.0
  %2411 = vmatpush2.xpose.msra.mxu0 0.0
  %2412 = vmatprep.subr.mxu0 0.0
  %2413 = vmatpush2.xpose.msra.mxu0 0.0
  %2414 = vmatprep.subr.mxu0 0.0
  %2415 = vmatpush2.xpose.msra.mxu0 0.0
  %2416 = vmatprep.subr.mxu0 0.0
  %2417 = vmatpush2.xpose.msra.mxu0 0.0
  %2418 = vmatprep.subr.mxu0 0.0
  %2419 = vmatpush2.xpose.msra.mxu0 0.0
  %2420 = vmatprep.subr.mxu0 0.0
  %2421 = vmatpush2.xpose.msra.mxu0 0.0
  %2422 = vmatprep.subr.mxu0 0.0
  %2423 = vmatpush2.xpose.msra.mxu0 0.0
  %2424 = vmatprep.subr.mxu0 0.0
  %2425 = vmatpush2.xpose.msra.mxu0 0.0
  %2426 = vmatprep.subr.mxu0 0.0
  %2427 = vmatpush2.xpose.msra.mxu0 0.0
  %2428 = vmatprep.subr.mxu0 0.0
  %2429 = vmatpush2.xpose.msra.mxu0 0.0
  %2430 = vmatprep.subr.mxu0 0.0
  %2431 = vmatpush2.xpose.msra.mxu0 0.0
  %2432 = vmatprep.subr.mxu0 0.0
  %2433 = vmatpush2.xpose.msra.mxu0 0.0
  %2434 = vmatprep.subr.mxu0 0.0
  %2435 = vmatpush2.xpose.msra.mxu0 0.0
  %2436 = vmatprep.mubr.f32.mxu0 0.0
  %2437 = vmatmul.mubr.f32.gmra.mxu0 %v2368
  %v2438 = vpop.f32.mrf.mxu0
  %v2439 = vadd.f32 0.0, %v2438
  %v2440 = vpop.f32.mrf.mxu0
  %2441 = vdwg.mxu0
  %v2442 = vmul.f32 %v2439, 0.35355338
  %v2443 = vsel %vm1586, %v2442, -inf
  %2444 = vmax.xlane.f32.xlu0 %v2443
  %v2445 = vpop.xlane.xlu0 %2444
  %v2446 = vsub.f32 %v2442, %v2445
  %v2447 = vmul.f32 %v2446, 1.442695
  %v2448 = vpow.pop %v2447
  %v2449 = vsel %vm1586, %v2448, 0.0
  %2450 = vadd.xlane.f32.xlu0 %v2449
  %v2451 = vpop.xlane.xlu0 %2450
  %v2452 = vrcp.pop %v2451
  %v2453 = vmul.f32 %v2448, %v2452
  %2454 = vrot.lane.b32.xlu0 %v2198, 56
  %v2455 = vpop.permute.xlu0 %2454
  %v2457 = vsel %vm1600, %v2453, 0
  %v2459 = vsel %vm1322, %v2455, 0
  %2461 = vmatprep.subr.mxu0 0.0
  %2462 = vmatpush1.msra.mxu0 0.0
  %2463 = vmatprep.subr.mxu0 0.0
  %2464 = vmatpush1.msra.mxu0 0.0
  %2465 = vmatprep.subr.mxu0 0.0
  %2466 = vmatpush1.msra.mxu0 0.0
  %2467 = vmatprep.subr.mxu0 0.0
  %2468 = vmatpush1.msra.mxu0 0.0
  %2469 = vmatprep.subr.mxu0 0.0
  %2470 = vmatpush1.msra.mxu0 0.0
  %2471 = vmatprep.subr.mxu0 0.0
  %2472 = vmatpush1.msra.mxu0 0.0
  %2473 = vmatprep.subr.mxu0 0.0
  %2474 = vmatpush1.msra.mxu0 0.0
  %2475 = vmatprep.subr.mxu0 0.0
  %2476 = vmatpush1.msra.mxu0 0.0
  %2477 = vmatprep.subr.mxu0 0.0
  %2478 = vmatpush1.msra.mxu0 0.0
  %2479 = vmatprep.subr.mxu0 0.0
  %2480 = vmatpush1.msra.mxu0 0.0
  %2481 = vmatprep.subr.mxu0 0.0
  %2482 = vmatpush1.msra.mxu0 0.0
  %2483 = vmatprep.subr.mxu0 0.0
  %2484 = vmatpush1.msra.mxu0 0.0
  %2485 = vmatprep.subr.mxu0 0.0
  %2486 = vmatpush1.msra.mxu0 0.0
  %2487 = vmatprep.subr.mxu0 0.0
  %2488 = vmatpush1.msra.mxu0 0.0
  %2489 = vmatprep.subr.mxu0 0.0
  %2490 = vmatpush1.msra.mxu0 0.0
  %2491 = vmatprep.subr.mxu0 0.0
  %2492 = vmatpush1.msra.mxu0 %v2459
  %2493 = vmatprep.subr.mxu0 0.0
  %2494 = vmatpush2.msra.mxu0 0.0
  %2495 = vmatprep.subr.mxu0 0.0
  %2496 = vmatpush2.msra.mxu0 0.0
  %2497 = vmatprep.subr.mxu0 0.0
  %2498 = vmatpush2.msra.mxu0 0.0
  %2499 = vmatprep.subr.mxu0 0.0
  %2500 = vmatpush2.msra.mxu0 0.0
  %2501 = vmatprep.subr.mxu0 0.0
  %2502 = vmatpush2.msra.mxu0 0.0
  %2503 = vmatprep.subr.mxu0 0.0
  %2504 = vmatpush2.msra.mxu0 0.0
  %2505 = vmatprep.subr.mxu0 0.0
  %2506 = vmatpush2.msra.mxu0 0.0
  %2507 = vmatprep.subr.mxu0 0.0
  %2508 = vmatpush2.msra.mxu0 0.0
  %2509 = vmatprep.subr.mxu0 0.0
  %2510 = vmatpush2.msra.mxu0 0.0
  %2511 = vmatprep.subr.mxu0 0.0
  %2512 = vmatpush2.msra.mxu0 0.0
  %2513 = vmatprep.subr.mxu0 0.0
  %2514 = vmatpush2.msra.mxu0 0.0
  %2515 = vmatprep.subr.mxu0 0.0
  %2516 = vmatpush2.msra.mxu0 0.0
  %2517 = vmatprep.subr.mxu0 0.0
  %2518 = vmatpush2.msra.mxu0 0.0
  %2519 = vmatprep.subr.mxu0 0.0
  %2520 = vmatpush2.msra.mxu0 0.0
  %2521 = vmatprep.subr.mxu0 0.0
  %2522 = vmatpush2.msra.mxu0 0.0
  %2523 = vmatprep.subr.mxu0 0.0
  %2524 = vmatpush2.msra.mxu0 0.0
  %2525 = vmatprep.mubr.f32.mxu0 0.0
  %2526 = vmatmul.mubr.f32.gmra.mxu0 %v2457
  %v2527 = vpop.f32.mrf.mxu0
  %v2528 = vadd.f32 0.0, %v2527
  %v2529 = vpop.f32.mrf.mxu0
  %2530 = vdwg.mxu0
  %2531 = vrot.lane.b32.xlu0 %v2198, 112
  %v2532 = vpop.permute.xlu0 %2531
  %2533 = vrot.lane.b32.xlu0 %v2198, 80
  %v2534 = vpop.permute.xlu0 %2533
  %v2535 = vsel %vm1510, %v2532, 0
  %v2537 = vsel %vm1510, %v2534, 0
  %2539 = vmatprep.subr.mxu0 0.0
  %2540 = vmatpush1.xpose.msra.mxu0 0.0
  %2541 = vmatprep.subr.mxu0 0.0
  %2542 = vmatpush1.xpose.msra.mxu0 0.0
  %2543 = vmatprep.subr.mxu0 0.0
  %2544 = vmatpush1.xpose.msra.mxu0 0.0
  %2545 = vmatprep.subr.mxu0 0.0
  %2546 = vmatpush1.xpose.msra.mxu0 0.0
  %2547 = vmatprep.subr.mxu0 0.0
  %2548 = vmatpush1.xpose.msra.mxu0 0.0
  %2549 = vmatprep.subr.mxu0 0.0
  %2550 = vmatpush1.xpose.msra.mxu0 0.0
  %2551 = vmatprep.subr.mxu0 0.0
  %2552 = vmatpush1.xpose.msra.mxu0 0.0
  %2553 = vmatprep.subr.mxu0 0.0
  %2554 = vmatpush1.xpose.msra.mxu0 0.0
  %2555 = vmatprep.subr.mxu0 0.0
  %2556 = vmatpush1.xpose.msra.mxu0 0.0
  %2557 = vmatprep.subr.mxu0 0.0
  %2558 = vmatpush1.xpose.msra.mxu0 0.0
  %2559 = vmatprep.subr.mxu0 0.0
  %2560 = vmatpush1.xpose.msra.mxu0 0.0
  %2561 = vmatprep.subr.mxu0 0.0
  %2562 = vmatpush1.xpose.msra.mxu0 0.0
  %2563 = vmatprep.subr.mxu0 0.0
  %2564 = vmatpush1.xpose.msra.mxu0 0.0
  %2565 = vmatprep.subr.mxu0 0.0
  %2566 = vmatpush1.xpose.msra.mxu0 0.0
  %2567 = vmatprep.subr.mxu0 0.0
  %2568 = vmatpush1.xpose.msra.mxu0 0.0
  %2569 = vmatprep.subr.mxu0 0.0
  %2570 = vmatpush1.xpose.msra.mxu0 %v2537
  %2571 = vmatprep.subr.mxu0 0.0
  %2572 = vmatpush2.xpose.msra.mxu0 0.0
  %2573 = vmatprep.subr.mxu0 0.0
  %2574 = vmatpush2.xpose.msra.mxu0 0.0
  %2575 = vmatprep.subr.mxu0 0.0
  %2576 = vmatpush2.xpose.msra.mxu0 0.0
  %2577 = vmatprep.subr.mxu0 0.0
  %2578 = vmatpush2.xpose.msra.mxu0 0.0
  %2579 = vmatprep.subr.mxu0 0.0
  %2580 = vmatpush2.xpose.msra.mxu0 0.0
  %2581 = vmatprep.subr.mxu0 0.0
  %2582 = vmatpush2.xpose.msra.mxu0 0.0
  %2583 = vmatprep.subr.mxu0 0.0
  %2584 = vmatpush2.xpose.msra.mxu0 0.0
  %2585 = vmatprep.subr.mxu0 0.0
  %2586 = vmatpush2.xpose.msra.mxu0 0.0
  %2587 = vmatprep.subr.mxu0 0.0
  %2588 = vmatpush2.xpose.msra.mxu0 0.0
  %2589 = vmatprep.subr.mxu0 0.0
  %2590 = vmatpush2.xpose.msra.mxu0 0.0
  %2591 = vmatprep.subr.mxu0 0.0
  %2592 = vmatpush2.xpose.msra.mxu0 0.0
  %2593 = vmatprep.subr.mxu0 0.0
  %2594 = vmatpush2.xpose.msra.mxu0 0.0
  %2595 = vmatprep.subr.mxu0 0.0
  %2596 = vmatpush2.xpose.msra.mxu0 0.0
  %2597 = vmatprep.subr.mxu0 0.0
  %2598 = vmatpush2.xpose.msra.mxu0 0.0
  %2599 = vmatprep.subr.mxu0 0.0
  %2600 = vmatpush2.xpose.msra.mxu0 0.0
  %2601 = vmatprep.subr.mxu0 0.0
  %2602 = vmatpush2.xpose.msra.mxu0 0.0
  %2603 = vmatprep.mubr.f32.mxu0 0.0
  %2604 = vmatmul.mubr.f32.gmra.mxu0 %v2535
  %v2605 = vpop.f32.mrf.mxu0
  %v2606 = vadd.f32 0.0, %v2605
  %v2607 = vpop.f32.mrf.mxu0
  %2608 = vdwg.mxu0
  %v2609 = vmul.f32 %v2606, 0.35355338
  %v2610 = vsel %vm1586, %v2609, -inf
  %2611 = vmax.xlane.f32.xlu0 %v2610
  %v2612 = vpop.xlane.xlu0 %2611
  %v2613 = vsub.f32 %v2609, %v2612
  %v2614 = vmul.f32 %v2613, 1.442695
  %v2615 = vpow.pop %v2614
  %v2616 = vsel %vm1586, %v2615, 0.0
  %2617 = vadd.xlane.f32.xlu0 %v2616
  %v2618 = vpop.xlane.xlu0 %2617
  %v2619 = vrcp.pop %v2618
  %v2620 = vmul.f32 %v2615, %v2619
  %2621 = vrot.lane.b32.xlu0 %v2198, 48
  %v2622 = vpop.permute.xlu0 %2621
  %v2624 = vsel %vm1600, %v2620, 0
  %v2626 = vsel %vm1322, %v2622, 0
  %2628 = vmatprep.subr.mxu0 0.0
  %2629 = vmatpush1.msra.mxu0 0.0
  %2630 = vmatprep.subr.mxu0 0.0
  %2631 = vmatpush1.msra.mxu0 0.0
  %2632 = vmatprep.subr.mxu0 0.0
  %2633 = vmatpush1.msra.mxu0 0.0
  %2634 = vmatprep.subr.mxu0 0.0
  %2635 = vmatpush1.msra.mxu0 0.0
  %2636 = vmatprep.subr.mxu0 0.0
  %2637 = vmatpush1.msra.mxu0 0.0
  %2638 = vmatprep.subr.mxu0 0.0
  %2639 = vmatpush1.msra.mxu0 0.0
  %2640 = vmatprep.subr.mxu0 0.0
  %2641 = vmatpush1.msra.mxu0 0.0
  %2642 = vmatprep.subr.mxu0 0.0
  %2643 = vmatpush1.msra.mxu0 0.0
  %2644 = vmatprep.subr.mxu0 0.0
  %2645 = vmatpush1.msra.mxu0 0.0
  %2646 = vmatprep.subr.mxu0 0.0
  %2647 = vmatpush1.msra.mxu0 0.0
  %2648 = vmatprep.subr.mxu0 0.0
  %2649 = vmatpush1.msra.mxu0 0.0
  %2650 = vmatprep.subr.mxu0 0.0
  %2651 = vmatpush1.msra.mxu0 0.0
  %2652 = vmatprep.subr.mxu0 0.0
  %2653 = vmatpush1.msra.mxu0 0.0
  %2654 = vmatprep.subr.mxu0 0.0
  %2655 = vmatpush1.msra.mxu0 0.0
  %2656 = vmatprep.subr.mxu0 0.0
  %2657 = vmatpush1.msra.mxu0 0.0
  %2658 = vmatprep.subr.mxu0 0.0
  %2659 = vmatpush1.msra.mxu0 %v2626
  %2660 = vmatprep.subr.mxu0 0.0
  %2661 = vmatpush2.msra.mxu0 0.0
  %2662 = vmatprep.subr.mxu0 0.0
  %2663 = vmatpush2.msra.mxu0 0.0
  %2664 = vmatprep.subr.mxu0 0.0
  %2665 = vmatpush2.msra.mxu0 0.0
  %2666 = vmatprep.subr.mxu0 0.0
  %2667 = vmatpush2.msra.mxu0 0.0
  %2668 = vmatprep.subr.mxu0 0.0
  %2669 = vmatpush2.msra.mxu0 0.0
  %2670 = vmatprep.subr.mxu0 0.0
  %2671 = vmatpush2.msra.mxu0 0.0
  %2672 = vmatprep.subr.mxu0 0.0
  %2673 = vmatpush2.msra.mxu0 0.0
  %2674 = vmatprep.subr.mxu0 0.0
  %2675 = vmatpush2.msra.mxu0 0.0
  %2676 = vmatprep.subr.mxu0 0.0
  %2677 = vmatpush2.msra.mxu0 0.0
  %2678 = vmatprep.subr.mxu0 0.0
  %2679 = vmatpush2.msra.mxu0 0.0
  %2680 = vmatprep.subr.mxu0 0.0
  %2681 = vmatpush2.msra.mxu0 0.0
  %2682 = vmatprep.subr.mxu0 0.0
  %2683 = vmatpush2.msra.mxu0 0.0
  %2684 = vmatprep.subr.mxu0 0.0
  %2685 = vmatpush2.msra.mxu0 0.0
  %2686 = vmatprep.subr.mxu0 0.0
  %2687 = vmatpush2.msra.mxu0 0.0
  %2688 = vmatprep.subr.mxu0 0.0
  %2689 = vmatpush2.msra.mxu0 0.0
  %2690 = vmatprep.subr.mxu0 0.0
  %2691 = vmatpush2.msra.mxu0 0.0
  %2692 = vmatprep.mubr.f32.mxu0 0.0
  %2693 = vmatmul.mubr.f32.gmra.mxu0 %v2624
  %v2694 = vpop.f32.mrf.mxu0
  %v2695 = vadd.f32 0.0, %v2694
  %v2696 = vpop.f32.mrf.mxu0
  %2697 = vdwg.mxu0
  %2698 = vrot.lane.b32.xlu0 %v2198, 104
  %v2699 = vpop.permute.xlu0 %2698
  %2700 = vrot.lane.b32.xlu0 %v2198, 72
  %v2701 = vpop.permute.xlu0 %2700
  %v2702 = vsel %vm1510, %v2699, 0
  %v2704 = vsel %vm1510, %v2701, 0
  %2706 = vmatprep.subr.mxu0 0.0
  %2707 = vmatpush1.xpose.msra.mxu0 0.0
  %2708 = vmatprep.subr.mxu0 0.0
  %2709 = vmatpush1.xpose.msra.mxu0 0.0
  %2710 = vmatprep.subr.mxu0 0.0
  %2711 = vmatpush1.xpose.msra.mxu0 0.0
  %2712 = vmatprep.subr.mxu0 0.0
  %2713 = vmatpush1.xpose.msra.mxu0 0.0
  %2714 = vmatprep.subr.mxu0 0.0
  %2715 = vmatpush1.xpose.msra.mxu0 0.0
  %2716 = vmatprep.subr.mxu0 0.0
  %2717 = vmatpush1.xpose.msra.mxu0 0.0
  %2718 = vmatprep.subr.mxu0 0.0
  %2719 = vmatpush1.xpose.msra.mxu0 0.0
  %2720 = vmatprep.subr.mxu0 0.0
  %2721 = vmatpush1.xpose.msra.mxu0 0.0
  %2722 = vmatprep.subr.mxu0 0.0
  %2723 = vmatpush1.xpose.msra.mxu0 0.0
  %2724 = vmatprep.subr.mxu0 0.0
  %2725 = vmatpush1.xpose.msra.mxu0 0.0
  %2726 = vmatprep.subr.mxu0 0.0
  %2727 = vmatpush1.xpose.msra.mxu0 0.0
  %2728 = vmatprep.subr.mxu0 0.0
  %2729 = vmatpush1.xpose.msra.mxu0 0.0
  %2730 = vmatprep.subr.mxu0 0.0
  %2731 = vmatpush1.xpose.msra.mxu0 0.0
  %2732 = vmatprep.subr.mxu0 0.0
  %2733 = vmatpush1.xpose.msra.mxu0 0.0
  %2734 = vmatprep.subr.mxu0 0.0
  %2735 = vmatpush1.xpose.msra.mxu0 0.0
  %2736 = vmatprep.subr.mxu0 0.0
  %2737 = vmatpush1.xpose.msra.mxu0 %v2704
  %2738 = vmatprep.subr.mxu0 0.0
  %2739 = vmatpush2.xpose.msra.mxu0 0.0
  %2740 = vmatprep.subr.mxu0 0.0
  %2741 = vmatpush2.xpose.msra.mxu0 0.0
  %2742 = vmatprep.subr.mxu0 0.0
  %2743 = vmatpush2.xpose.msra.mxu0 0.0
  %2744 = vmatprep.subr.mxu0 0.0
  %2745 = vmatpush2.xpose.msra.mxu0 0.0
  %2746 = vmatprep.subr.mxu0 0.0
  %2747 = vmatpush2.xpose.msra.mxu0 0.0
  %2748 = vmatprep.subr.mxu0 0.0
  %2749 = vmatpush2.xpose.msra.mxu0 0.0
  %2750 = vmatprep.subr.mxu0 0.0
  %2751 = vmatpush2.xpose.msra.mxu0 0.0
  %2752 = vmatprep.subr.mxu0 0.0
  %2753 = vmatpush2.xpose.msra.mxu0 0.0
  %2754 = vmatprep.subr.mxu0 0.0
  %2755 = vmatpush2.xpose.msra.mxu0 0.0
  %2756 = vmatprep.subr.mxu0 0.0
  %2757 = vmatpush2.xpose.msra.mxu0 0.0
  %2758 = vmatprep.subr.mxu0 0.0
  %2759 = vmatpush2.xpose.msra.mxu0 0.0
  %2760 = vmatprep.subr.mxu0 0.0
  %2761 = vmatpush2.xpose.msra.mxu0 0.0
  %2762 = vmatprep.subr.mxu0 0.0
  %2763 = vmatpush2.xpose.msra.mxu0 0.0
  %2764 = vmatprep.subr.mxu0 0.0
  %2765 = vmatpush2.xpose.msra.mxu0 0.0
  %2766 = vmatprep.subr.mxu0 0.0
  %2767 = vmatpush2.xpose.msra.mxu0 0.0
  %2768 = vmatprep.subr.mxu0 0.0
  %2769 = vmatpush2.xpose.msra.mxu0 0.0
  %2770 = vmatprep.mubr.f32.mxu0 0.0
  %2771 = vmatmul.mubr.f32.gmra.mxu0 %v2702
  %v2772 = vpop.f32.mrf.mxu0
  %v2773 = vadd.f32 0.0, %v2772
  %v2774 = vpop.f32.mrf.mxu0
  %2775 = vdwg.mxu0
  %v2776 = vmul.f32 %v2773, 0.35355338
  %v2777 = vsel %vm1586, %v2776, -inf
  %2778 = vmax.xlane.f32.xlu0 %v2777
  %v2779 = vpop.xlane.xlu0 %2778
  %v2780 = vsub.f32 %v2776, %v2779
  %v2781 = vmul.f32 %v2780, 1.442695
  %v2782 = vpow.pop %v2781
  %v2783 = vsel %vm1586, %v2782, 0.0
  %2784 = vadd.xlane.f32.xlu0 %v2783
  %v2785 = vpop.xlane.xlu0 %2784
  %v2786 = vrcp.pop %v2785
  %v2787 = vmul.f32 %v2782, %v2786
  %2788 = vrot.lane.b32.xlu0 %v2198, 40
  %v2789 = vpop.permute.xlu0 %2788
  %v2791 = vsel %vm1600, %v2787, 0
  %v2793 = vsel %vm1322, %v2789, 0
  %2795 = vmatprep.subr.mxu0 0.0
  %2796 = vmatpush1.msra.mxu0 0.0
  %2797 = vmatprep.subr.mxu0 0.0
  %2798 = vmatpush1.msra.mxu0 0.0
  %2799 = vmatprep.subr.mxu0 0.0
  %2800 = vmatpush1.msra.mxu0 0.0
  %2801 = vmatprep.subr.mxu0 0.0
  %2802 = vmatpush1.msra.mxu0 0.0
  %2803 = vmatprep.subr.mxu0 0.0
  %2804 = vmatpush1.msra.mxu0 0.0
  %2805 = vmatprep.subr.mxu0 0.0
  %2806 = vmatpush1.msra.mxu0 0.0
  %2807 = vmatprep.subr.mxu0 0.0
  %2808 = vmatpush1.msra.mxu0 0.0
  %2809 = vmatprep.subr.mxu0 0.0
  %2810 = vmatpush1.msra.mxu0 0.0
  %2811 = vmatprep.subr.mxu0 0.0
  %2812 = vmatpush1.msra.mxu0 0.0
  %2813 = vmatprep.subr.mxu0 0.0
  %2814 = vmatpush1.msra.mxu0 0.0
  %2815 = vmatprep.subr.mxu0 0.0
  %2816 = vmatpush1.msra.mxu0 0.0
  %2817 = vmatprep.subr.mxu0 0.0
  %2818 = vmatpush1.msra.mxu0 0.0
  %2819 = vmatprep.subr.mxu0 0.0
  %2820 = vmatpush1.msra.mxu0 0.0
  %2821 = vmatprep.subr.mxu0 0.0
  %2822 = vmatpush1.msra.mxu0 0.0
  %2823 = vmatprep.subr.mxu0 0.0
  %2824 = vmatpush1.msra.mxu0 0.0
  %2825 = vmatprep.subr.mxu0 0.0
  %2826 = vmatpush1.msra.mxu0 %v2793
  %2827 = vmatprep.subr.mxu0 0.0
  %2828 = vmatpush2.msra.mxu0 0.0
  %2829 = vmatprep.subr.mxu0 0.0
  %2830 = vmatpush2.msra.mxu0 0.0
  %2831 = vmatprep.subr.mxu0 0.0
  %2832 = vmatpush2.msra.mxu0 0.0
  %2833 = vmatprep.subr.mxu0 0.0
  %2834 = vmatpush2.msra.mxu0 0.0
  %2835 = vmatprep.subr.mxu0 0.0
  %2836 = vmatpush2.msra.mxu0 0.0
  %2837 = vmatprep.subr.mxu0 0.0
  %2838 = vmatpush2.msra.mxu0 0.0
  %2839 = vmatprep.subr.mxu0 0.0
  %2840 = vmatpush2.msra.mxu0 0.0
  %2841 = vmatprep.subr.mxu0 0.0
  %2842 = vmatpush2.msra.mxu0 0.0
  %2843 = vmatprep.subr.mxu0 0.0
  %2844 = vmatpush2.msra.mxu0 0.0
  %2845 = vmatprep.subr.mxu0 0.0
  %2846 = vmatpush2.msra.mxu0 0.0
  %2847 = vmatprep.subr.mxu0 0.0
  %2848 = vmatpush2.msra.mxu0 0.0
  %2849 = vmatprep.subr.mxu0 0.0
  %2850 = vmatpush2.msra.mxu0 0.0
  %2851 = vmatprep.subr.mxu0 0.0
  %2852 = vmatpush2.msra.mxu0 0.0
  %2853 = vmatprep.subr.mxu0 0.0
  %2854 = vmatpush2.msra.mxu0 0.0
  %2855 = vmatprep.subr.mxu0 0.0
  %2856 = vmatpush2.msra.mxu0 0.0
  %2857 = vmatprep.subr.mxu0 0.0
  %2858 = vmatpush2.msra.mxu0 0.0
  %2859 = vmatprep.mubr.f32.mxu0 0.0
  %2860 = vmatmul.mubr.f32.gmra.mxu0 %v2791
  %v2861 = vpop.f32.mrf.mxu0
  %v2862 = vadd.f32 0.0, %v2861
  %v2863 = vpop.f32.mrf.mxu0
  %2864 = vdwg.mxu0
  %2866 = vrot.lane.b32.xlu0 %v2528, 8
  %v2867 = vpop.permute.xlu0 %2866
  %2870 = vrot.lane.b32.xlu0 %v2695, 16
  %v2871 = vpop.permute.xlu0 %2870
  %2874 = vrot.lane.b32.xlu0 %v2862, 24
  %v2875 = vpop.permute.xlu0 %2874
  %v2877 = vsel %vm1510, %v2361, %v2867
  %v2878 = vsel %vm2190, %v2877, %v2871
  %v2879 = vsel %vm2192, %v2878, %v2875
  %v2881 = vrot.slane %v2879, 3
  %v2883 = vsel %vm1322, %v2193, %v2881
  %v2884 = vld [vmem:[%s10] sm:$0xff]
  %v2885 = vld [vmem:[%s10 + $0x8] sm:$0xff]
  %v2886 = vld [vmem:[%s10 + $0x10] sm:$0xff]
  %v2887 = vld [vmem:[%s10 + $0x18] sm:$0xff]
  %v2889 = vsel %vm1326, %v2883, 0
  %v2891 = vsel %vm1326, %v2881, 0
  %2893 = vmatprep.subr.mxu0 0.0
  %2894 = vmatpush1.msra.mxu0 0.0
  %2895 = vmatprep.subr.mxu0 0.0
  %2896 = vmatpush1.msra.mxu0 0.0
  %2897 = vmatprep.subr.mxu0 0.0
  %2898 = vmatpush1.msra.mxu0 0.0
  %2899 = vmatprep.subr.mxu0 0.0
  %2900 = vmatpush1.msra.mxu0 0.0
  %2901 = vmatprep.subr.mxu0 0.0
  %2902 = vmatpush1.msra.mxu0 0.0
  %2903 = vmatprep.subr.mxu0 0.0
  %2904 = vmatpush1.msra.mxu0 0.0
  %2905 = vmatprep.subr.mxu0 0.0
  %2906 = vmatpush1.msra.mxu0 0.0
  %2907 = vmatprep.subr.mxu0 0.0
  %2908 = vmatpush1.msra.mxu0 0.0
  %2909 = vmatprep.subr.mxu0 0.0
  %2910 = vmatpush1.msra.mxu0 0.0
  %2911 = vmatprep.subr.mxu0 0.0
  %2912 = vmatpush1.msra.mxu0 0.0
  %2913 = vmatprep.subr.mxu0 0.0
  %2914 = vmatpush1.msra.mxu0 0.0
  %2915 = vmatprep.subr.mxu0 0.0
  %2916 = vmatpush1.msra.mxu0 0.0
  %2917 = vmatprep.subr.mxu0 0.0
  %2918 = vmatpush1.msra.mxu0 %v2887
  %2919 = vmatprep.subr.mxu0 0.0
  %2920 = vmatpush1.msra.mxu0 %v2886
  %2921 = vmatprep.subr.mxu0 0.0
  %2922 = vmatpush1.msra.mxu0 %v2885
  %2923 = vmatprep.subr.mxu0 0.0
  %2924 = vmatpush1.msra.mxu0 %v2884
  %2925 = vmatprep.subr.mxu0 0.0
  %2926 = vmatpush2.msra.mxu0 0.0
  %2927 = vmatprep.subr.mxu0 0.0
  %2928 = vmatpush2.msra.mxu0 0.0
  %2929 = vmatprep.subr.mxu0 0.0
  %2930 = vmatpush2.msra.mxu0 0.0
  %2931 = vmatprep.subr.mxu0 0.0
  %2932 = vmatpush2.msra.mxu0 0.0
  %2933 = vmatprep.subr.mxu0 0.0
  %2934 = vmatpush2.msra.mxu0 0.0
  %2935 = vmatprep.subr.mxu0 0.0
  %2936 = vmatpush2.msra.mxu0 0.0
  %2937 = vmatprep.subr.mxu0 0.0
  %2938 = vmatpush2.msra.mxu0 0.0
  %2939 = vmatprep.subr.mxu0 0.0
  %2940 = vmatpush2.msra.mxu0 0.0
  %2941 = vmatprep.subr.mxu0 0.0
  %2942 = vmatpush2.msra.mxu0 0.0
  %2943 = vmatprep.subr.mxu0 0.0
  %2944 = vmatpush2.msra.mxu0 0.0
  %2945 = vmatprep.subr.mxu0 0.0
  %2946 = vmatpush2.msra.mxu0 0.0
  %2947 = vmatprep.subr.mxu0 0.0
  %2948 = vmatpush2.msra.mxu0 0.0
  %2949 = vmatprep.subr.mxu0 0.0
  %2950 = vmatpush2.msra.mxu0 0.0
  %2951 = vmatprep.subr.mxu0 0.0
  %2952 = vmatpush2.msra.mxu0 0.0
  %2953 = vmatprep.subr.mxu0 0.0
  %2954 = vmatpush2.msra.mxu0 0.0
  %2955 = vmatprep.subr.mxu0 0.0
  %2956 = vmatpush2.msra.mxu0 0.0
  %2957 = vmatprep.mubr.f32.mxu0 0.0
  %2958 = vmatmul.mubr.f32.gmra.mxu0 %v2889
  %v2959 = vpop.f32.mrf.mxu0
  %v2960 = vadd.f32 0.0, %v2959
  %v2961 = vpop.f32.mrf.mxu0
  %2962 = vmatprep.mubr.f32.mxu0 0.0
  %2963 = vmatmul.mubr.f32.gmra.mxu0 %v2891
  %v2964 = vpop.f32.mrf.mxu0
  %v2965 = vadd.f32 0.0, %v2964
  %v2966 = vpop.f32.mrf.mxu0
  %2967 = vdwg.mxu0
  %v2968 = vadd.f32 %v1369, %v2960
  %v2969 = vadd.f32 %v1370, %v2965
  %v2970 = vld [vmem:[%s11] sm:$0x1]
  %v2972 = vlaneseq
  %v2973 = vshrl.u32 %v2972, 7
  %v2974 = vsub.s32 0, %v2973
  %v2975 = vrot.slane %v2970, %v2974
  %v2977 = vadd.f32 %v2968, %v2975
  %v2978 = vadd.f32 %v2969, %v2975
  %v2979 = vld [vmem:[%s12] sm:$0x1]
  %v2980 = vld [vmem:[%s13] sm:$0x1]
  %v2981 = vsel %vm1326, %v2977, 0.0
  %2982 = vadd.xlane.f32.xlu0 %v2981
  %v2983 = vpop.xlane.xlu0 %2982
  %v2984 = vsel %vm1330, %v2978, 0.0
  %2985 = vadd.xlane.f32.xlu0 %v2984
  %v2986 = vpop.xlane.xlu0 %2985
  %v2987 = vmul.f32 %v2983, %v1334
  %v2988 = vmul.f32 %v2986, %v1334
  %v2989 = vsub.f32 %v2977, %v2987
  %v2990 = vsub.f32 %v2978, %v2988
  %v2991 = vmul.f32 %v2989, %v2989
  %v2992 = vmul.f32 %v2990, %v2990
  %v2993 = vsel %vm1326, %v2991, 0.0
  %2994 = vadd.xlane.f32.xlu0 %v2993
  %v2995 = vpop.xlane.xlu0 %2994
  %v2996 = vsel %vm1330, %v2992, 0.0
  %2997 = vadd.xlane.f32.xlu0 %v2996
  %v2998 = vpop.xlane.xlu0 %2997
  %v2999 = vmul.f32 %v2995, %v1334
  %v3000 = vmul.f32 %v2998, %v1334
  %v3001 = vadd.f32 %v2999, 1e-05
  %v3002 = vadd.f32 %v3000, 1e-05
  %v3003 = vrsqrt.pop %v3001
  %v3004 = vrsqrt.pop %v3002
  %v3005 = vmul.f32 %v2989, %v3003
  %v3006 = vmul.f32 %v2990, %v3004
  %v3008 = vlaneseq
  %v3009 = vshrl.u32 %v3008, 7
  %v3010 = vsub.s32 0, %v3009
  %v3011 = vrot.slane %v2979, %v3010
  %v3013 = vmul.f32 %v3005, %v3011
  %v3014 = vmul.f32 %v3006, %v3011
  %v3016 = vlaneseq
  %v3017 = vshrl.u32 %v3016, 7
  %v3018 = vsub.s32 0, %v3017
  %v3019 = vrot.slane %v2980, %v3018
  %v3021 = vadd.f32 %v3013, %v3019
  %v3022 = vadd.f32 %v3014, %v3019
  %v3023 = vld [vmem:[%s14] sm:$0xff]
  %v3024 = vld [vmem:[%s14 + $0x8] sm:$0xff]
  %v3025 = vld [vmem:[%s14 + $0x10] sm:$0xff]
  %v3026 = vld [vmem:[%s14 + $0x18] sm:$0xff]
  %v3027 = vld [vmem:[%s15] sm:$0x1]
  %v3029 = vlaneseq
  %v3030 = vshrl.u32 %v3029, 7
  %v3031 = vsub.s32 0, %v3030
  %v3032 = vrot.slane %v3027, %v3031
  %v3035 = vsel %vm1326, %v3021, 0
  %v3038 = vsel %vm1326, %v3022, 0
  %3040 = vmatprep.subr.mxu0 0.0
  %3041 = vmatpush1.msra.mxu0 0.0
  %3042 = vmatprep.subr.mxu0 0.0
  %3043 = vmatpush1.msra.mxu0 0.0
  %3044 = vmatprep.subr.mxu0 0.0
  %3045 = vmatpush1.msra.mxu0 0.0
  %3046 = vmatprep.subr.mxu0 0.0
  %3047 = vmatpush1.msra.mxu0 0.0
  %3048 = vmatprep.subr.mxu0 0.0
  %3049 = vmatpush1.msra.mxu0 0.0
  %3050 = vmatprep.subr.mxu0 0.0
  %3051 = vmatpush1.msra.mxu0 0.0
  %3052 = vmatprep.subr.mxu0 0.0
  %3053 = vmatpush1.msra.mxu0 0.0
  %3054 = vmatprep.subr.mxu0 0.0
  %3055 = vmatpush1.msra.mxu0 0.0
  %3056 = vmatprep.subr.mxu0 0.0
  %3057 = vmatpush1.msra.mxu0 0.0
  %3058 = vmatprep.subr.mxu0 0.0
  %3059 = vmatpush1.msra.mxu0 0.0
  %3060 = vmatprep.subr.mxu0 0.0
  %3061 = vmatpush1.msra.mxu0 0.0
  %3062 = vmatprep.subr.mxu0 0.0
  %3063 = vmatpush1.msra.mxu0 0.0
  %3064 = vmatprep.subr.mxu0 0.0
  %3065 = vmatpush1.msra.mxu0 %v3026
  %3066 = vmatprep.subr.mxu0 0.0
  %3067 = vmatpush1.msra.mxu0 %v3025
  %3068 = vmatprep.subr.mxu0 0.0
  %3069 = vmatpush1.msra.mxu0 %v3024
  %3070 = vmatprep.subr.mxu0 0.0
  %3071 = vmatpush1.msra.mxu0 %v3023
  %3072 = vmatprep.subr.mxu0 0.0
  %3073 = vmatpush2.msra.mxu0 0.0
  %3074 = vmatprep.subr.mxu0 0.0
  %3075 = vmatpush2.msra.mxu0 0.0
  %3076 = vmatprep.subr.mxu0 0.0
  %3077 = vmatpush2.msra.mxu0 0.0
  %3078 = vmatprep.subr.mxu0 0.0
  %3079 = vmatpush2.msra.mxu0 0.0
  %3080 = vmatprep.subr.mxu0 0.0
  %3081 = vmatpush2.msra.mxu0 0.0
  %3082 = vmatprep.subr.mxu0 0.0
  %3083 = vmatpush2.msra.mxu0 0.0
  %3084 = vmatprep.subr.mxu0 0.0
  %3085 = vmatpush2.msra.mxu0 0.0
  %3086 = vmatprep.subr.mxu0 0.0
  %3087 = vmatpush2.msra.mxu0 0.0
  %3088 = vmatprep.subr.mxu0 0.0
  %3089 = vmatpush2.msra.mxu0 0.0
  %3090 = vmatprep.subr.mxu0 0.0
  %3091 = vmatpush2.msra.mxu0 0.0
  %3092 = vmatprep.subr.mxu0 0.0
  %3093 = vmatpush2.msra.mxu0 0.0
  %3094 = vmatprep.subr.mxu0 0.0
  %3095 = vmatpush2.msra.mxu0 0.0
  %3096 = vmatprep.subr.mxu0 0.0
  %3097 = vmatpush2.msra.mxu0 0.0
  %3098 = vmatprep.subr.mxu0 0.0
  %3099 = vmatpush2.msra.mxu0 0.0
  %3100 = vmatprep.subr.mxu0 0.0
  %3101 = vmatpush2.msra.mxu0 0.0
  %3102 = vmatprep.subr.mxu0 0.0
  %3103 = vmatpush2.msra.mxu0 0.0
  %3104 = vmatprep.mubr.f32.mxu0 0.0
  %3105 = vmatmul.mubr.f32.gmra.mxu0 %v3035
  %v3106 = vpop.f32.mrf.mxu0
  %v3107 = vadd.f32 %v3032, %v3106
  %v3108 = vpop.f32.mrf.mxu0
  %3109 = vmatprep.mubr.f32.mxu0 0.0
  %3110 = vmatmul.mubr.f32.gmra.mxu0 %v3038
  %v3111 = vpop.f32.mrf.mxu0
  %v3112 = vadd.f32 %v3032, %v3111
  %v3113 = vpop.f32.mrf.mxu0
  %3114 = vdwg.mxu0
  %v3115 = vmul.f32 %v3107, 1.702
  %v3116 = vmul.f32 %v3112, 1.702
  %v3117 = vxor.u32 %v3115, 2147483648
  %v3118 = vxor.u32 %v3116, 2147483648
  %v3119 = vmul.f32 %v3117, 1.442695
  %v3120 = vpow.pop %v3119
  %v3121 = vmul.f32 %v3118, 1.442695
  %v3122 = vpow.pop %v3121
  %v3123 = vadd.f32 %v3120, 1.0
  %v3124 = vadd.f32 %v3122, 1.0
  %v3125 = vrcp.pop %v3123
  %v3126 = vmul.f32 1.0, %v3125
  %v3127 = vrcp.pop %v3124
  %v3128 = vmul.f32 1.0, %v3127
  %v3129 = vmul.f32 %v3107, %v3126
  %v3130 = vmul.f32 %v3112, %v3128
  %v3131 = vld [vmem:[%s16] sm:$0xff]
  %v3132 = vld [vmem:[%s16 + $0x8] sm:$0xff]
  %v3133 = vld [vmem:[%s16 + $0x10] sm:$0xff]
  %v3134 = vld [vmem:[%s16 + $0x18] sm:$0xff]
  %v3135 = vld [vmem:[%s16 + $0x20] sm:$0xff]
  %v3136 = vld [vmem:[%s16 + $0x28] sm:$0xff]
  %v3137 = vld [vmem:[%s16 + $0x30] sm:$0xff]
  %v3138 = vld [vmem:[%s16 + $0x38] sm:$0xff]
  %v3139 = vld [vmem:[%s16 + $0x40] sm:$0xff]
  %v3140 = vld [vmem:[%s16 + $0x48] sm:$0xff]
  %v3141 = vld [vmem:[%s16 + $0x50] sm:$0xff]
  %v3142 = vld [vmem:[%s16 + $0x58] sm:$0xff]
  %v3143 = vld [vmem:[%s16 + $0x60] sm:$0xff]
  %v3144 = vld [vmem:[%s16 + $0x68] sm:$0xff]
  %v3145 = vld [vmem:[%s16 + $0x70] sm:$0xff]
  %v3146 = vld [vmem:[%s16 + $0x78] sm:$0xff]
  %3147 = vmatprep.subr.mxu0 0.0
  %3148 = vmatpush1.msra.mxu0 %v3146
  %3149 = vmatprep.subr.mxu0 0.0
  %3150 = vmatpush1.msra.mxu0 %v3145
  %3151 = vmatprep.subr.mxu0 0.0
  %3152 = vmatpush1.msra.mxu0 %v3144
  %3153 = vmatprep.subr.mxu0 0.0
  %3154 = vmatpush1.msra.mxu0 %v3143
  %3155 = vmatprep.subr.mxu0 0.0
  %3156 = vmatpush1.msra.mxu0 %v3142
  %3157 = vmatprep.subr.mxu0 0.0
  %3158 = vmatpush1.msra.mxu0 %v3141
  %3159 = vmatprep.subr.mxu0 0.0
  %3160 = vmatpush1.msra.mxu0 %v3140
  %3161 = vmatprep.subr.mxu0 0.0
  %3162 = vmatpush1.msra.mxu0 %v3139
  %3163 = vmatprep.subr.mxu0 0.0
  %3164 = vmatpush1.msra.mxu0 %v3138
  %3165 = vmatprep.subr.mxu0 0.0
  %3166 = vmatpush1.msra.mxu0 %v3137
  %3167 = vmatprep.subr.mxu0 0.0
  %3168 = vmatpush1.msra.mxu0 %v3136
  %3169 = vmatprep.subr.mxu0 0.0
  %3170 = vmatpush1.msra.mxu0 %v3135
  %3171 = vmatprep.subr.mxu0 0.0
  %3172 = vmatpush1.msra.mxu0 %v3134
  %3173 = vmatprep.subr.mxu0 0.0
  %3174 = vmatpush1.msra.mxu0 %v3133
  %3175 = vmatprep.subr.mxu0 0.0
  %3176 = vmatpush1.msra.mxu0 %v3132
  %3177 = vmatprep.subr.mxu0 0.0
  %3178 = vmatpush1.msra.mxu0 %v3131
  %3179 = vmatprep.subr.mxu0 0.0
  %3180 = vmatpush2.msra.mxu0 0.0
  %3181 = vmatprep.subr.mxu0 0.0
  %3182 = vmatpush2.msra.mxu0 0.0
  %3183 = vmatprep.subr.mxu0 0.0
  %3184 = vmatpush2.msra.mxu0 0.0
  %3185 = vmatprep.subr.mxu0 0.0
  %3186 = vmatpush2.msra.mxu0 0.0
  %3187 = vmatprep.subr.mxu0 0.0
  %3188 = vmatpush2.msra.mxu0 0.0
  %3189 = vmatprep.subr.mxu0 0.0
  %3190 = vmatpush2.msra.mxu0 0.0
  %3191 = vmatprep.subr.mxu0 0.0
  %3192 = vmatpush2.msra.mxu0 0.0
  %3193 = vmatprep.subr.mxu0 0.0
  %3194 = vmatpush2.msra.mxu0 0.0
  %3195 = vmatprep.subr.mxu0 0.0
  %3196 = vmatpush2.msra.mxu0 0.0
  %3197 = vmatprep.subr.mxu0 0.0
  %3198 = vmatpush2.msra.mxu0 0.0
  %3199 = vmatprep.subr.mxu0 0.0
  %3200 = vmatpush2.msra.mxu0 0.0
  %3201 = vmatprep.subr.mxu0 0.0
  %3202 = vmatpush2.msra.mxu0 0.0
  %3203 = vmatprep.subr.mxu0 0.0
  %3204 = vmatpush2.msra.mxu0 0.0
  %3205 = vmatprep.subr.mxu0 0.0
  %3206 = vmatpush2.msra.mxu0 0.0
  %3207 = vmatprep.subr.mxu0 0.0
  %3208 = vmatpush2.msra.mxu0 0.0
  %3209 = vmatprep.subr.mxu0 0.0
  %3210 = vmatpush2.msra.mxu0 0.0
  %3211 = vmatprep.mubr.f32.mxu0 0.0
  %3212 = vmatmul.mubr.f32.gmra.mxu0 %v3129
  %v3213 = vpop.f32.mrf.mxu0
  %v3214 = vadd.f32 0.0, %v3213
  %v3215 = vpop.f32.mrf.mxu0
  %3216 = vmatprep.mubr.f32.mxu0 0.0
  %3217 = vmatmul.mubr.f32.gmra.mxu0 %v3130
  %v3218 = vpop.f32.mrf.mxu0
  %v3219 = vadd.f32 0.0, %v3218
  %v3220 = vpop.f32.mrf.mxu0
  %3221 = vdwg.mxu0
  %v3222 = vadd.f32 %v2977, %v3214
  %v3223 = vadd.f32 %v2978, %v3219
  %v3224 = vld [vmem:[%s17] sm:$0x1]
  %v3226 = vlaneseq
  %v3227 = vshrl.u32 %v3226, 7
  %v3228 = vsub.s32 0, %v3227
  %v3229 = vrot.slane %v3224, %v3228
  %v3231 = vadd.f32 %v3222, %v3229
  %v3232 = vadd.f32 %v3223, %v3229
  %s3233 = scalar_lea.vmem %s6, 1
  %v3234 = vld [vmem:[%s3233] sm:$0x1]
  %s3235 = scalar_lea.vmem %s7, 1
  %v3236 = vld [vmem:[%s3235] sm:$0x1]
  %v3237 = vsel %vm1326, %v3231, 0.0
  %3238 = vadd.xlane.f32.xlu0 %v3237
  %v3239 = vpop.xlane.xlu0 %3238
  %v3240 = vsel %vm1330, %v3232, 0.0
  %3241 = vadd.xlane.f32.xlu0 %v3240
  %v3242 = vpop.xlane.xlu0 %3241
  %v3243 = vmul.f32 %v3239, %v1334
  %v3244 = vmul.f32 %v3242, %v1334
  %v3245 = vsub.f32 %v3231, %v3243
  %v3246 = vsub.f32 %v3232, %v3244
  %v3247 = vmul.f32 %v3245, %v3245
  %v3248 = vmul.f32 %v3246, %v3246
  %v3249 = vsel %vm1326, %v3247, 0.0
  %3250 = vadd.xlane.f32.xlu0 %v3249
  %v3251 = vpop.xlane.xlu0 %3250
  %v3252 = vsel %vm1330, %v3248, 0.0
  %3253 = vadd.xlane.f32.xlu0 %v3252
  %v3254 = vpop.xlane.xlu0 %3253
  %v3255 = vmul.f32 %v3251, %v1334
  %v3256 = vmul.f32 %v3254, %v1334
  %v3257 = vadd.f32 %v3255, 1e-05
  %v3258 = vadd.f32 %v3256, 1e-05
  %v3259 = vrsqrt.pop %v3257
  %v3260 = vrsqrt.pop %v3258
  %v3261 = vmul.f32 %v3245, %v3259
  %v3262 = vmul.f32 %v3246, %v3260
  %v3264 = vlaneseq
  %v3265 = vshrl.u32 %v3264, 7
  %v3266 = vsub.s32 0, %v3265
  %v3267 = vrot.slane %v3234, %v3266
  %v3269 = vmul.f32 %v3261, %v3267
  %v3270 = vmul.f32 %v3262, %v3267
  %v3272 = vlaneseq
  %v3273 = vshrl.u32 %v3272, 7
  %v3274 = vsub.s32 0, %v3273
  %v3275 = vrot.slane %v3236, %v3274
  %v3277 = vadd.f32 %v3269, %v3275
  %v3278 = vadd.f32 %v3270, %v3275
  %s3279 = scalar_lea.vmem %s8, 32
  %v3280 = vld [vmem:[%s3279] sm:$0xff]
  %v3281 = vld [vmem:[%s3279 + $0x8] sm:$0xff]
  %v3282 = vld [vmem:[%s3279 + $0x10] sm:$0xff]
  %v3283 = vld [vmem:[%s3279 + $0x18] sm:$0xff]
  %s3284 = scalar_lea.vmem %s9, 1
  %v3285 = vld [vmem:[%s3284] sm:$0x1]
  %v3287 = vlaneseq
  %v3288 = vshrl.u32 %v3287, 7
  %v3289 = vsub.s32 0, %v3288
  %v3290 = vrot.slane %v3285, %v3289
  %v3293 = vsel %vm1326, %v3277, 0
  %v3296 = vsel %vm1326, %v3278, 0
  %3298 = vmatprep.subr.mxu0 0.0
  %3299 = vmatpush1.msra.mxu0 0.0
  %3300 = vmatprep.subr.mxu0 0.0
  %3301 = vmatpush1.msra.mxu0 0.0
  %3302 = vmatprep.subr.mxu0 0.0
  %3303 = vmatpush1.msra.mxu0 0.0
  %3304 = vmatprep.subr.mxu0 0.0
  %3305 = vmatpush1.msra.mxu0 0.0
  %3306 = vmatprep.subr.mxu0 0.0
  %3307 = vmatpush1.msra.mxu0 0.0
  %3308 = vmatprep.subr.mxu0 0.0
  %3309 = vmatpush1.msra.mxu0 0.0
  %3310 = vmatprep.subr.mxu0 0.0
  %3311 = vmatpush1.msra.mxu0 0.0
  %3312 = vmatprep.subr.mxu0 0.0
  %3313 = vmatpush1.msra.mxu0 0.0
  %3314 = vmatprep.subr.mxu0 0.0
  %3315 = vmatpush1.msra.mxu0 0.0
  %3316 = vmatprep.subr.mxu0 0.0
  %3317 = vmatpush1.msra.mxu0 0.0
  %3318 = vmatprep.subr.mxu0 0.0
  %3319 = vmatpush1.msra.mxu0 0.0
  %3320 = vmatprep.subr.mxu0 0.0
  %3321 = vmatpush1.msra.mxu0 0.0
  %3322 = vmatprep.subr.mxu0 0.0
  %3323 = vmatpush1.msra.mxu0 %v3283
  %3324 = vmatprep.subr.mxu0 0.0
  %3325 = vmatpush1.msra.mxu0 %v3282
  %3326 = vmatprep.subr.mxu0 0.0
  %3327 = vmatpush1.msra.mxu0 %v3281
  %3328 = vmatprep.subr.mxu0 0.0
  %3329 = vmatpush1.msra.mxu0 %v3280
  %3330 = vmatprep.subr.mxu0 0.0
  %3331 = vmatpush2.msra.mxu0 0.0
  %3332 = vmatprep.subr.mxu0 0.0
  %3333 = vmatpush2.msra.mxu0 0.0
  %3334 = vmatprep.subr.mxu0 0.0
  %3335 = vmatpush2.msra.mxu0 0.0
  %3336 = vmatprep.subr.mxu0 0.0
  %3337 = vmatpush2.msra.mxu0 0.0
  %3338 = vmatprep.subr.mxu0 0.0
  %3339 = vmatpush2.msra.mxu0 0.0
  %3340 = vmatprep.subr.mxu0 0.0
  %3341 = vmatpush2.msra.mxu0 0.0
  %3342 = vmatprep.subr.mxu0 0.0
  %3343 = vmatpush2.msra.mxu0 0.0
  %3344 = vmatprep.subr.mxu0 0.0
  %3345 = vmatpush2.msra.mxu0 0.0
  %3346 = vmatprep.subr.mxu0 0.0
  %3347 = vmatpush2.msra.mxu0 0.0
  %3348 = vmatprep.subr.mxu0 0.0
  %3349 = vmatpush2.msra.mxu0 0.0
  %3350 = vmatprep.subr.mxu0 0.0
  %3351 = vmatpush2.msra.mxu0 0.0
  %3352 = vmatprep.subr.mxu0 0.0
  %3353 = vmatpush2.msra.mxu0 0.0
  %3354 = vmatprep.subr.mxu0 0.0
  %3355 = vmatpush2.msra.mxu0 0.0
  %3356 = vmatprep.subr.mxu0 0.0
  %3357 = vmatpush2.msra.mxu0 0.0
  %3358 = vmatprep.subr.mxu0 0.0
  %3359 = vmatpush2.msra.mxu0 0.0
  %3360 = vmatprep.subr.mxu0 0.0
  %3361 = vmatpush2.msra.mxu0 0.0
  %3362 = vmatprep.mubr.f32.mxu0 0.0
  %3363 = vmatmul.mubr.f32.gmra.mxu0 %v3293
  %v3364 = vpop.f32.mrf.mxu0
  %v3365 = vadd.f32 %v3290, %v3364
  %v3366 = vpop.f32.mrf.mxu0
  %3367 = vmatprep.mubr.f32.mxu0 0.0
  %3368 = vmatmul.mubr.f32.gmra.mxu0 %v3296
  %v3369 = vpop.f32.mrf.mxu0
  %v3370 = vadd.f32 %v3290, %v3369
  %v3371 = vpop.f32.mrf.mxu0
  %3372 = vdwg.mxu0
  %3374 = vrot.lane.b32.xlu0 %v3365, 96
  %v3375 = vpop.permute.xlu0 %3374
  %v3376 = vsel %vm1510, %v3365, 0
  %v3378 = vsel %vm1510, %v3375, 0
  %3380 = vmatprep.subr.mxu0 0.0
  %3381 = vmatpush1.xpose.msra.mxu0 0.0
  %3382 = vmatprep.subr.mxu0 0.0
  %3383 = vmatpush1.xpose.msra.mxu0 0.0
  %3384 = vmatprep.subr.mxu0 0.0
  %3385 = vmatpush1.xpose.msra.mxu0 0.0
  %3386 = vmatprep.subr.mxu0 0.0
  %3387 = vmatpush1.xpose.msra.mxu0 0.0
  %3388 = vmatprep.subr.mxu0 0.0
  %3389 = vmatpush1.xpose.msra.mxu0 0.0
  %3390 = vmatprep.subr.mxu0 0.0
  %3391 = vmatpush1.xpose.msra.mxu0 0.0
  %3392 = vmatprep.subr.mxu0 0.0
  %3393 = vmatpush1.xpose.msra.mxu0 0.0
  %3394 = vmatprep.subr.mxu0 0.0
  %3395 = vmatpush1.xpose.msra.mxu0 0.0
  %3396 = vmatprep.subr.mxu0 0.0
  %3397 = vmatpush1.xpose.msra.mxu0 0.0
  %3398 = vmatprep.subr.mxu0 0.0
  %3399 = vmatpush1.xpose.msra.mxu0 0.0
  %3400 = vmatprep.subr.mxu0 0.0
  %3401 = vmatpush1.xpose.msra.mxu0 0.0
  %3402 = vmatprep.subr.mxu0 0.0
  %3403 = vmatpush1.xpose.msra.mxu0 0.0
  %3404 = vmatprep.subr.mxu0 0.0
  %3405 = vmatpush1.xpose.msra.mxu0 0.0
  %3406 = vmatprep.subr.mxu0 0.0
  %3407 = vmatpush1.xpose.msra.mxu0 0.0
  %3408 = vmatprep.subr.mxu0 0.0
  %3409 = vmatpush1.xpose.msra.mxu0 0.0
  %3410 = vmatprep.subr.mxu0 0.0
  %3411 = vmatpush1.xpose.msra.mxu0 %v3378
  %3412 = vmatprep.subr.mxu0 0.0
  %3413 = vmatpush2.xpose.msra.mxu0 0.0
  %3414 = vmatprep.subr.mxu0 0.0
  %3415 = vmatpush2.xpose.msra.mxu0 0.0
  %3416 = vmatprep.subr.mxu0 0.0
  %3417 = vmatpush2.xpose.msra.mxu0 0.0
  %3418 = vmatprep.subr.mxu0 0.0
  %3419 = vmatpush2.xpose.msra.mxu0 0.0
  %3420 = vmatprep.subr.mxu0 0.0
  %3421 = vmatpush2.xpose.msra.mxu0 0.0
  %3422 = vmatprep.subr.mxu0 0.0
  %3423 = vmatpush2.xpose.msra.mxu0 0.0
  %3424 = vmatprep.subr.mxu0 0.0
  %3425 = vmatpush2.xpose.msra.mxu0 0.0
  %3426 = vmatprep.subr.mxu0 0.0
  %3427 = vmatpush2.xpose.msra.mxu0 0.0
  %3428 = vmatprep.subr.mxu0 0.0
  %3429 = vmatpush2.xpose.msra.mxu0 0.0
  %3430 = vmatprep.subr.mxu0 0.0
  %3431 = vmatpush2.xpose.msra.mxu0 0.0
  %3432 = vmatprep.subr.mxu0 0.0
  %3433 = vmatpush2.xpose.msra.mxu0 0.0
  %3434 = vmatprep.subr.mxu0 0.0
  %3435 = vmatpush2.xpose.msra.mxu0 0.0
  %3436 = vmatprep.subr.mxu0 0.0
  %3437 = vmatpush2.xpose.msra.mxu0 0.0
  %3438 = vmatprep.subr.mxu0 0.0
  %3439 = vmatpush2.xpose.msra.mxu0 0.0
  %3440 = vmatprep.subr.mxu0 0.0
  %3441 = vmatpush2.xpose.msra.mxu0 0.0
  %3442 = vmatprep.subr.mxu0 0.0
  %3443 = vmatpush2.xpose.msra.mxu0 0.0
  %3444 = vmatprep.mubr.f32.mxu0 0.0
  %3445 = vmatmul.mubr.f32.gmra.mxu0 %v3376
  %v3446 = vpop.f32.mrf.mxu0
  %v3447 = vadd.f32 0.0, %v3446
  %v3448 = vpop.f32.mrf.mxu0
  %3449 = vdwg.mxu0
  %v3450 = vmul.f32 %v3447, 0.35355338
  %v3451 = vsel %vm1586, %v3450, -inf
  %3452 = vmax.xlane.f32.xlu0 %v3451
  %v3453 = vpop.xlane.xlu0 %3452
  %v3454 = vsub.f32 %v3450, %v3453
  %v3455 = vmul.f32 %v3454, 1.442695
  %v3456 = vpow.pop %v3455
  %v3457 = vsel %vm1586, %v3456, 0.0
  %3458 = vadd.xlane.f32.xlu0 %v3457
  %v3459 = vpop.xlane.xlu0 %3458
  %v3460 = vrcp.pop %v3459
  %v3461 = vmul.f32 %v3456, %v3460
  %3462 = vrot.lane.b32.xlu0 %v3365, 64
  %v3463 = vpop.permute.xlu0 %3462
  %v3465 = vsel %vm1600, %v3461, 0
  %v3467 = vsel %vm1322, %v3463, 0
  %3469 = vmatprep.subr.mxu0 0.0
  %3470 = vmatpush1.msra.mxu0 0.0
  %3471 = vmatprep.subr.mxu0 0.0
  %3472 = vmatpush1.msra.mxu0 0.0
  %3473 = vmatprep.subr.mxu0 0.0
  %3474 = vmatpush1.msra.mxu0 0.0
  %3475 = vmatprep.subr.mxu0 0.0
  %3476 = vmatpush1.msra.mxu0 0.0
  %3477 = vmatprep.subr.mxu0 0.0
  %3478 = vmatpush1.msra.mxu0 0.0
  %3479 = vmatprep.subr.mxu0 0.0
  %3480 = vmatpush1.msra.mxu0 0.0
  %3481 = vmatprep.subr.mxu0 0.0
  %3482 = vmatpush1.msra.mxu0 0.0
  %3483 = vmatprep.subr.mxu0 0.0
  %3484 = vmatpush1.msra.mxu0 0.0
  %3485 = vmatprep.subr.mxu0 0.0
  %3486 = vmatpush1.msra.mxu0 0.0
  %3487 = vmatprep.subr.mxu0 0.0
  %3488 = vmatpush1.msra.mxu0 0.0
  %3489 = vmatprep.subr.mxu0 0.0
  %3490 = vmatpush1.msra.mxu0 0.0
  %3491 = vmatprep.subr.mxu0 0.0
  %3492 = vmatpush1.msra.mxu0 0.0
  %3493 = vmatprep.subr.mxu0 0.0
  %3494 = vmatpush1.msra.mxu0 0.0
  %3495 = vmatprep.subr.mxu0 0.0
  %3496 = vmatpush1.msra.mxu0 0.0
  %3497 = vmatprep.subr.mxu0 0.0
  %3498 = vmatpush1.msra.mxu0 0.0
  %3499 = vmatprep.subr.mxu0 0.0
  %3500 = vmatpush1.msra.mxu0 %v3467
  %3501 = vmatprep.subr.mxu0 0.0
  %3502 = vmatpush2.msra.mxu0 0.0
  %3503 = vmatprep.subr.mxu0 0.0
  %3504 = vmatpush2.msra.mxu0 0.0
  %3505 = vmatprep.subr.mxu0 0.0
  %3506 = vmatpush2.msra.mxu0 0.0
  %3507 = vmatprep.subr.mxu0 0.0
  %3508 = vmatpush2.msra.mxu0 0.0
  %3509 = vmatprep.subr.mxu0 0.0
  %3510 = vmatpush2.msra.mxu0 0.0
  %3511 = vmatprep.subr.mxu0 0.0
  %3512 = vmatpush2.msra.mxu0 0.0
  %3513 = vmatprep.subr.mxu0 0.0
  %3514 = vmatpush2.msra.mxu0 0.0
  %3515 = vmatprep.subr.mxu0 0.0
  %3516 = vmatpush2.msra.mxu0 0.0
  %3517 = vmatprep.subr.mxu0 0.0
  %3518 = vmatpush2.msra.mxu0 0.0
  %3519 = vmatprep.subr.mxu0 0.0
  %3520 = vmatpush2.msra.mxu0 0.0
  %3521 = vmatprep.subr.mxu0 0.0
  %3522 = vmatpush2.msra.mxu0 0.0
  %3523 = vmatprep.subr.mxu0 0.0
  %3524 = vmatpush2.msra.mxu0 0.0
  %3525 = vmatprep.subr.mxu0 0.0
  %3526 = vmatpush2.msra.mxu0 0.0
  %3527 = vmatprep.subr.mxu0 0.0
  %3528 = vmatpush2.msra.mxu0 0.0
  %3529 = vmatprep.subr.mxu0 0.0
  %3530 = vmatpush2.msra.mxu0 0.0
  %3531 = vmatprep.subr.mxu0 0.0
  %3532 = vmatpush2.msra.mxu0 0.0
  %3533 = vmatprep.mubr.f32.mxu0 0.0
  %3534 = vmatmul.mubr.f32.gmra.mxu0 %v3465
  %v3535 = vpop.f32.mrf.mxu0
  %v3536 = vadd.f32 0.0, %v3535
  %v3537 = vpop.f32.mrf.mxu0
  %3538 = vdwg.mxu0
  %3539 = vrot.lane.b32.xlu0 %v3365, 120
  %v3540 = vpop.permute.xlu0 %3539
  %3541 = vrot.lane.b32.xlu0 %v3365, 88
  %v3542 = vpop.permute.xlu0 %3541
  %v3543 = vsel %vm1510, %v3540, 0
  %v3545 = vsel %vm1510, %v3542, 0
  %3547 = vmatprep.subr.mxu0 0.0
  %3548 = vmatpush1.xpose.msra.mxu0 0.0
  %3549 = vmatprep.subr.mxu0 0.0
  %3550 = vmatpush1.xpose.msra.mxu0 0.0
  %3551 = vmatprep.subr.mxu0 0.0
  %3552 = vmatpush1.xpose.msra.mxu0 0.0
  %3553 = vmatprep.subr.mxu0 0.0
  %3554 = vmatpush1.xpose.msra.mxu0 0.0
  %3555 = vmatprep.subr.mxu0 0.0
  %3556 = vmatpush1.xpose.msra.mxu0 0.0
  %3557 = vmatprep.subr.mxu0 0.0
  %3558 = vmatpush1.xpose.msra.mxu0 0.0
  %3559 = vmatprep.subr.mxu0 0.0
  %3560 = vmatpush1.xpose.msra.mxu0 0.0
  %3561 = vmatprep.subr.mxu0 0.0
  %3562 = vmatpush1.xpose.msra.mxu0 0.0
  %3563 = vmatprep.subr.mxu0 0.0
  %3564 = vmatpush1.xpose.msra.mxu0 0.0
  %3565 = vmatprep.subr.mxu0 0.0
  %3566 = vmatpush1.xpose.msra.mxu0 0.0
  %3567 = vmatprep.subr.mxu0 0.0
  %3568 = vmatpush1.xpose.msra.mxu0 0.0
  %3569 = vmatprep.subr.mxu0 0.0
  %3570 = vmatpush1.xpose.msra.mxu0 0.0
  %3571 = vmatprep.subr.mxu0 0.0
  %3572 = vmatpush1.xpose.msra.mxu0 0.0
  %3573 = vmatprep.subr.mxu0 0.0
  %3574 = vmatpush1.xpose.msra.mxu0 0.0
  %3575 = vmatprep.subr.mxu0 0.0
  %3576 = vmatpush1.xpose.msra.mxu0 0.0
  %3577 = vmatprep.subr.mxu0 0.0
  %3578 = vmatpush1.xpose.msra.mxu0 %v3545
  %3579 = vmatprep.subr.mxu0 0.0
  %3580 = vmatpush2.xpose.msra.mxu0 0.0
  %3581 = vmatprep.subr.mxu0 0.0
  %3582 = vmatpush2.xpose.msra.mxu0 0.0
  %3583 = vmatprep.subr.mxu0 0.0
  %3584 = vmatpush2.xpose.msra.mxu0 0.0
  %3585 = vmatprep.subr.mxu0 0.0
  %3586 = vmatpush2.xpose.msra.mxu0 0.0
  %3587 = vmatprep.subr.mxu0 0.0
  %3588 = vmatpush2.xpose.msra.mxu0 0.0
  %3589 = vmatprep.subr.mxu0 0.0
  %3590 = vmatpush2.xpose.msra.mxu0 0.0
  %3591 = vmatprep.subr.mxu0 0.0
  %3592 = vmatpush2.xpose.msra.mxu0 0.0
  %3593 = vmatprep.subr.mxu0 0.0
  %3594 = vmatpush2.xpose.msra.mxu0 0.0
  %3595 = vmatprep.subr.mxu0 0.0
  %3596 = vmatpush2.xpose.msra.mxu0 0.0
  %3597 = vmatprep.subr.mxu0 0.0
  %3598 = vmatpush2.xpose.msra.mxu0 0.0
  %3599 = vmatprep.subr.mxu0 0.0
  %3600 = vmatpush2.xpose.msra.mxu0 0.0
  %3601 = vmatprep.subr.mxu0 0.0
  %3602 = vmatpush2.xpose.msra.mxu0 0.0
  %3603 = vmatprep.subr.mxu0 0.0
  %3604 = vmatpush2.xpose.msra.mxu0 0.0
  %3605 = vmatprep.subr.mxu0 0.0
  %3606 = vmatpush2.xpose.msra.mxu0 0.0
  %3607 = vmatprep.subr.mxu0 0.0
  %3608 = vmatpush2.xpose.msra.mxu0 0.0
  %3609 = vmatprep.subr.mxu0 0.0
  %3610 = vmatpush2.xpose.msra.mxu0 0.0
  %3611 = vmatprep.mubr.f32.mxu0 0.0
  %3612 = vmatmul.mubr.f32.gmra.mxu0 %v3543
  %v3613 = vpop.f32.mrf.mxu0
  %v3614 = vadd.f32 0.0, %v3613
  %v3615 = vpop.f32.mrf.mxu0
  %3616 = vdwg.mxu0
  %v3617 = vmul.f32 %v3614, 0.35355338
  %v3618 = vsel %vm1586, %v3617, -inf
  %3619 = vmax.xlane.f32.xlu0 %v3618
  %v3620 = vpop.xlane.xlu0 %3619
  %v3621 = vsub.f32 %v3617, %v3620
  %v3622 = vmul.f32 %v3621, 1.442695
  %v3623 = vpow.pop %v3622
  %v3624 = vsel %vm1586, %v3623, 0.0
  %3625 = vadd.xlane.f32.xlu0 %v3624
  %v3626 = vpop.xlane.xlu0 %3625
  %v3627 = vrcp.pop %v3626
  %v3628 = vmul.f32 %v3623, %v3627
  %3629 = vrot.lane.b32.xlu0 %v3365, 56
  %v3630 = vpop.permute.xlu0 %3629
  %v3632 = vsel %vm1600, %v3628, 0
  %v3634 = vsel %vm1322, %v3630, 0
  %3636 = vmatprep.subr.mxu0 0.0
  %3637 = vmatpush1.msra.mxu0 0.0
  %3638 = vmatprep.subr.mxu0 0.0
  %3639 = vmatpush1.msra.mxu0 0.0
  %3640 = vmatprep.subr.mxu0 0.0
  %3641 = vmatpush1.msra.mxu0 0.0
  %3642 = vmatprep.subr.mxu0 0.0
  %3643 = vmatpush1.msra.mxu0 0.0
  %3644 = vmatprep.subr.mxu0 0.0
  %3645 = vmatpush1.msra.mxu0 0.0
  %3646 = vmatprep.subr.mxu0 0.0
  %3647 = vmatpush1.msra.mxu0 0.0
  %3648 = vmatprep.subr.mxu0 0.0
  %3649 = vmatpush1.msra.mxu0 0.0
  %3650 = vmatprep.subr.mxu0 0.0
  %3651 = vmatpush1.msra.mxu0 0.0
  %3652 = vmatprep.subr.mxu0 0.0
  %3653 = vmatpush1.msra.mxu0 0.0
  %3654 = vmatprep.subr.mxu0 0.0
  %3655 = vmatpush1.msra.mxu0 0.0
  %3656 = vmatprep.subr.mxu0 0.0
  %3657 = vmatpush1.msra.mxu0 0.0
  %3658 = vmatprep.subr.mxu0 0.0
  %3659 = vmatpush1.msra.mxu0 0.0
  %3660 = vmatprep.subr.mxu0 0.0
  %3661 = vmatpush1.msra.mxu0 0.0
  %3662 = vmatprep.subr.mxu0 0.0
  %3663 = vmatpush1.msra.mxu0 0.0
  %3664 = vmatprep.subr.mxu0 0.0
  %3665 = vmatpush1.msra.mxu0 0.0
  %3666 = vmatprep.subr.mxu0 0.0
  %3667 = vmatpush1.msra.mxu0 %v3634
  %3668 = vmatprep.subr.mxu0 0.0
  %3669 = vmatpush2.msra.mxu0 0.0
  %3670 = vmatprep.subr.mxu0 0.0
  %3671 = vmatpush2.msra.mxu0 0.0
  %3672 = vmatprep.subr.mxu0 0.0
  %3673 = vmatpush2.msra.mxu0 0.0
  %3674 = vmatprep.subr.mxu0 0.0
  %3675 = vmatpush2.msra.mxu0 0.0
  %3676 = vmatprep.subr.mxu0 0.0
  %3677 = vmatpush2.msra.mxu0 0.0
  %3678 = vmatprep.subr.mxu0 0.0
  %3679 = vmatpush2.msra.mxu0 0.0
  %3680 = vmatprep.subr.mxu0 0.0
  %3681 = vmatpush2.msra.mxu0 0.0
  %3682 = vmatprep.subr.mxu0 0.0
  %3683 = vmatpush2.msra.mxu0 0.0
  %3684 = vmatprep.subr.mxu0 0.0
  %3685 = vmatpush2.msra.mxu0 0.0
  %3686 = vmatprep.subr.mxu0 0.0
  %3687 = vmatpush2.msra.mxu0 0.0
  %3688 = vmatprep.subr.mxu0 0.0
  %3689 = vmatpush2.msra.mxu0 0.0
  %3690 = vmatprep.subr.mxu0 0.0
  %3691 = vmatpush2.msra.mxu0 0.0
  %3692 = vmatprep.subr.mxu0 0.0
  %3693 = vmatpush2.msra.mxu0 0.0
  %3694 = vmatprep.subr.mxu0 0.0
  %3695 = vmatpush2.msra.mxu0 0.0
  %3696 = vmatprep.subr.mxu0 0.0
  %3697 = vmatpush2.msra.mxu0 0.0
  %3698 = vmatprep.subr.mxu0 0.0
  %3699 = vmatpush2.msra.mxu0 0.0
  %3700 = vmatprep.mubr.f32.mxu0 0.0
  %3701 = vmatmul.mubr.f32.gmra.mxu0 %v3632
  %v3702 = vpop.f32.mrf.mxu0
  %v3703 = vadd.f32 0.0, %v3702
  %v3704 = vpop.f32.mrf.mxu0
  %3705 = vdwg.mxu0
  %3706 = vrot.lane.b32.xlu0 %v3365, 112
  %v3707 = vpop.permute.xlu0 %3706
  %3708 = vrot.lane.b32.xlu0 %v3365, 80
  %v3709 = vpop.permute.xlu0 %3708
  %v3710 = vsel %vm1510, %v3707, 0
  %v3712 = vsel %vm1510, %v3709, 0
  %3714 = vmatprep.subr.mxu0 0.0
  %3715 = vmatpush1.xpose.msra.mxu0 0.0
  %3716 = vmatprep.subr.mxu0 0.0
  %3717 = vmatpush1.xpose.msra.mxu0 0.0
  %3718 = vmatprep.subr.mxu0 0.0
  %3719 = vmatpush1.xpose.msra.mxu0 0.0
  %3720 = vmatprep.subr.mxu0 0.0
  %3721 = vmatpush1.xpose.msra.mxu0 0.0
  %3722 = vmatprep.subr.mxu0 0.0
  %3723 = vmatpush1.xpose.msra.mxu0 0.0
  %3724 = vmatprep.subr.mxu0 0.0
  %3725 = vmatpush1.xpose.msra.mxu0 0.0
  %3726 = vmatprep.subr.mxu0 0.0
  %3727 = vmatpush1.xpose.msra.mxu0 0.0
  %3728 = vmatprep.subr.mxu0 0.0
  %3729 = vmatpush1.xpose.msra.mxu0 0.0
  %3730 = vmatprep.subr.mxu0 0.0
  %3731 = vmatpush1.xpose.msra.mxu0 0.0
  %3732 = vmatprep.subr.mxu0 0.0
  %3733 = vmatpush1.xpose.msra.mxu0 0.0
  %3734 = vmatprep.subr.mxu0 0.0
  %3735 = vmatpush1.xpose.msra.mxu0 0.0
  %3736 = vmatprep.subr.mxu0 0.0
  %3737 = vmatpush1.xpose.msra.mxu0 0.0
  %3738 = vmatprep.subr.mxu0 0.0
  %3739 = vmatpush1.xpose.msra.mxu0 0.0
  %3740 = vmatprep.subr.mxu0 0.0
  %3741 = vmatpush1.xpose.msra.mxu0 0.0
  %3742 = vmatprep.subr.mxu0 0.0
  %3743 = vmatpush1.xpose.msra.mxu0 0.0
  %3744 = vmatprep.subr.mxu0 0.0
  %3745 = vmatpush1.xpose.msra.mxu0 %v3712
  %3746 = vmatprep.subr.mxu0 0.0
  %3747 = vmatpush2.xpose.msra.mxu0 0.0
  %3748 = vmatprep.subr.mxu0 0.0
  %3749 = vmatpush2.xpose.msra.mxu0 0.0
  %3750 = vmatprep.subr.mxu0 0.0
  %3751 = vmatpush2.xpose.msra.mxu0 0.0
  %3752 = vmatprep.subr.mxu0 0.0
  %3753 = vmatpush2.xpose.msra.mxu0 0.0
  %3754 = vmatprep.subr.mxu0 0.0
  %3755 = vmatpush2.xpose.msra.mxu0 0.0
  %3756 = vmatprep.subr.mxu0 0.0
  %3757 = vmatpush2.xpose.msra.mxu0 0.0
  %3758 = vmatprep.subr.mxu0 0.0
  %3759 = vmatpush2.xpose.msra.mxu0 0.0
  %3760 = vmatprep.subr.mxu0 0.0
  %3761 = vmatpush2.xpose.msra.mxu0 0.0
  %3762 = vmatprep.subr.mxu0 0.0
  %3763 = vmatpush2.xpose.msra.mxu0 0.0
  %3764 = vmatprep.subr.mxu0 0.0
  %3765 = vmatpush2.xpose.msra.mxu0 0.0
  %3766 = vmatprep.subr.mxu0 0.0
  %3767 = vmatpush2.xpose.msra.mxu0 0.0
  %3768 = vmatprep.subr.mxu0 0.0
  %3769 = vmatpush2.xpose.msra.mxu0 0.0
  %3770 = vmatprep.subr.mxu0 0.0
  %3771 = vmatpush2.xpose.msra.mxu0 0.0
  %3772 = vmatprep.subr.mxu0 0.0
  %3773 = vmatpush2.xpose.msra.mxu0 0.0
  %3774 = vmatprep.subr.mxu0 0.0
  %3775 = vmatpush2.xpose.msra.mxu0 0.0
  %3776 = vmatprep.subr.mxu0 0.0
  %3777 = vmatpush2.xpose.msra.mxu0 0.0
  %3778 = vmatprep.mubr.f32.mxu0 0.0
  %3779 = vmatmul.mubr.f32.gmra.mxu0 %v3710
  %v3780 = vpop.f32.mrf.mxu0
  %v3781 = vadd.f32 0.0, %v3780
  %v3782 = vpop.f32.mrf.mxu0
  %3783 = vdwg.mxu0
  %v3784 = vmul.f32 %v3781, 0.35355338
  %v3785 = vsel %vm1586, %v3784, -inf
  %3786 = vmax.xlane.f32.xlu0 %v3785
  %v3787 = vpop.xlane.xlu0 %3786
  %v3788 = vsub.f32 %v3784, %v3787
  %v3789 = vmul.f32 %v3788, 1.442695
  %v3790 = vpow.pop %v3789
  %v3791 = vsel %vm1586, %v3790, 0.0
  %3792 = vadd.xlane.f32.xlu0 %v3791
  %v3793 = vpop.xlane.xlu0 %3792
  %v3794 = vrcp.pop %v3793
  %v3795 = vmul.f32 %v3790, %v3794
  %3796 = vrot.lane.b32.xlu0 %v3365, 48
  %v3797 = vpop.permute.xlu0 %3796
  %v3799 = vsel %vm1600, %v3795, 0
  %v3801 = vsel %vm1322, %v3797, 0
  %3803 = vmatprep.subr.mxu0 0.0
  %3804 = vmatpush1.msra.mxu0 0.0
  %3805 = vmatprep.subr.mxu0 0.0
  %3806 = vmatpush1.msra.mxu0 0.0
  %3807 = vmatprep.subr.mxu0 0.0
  %3808 = vmatpush1.msra.mxu0 0.0
  %3809 = vmatprep.subr.mxu0 0.0
  %3810 = vmatpush1.msra.mxu0 0.0
  %3811 = vmatprep.subr.mxu0 0.0
  %3812 = vmatpush1.msra.mxu0 0.0
  %3813 = vmatprep.subr.mxu0 0.0
  %3814 = vmatpush1.msra.mxu0 0.0
  %3815 = vmatprep.subr.mxu0 0.0
  %3816 = vmatpush1.msra.mxu0 0.0
  %3817 = vmatprep.subr.mxu0 0.0
  %3818 = vmatpush1.msra.mxu0 0.0
  %3819 = vmatprep.subr.mxu0 0.0
  %3820 = vmatpush1.msra.mxu0 0.0
  %3821 = vmatprep.subr.mxu0 0.0
  %3822 = vmatpush1.msra.mxu0 0.0
  %3823 = vmatprep.subr.mxu0 0.0
  %3824 = vmatpush1.msra.mxu0 0.0
  %3825 = vmatprep.subr.mxu0 0.0
  %3826 = vmatpush1.msra.mxu0 0.0
  %3827 = vmatprep.subr.mxu0 0.0
  %3828 = vmatpush1.msra.mxu0 0.0
  %3829 = vmatprep.subr.mxu0 0.0
  %3830 = vmatpush1.msra.mxu0 0.0
  %3831 = vmatprep.subr.mxu0 0.0
  %3832 = vmatpush1.msra.mxu0 0.0
  %3833 = vmatprep.subr.mxu0 0.0
  %3834 = vmatpush1.msra.mxu0 %v3801
  %3835 = vmatprep.subr.mxu0 0.0
  %3836 = vmatpush2.msra.mxu0 0.0
  %3837 = vmatprep.subr.mxu0 0.0
  %3838 = vmatpush2.msra.mxu0 0.0
  %3839 = vmatprep.subr.mxu0 0.0
  %3840 = vmatpush2.msra.mxu0 0.0
  %3841 = vmatprep.subr.mxu0 0.0
  %3842 = vmatpush2.msra.mxu0 0.0
  %3843 = vmatprep.subr.mxu0 0.0
  %3844 = vmatpush2.msra.mxu0 0.0
  %3845 = vmatprep.subr.mxu0 0.0
  %3846 = vmatpush2.msra.mxu0 0.0
  %3847 = vmatprep.subr.mxu0 0.0
  %3848 = vmatpush2.msra.mxu0 0.0
  %3849 = vmatprep.subr.mxu0 0.0
  %3850 = vmatpush2.msra.mxu0 0.0
  %3851 = vmatprep.subr.mxu0 0.0
  %3852 = vmatpush2.msra.mxu0 0.0
  %3853 = vmatprep.subr.mxu0 0.0
  %3854 = vmatpush2.msra.mxu0 0.0
  %3855 = vmatprep.subr.mxu0 0.0
  %3856 = vmatpush2.msra.mxu0 0.0
  %3857 = vmatprep.subr.mxu0 0.0
  %3858 = vmatpush2.msra.mxu0 0.0
  %3859 = vmatprep.subr.mxu0 0.0
  %3860 = vmatpush2.msra.mxu0 0.0
  %3861 = vmatprep.subr.mxu0 0.0
  %3862 = vmatpush2.msra.mxu0 0.0
  %3863 = vmatprep.subr.mxu0 0.0
  %3864 = vmatpush2.msra.mxu0 0.0
  %3865 = vmatprep.subr.mxu0 0.0
  %3866 = vmatpush2.msra.mxu0 0.0
  %3867 = vmatprep.mubr.f32.mxu0 0.0
  %3868 = vmatmul.mubr.f32.gmra.mxu0 %v3799
  %v3869 = vpop.f32.mrf.mxu0
  %v3870 = vadd.f32 0.0, %v3869
  %v3871 = vpop.f32.mrf.mxu0
  %3872 = vdwg.mxu0
  %3873 = vrot.lane.b32.xlu0 %v3365, 104
  %v3874 = vpop.permute.xlu0 %3873
  %3875 = vrot.lane.b32.xlu0 %v3365, 72
  %v3876 = vpop.permute.xlu0 %3875
  %v3877 = vsel %vm1510, %v3874, 0
  %v3879 = vsel %vm1510, %v3876, 0
  %3881 = vmatprep.subr.mxu0 0.0
  %3882 = vmatpush1.xpose.msra.mxu0 0.0
  %3883 = vmatprep.subr.mxu0 0.0
  %3884 = vmatpush1.xpose.msra.mxu0 0.0
  %3885 = vmatprep.subr.mxu0 0.0
  %3886 = vmatpush1.xpose.msra.mxu0 0.0
  %3887 = vmatprep.subr.mxu0 0.0
  %3888 = vmatpush1.xpose.msra.mxu0 0.0
  %3889 = vmatprep.subr.mxu0 0.0
  %3890 = vmatpush1.xpose.msra.mxu0 0.0
  %3891 = vmatprep.subr.mxu0 0.0
  %3892 = vmatpush1.xpose.msra.mxu0 0.0
  %3893 = vmatprep.subr.mxu0 0.0
  %3894 = vmatpush1.xpose.msra.mxu0 0.0
  %3895 = vmatprep.subr.mxu0 0.0
  %3896 = vmatpush1.xpose.msra.mxu0 0.0
  %3897 = vmatprep.subr.mxu0 0.0
  %3898 = vmatpush1.xpose.msra.mxu0 0.0
  %3899 = vmatprep.subr.mxu0 0.0
  %3900 = vmatpush1.xpose.msra.mxu0 0.0
  %3901 = vmatprep.subr.mxu0 0.0
  %3902 = vmatpush1.xpose.msra.mxu0 0.0
  %3903 = vmatprep.subr.mxu0 0.0
  %3904 = vmatpush1.xpose.msra.mxu0 0.0
  %3905 = vmatprep.subr.mxu0 0.0
  %3906 = vmatpush1.xpose.msra.mxu0 0.0
  %3907 = vmatprep.subr.mxu0 0.0
  %3908 = vmatpush1.xpose.msra.mxu0 0.0
  %3909 = vmatprep.subr.mxu0 0.0
  %3910 = vmatpush1.xpose.msra.mxu0 0.0
  %3911 = vmatprep.subr.mxu0 0.0
  %3912 = vmatpush1.xpose.msra.mxu0 %v3879
  %3913 = vmatprep.subr.mxu0 0.0
  %3914 = vmatpush2.xpose.msra.mxu0 0.0
  %3915 = vmatprep.subr.mxu0 0.0
  %3916 = vmatpush2.xpose.msra.mxu0 0.0
  %3917 = vmatprep.subr.mxu0 0.0
  %3918 = vmatpush2.xpose.msra.mxu0 0.0
  %3919 = vmatprep.subr.mxu0 0.0
  %3920 = vmatpush2.xpose.msra.mxu0 0.0
  %3921 = vmatprep.subr.mxu0 0.0
  %3922 = vmatpush2.xpose.msra.mxu0 0.0
  %3923 = vmatprep.subr.mxu0 0.0
  %3924 = vmatpush2.xpose.msra.mxu0 0.0
  %3925 = vmatprep.subr.mxu0 0.0
  %3926 = vmatpush2.xpose.msra.mxu0 0.0
  %3927 = vmatprep.subr.mxu0 0.0
  %3928 = vmatpush2.xpose.msra.mxu0 0.0
  %3929 = vmatprep.subr.mxu0 0.0
  %3930 = vmatpush2.xpose.msra.mxu0 0.0
  %3931 = vmatprep.subr.mxu0 0.0
  %3932 = vmatpush2.xpose.msra.mxu0 0.0
  %3933 = vmatprep.subr.mxu0 0.0
  %3934 = vmatpush2.xpose.msra.mxu0 0.0
  %3935 = vmatprep.subr.mxu0 0.0
  %3936 = vmatpush2.xpose.msra.mxu0 0.0
  %3937 = vmatprep.subr.mxu0 0.0
  %3938 = vmatpush2.xpose.msra.mxu0 0.0
  %3939 = vmatprep.subr.mxu0 0.0
  %3940 = vmatpush2.xpose.msra.mxu0 0.0
  %3941 = vmatprep.subr.mxu0 0.0
  %3942 = vmatpush2.xpose.msra.mxu0 0.0
  %3943 = vmatprep.subr.mxu0 0.0
  %3944 = vmatpush2.xpose.msra.mxu0 0.0
  %3945 = vmatprep.mubr.f32.mxu0 0.0
  %3946 = vmatmul.mubr.f32.gmra.mxu0 %v3877
  %v3947 = vpop.f32.mrf.mxu0
  %v3948 = vadd.f32 0.0, %v3947
  %v3949 = vpop.f32.mrf.mxu0
  %3950 = vdwg.mxu0
  %v3951 = vmul.f32 %v3948, 0.35355338
  %v3952 = vsel %vm1586, %v3951, -inf
  %3953 = vmax.xlane.f32.xlu0 %v3952
  %v3954 = vpop.xlane.xlu0 %3953
  %v3955 = vsub.f32 %v3951, %v3954
  %v3956 = vmul.f32 %v3955, 1.442695
  %v3957 = vpow.pop %v3956
  %v3958 = vsel %vm1586, %v3957, 0.0
  %3959 = vadd.xlane.f32.xlu0 %v3958
  %v3960 = vpop.xlane.xlu0 %3959
  %v3961 = vrcp.pop %v3960
  %v3962 = vmul.f32 %v3957, %v3961
  %3963 = vrot.lane.b32.xlu0 %v3365, 40
  %v3964 = vpop.permute.xlu0 %3963
  %v3966 = vsel %vm1600, %v3962, 0
  %v3968 = vsel %vm1322, %v3964, 0
  %3970 = vmatprep.subr.mxu0 0.0
  %3971 = vmatpush1.msra.mxu0 0.0
  %3972 = vmatprep.subr.mxu0 0.0
  %3973 = vmatpush1.msra.mxu0 0.0
  %3974 = vmatprep.subr.mxu0 0.0
  %3975 = vmatpush1.msra.mxu0 0.0
  %3976 = vmatprep.subr.mxu0 0.0
  %3977 = vmatpush1.msra.mxu0 0.0
  %3978 = vmatprep.subr.mxu0 0.0
  %3979 = vmatpush1.msra.mxu0 0.0
  %3980 = vmatprep.subr.mxu0 0.0
  %3981 = vmatpush1.msra.mxu0 0.0
  %3982 = vmatprep.subr.mxu0 0.0
  %3983 = vmatpush1.msra.mxu0 0.0
  %3984 = vmatprep.subr.mxu0 0.0
  %3985 = vmatpush1.msra.mxu0 0.0
  %3986 = vmatprep.subr.mxu0 0.0
  %3987 = vmatpush1.msra.mxu0 0.0
  %3988 = vmatprep.subr.mxu0 0.0
  %3989 = vmatpush1.msra.mxu0 0.0
  %3990 = vmatprep.subr.mxu0 0.0
  %3991 = vmatpush1.msra.mxu0 0.0
  %3992 = vmatprep.subr.mxu0 0.0
  %3993 = vmatpush1.msra.mxu0 0.0
  %3994 = vmatprep.subr.mxu0 0.0
  %3995 = vmatpush1.msra.mxu0 0.0
  %3996 = vmatprep.subr.mxu0 0.0
  %3997 = vmatpush1.msra.mxu0 0.0
  %3998 = vmatprep.subr.mxu0 0.0
  %3999 = vmatpush1.msra.mxu0 0.0
  %4000 = vmatprep.subr.mxu0 0.0
  %4001 = vmatpush1.msra.mxu0 %v3968
  %4002 = vmatprep.subr.mxu0 0.0
  %4003 = vmatpush2.msra.mxu0 0.0
  %4004 = vmatprep.subr.mxu0 0.0
  %4005 = vmatpush2.msra.mxu0 0.0
  %4006 = vmatprep.subr.mxu0 0.0
  %4007 = vmatpush2.msra.mxu0 0.0
  %4008 = vmatprep.subr.mxu0 0.0
  %4009 = vmatpush2.msra.mxu0 0.0
  %4010 = vmatprep.subr.mxu0 0.0
  %4011 = vmatpush2.msra.mxu0 0.0
  %4012 = vmatprep.subr.mxu0 0.0
  %4013 = vmatpush2.msra.mxu0 0.0
  %4014 = vmatprep.subr.mxu0 0.0
  %4015 = vmatpush2.msra.mxu0 0.0
  %4016 = vmatprep.subr.mxu0 0.0
  %4017 = vmatpush2.msra.mxu0 0.0
  %4018 = vmatprep.subr.mxu0 0.0
  %4019 = vmatpush2.msra.mxu0 0.0
  %4020 = vmatprep.subr.mxu0 0.0
  %4021 = vmatpush2.msra.mxu0 0.0
  %4022 = vmatprep.subr.mxu0 0.0
  %4023 = vmatpush2.msra.mxu0 0.0
  %4024 = vmatprep.subr.mxu0 0.0
  %4025 = vmatpush2.msra.mxu0 0.0
  %4026 = vmatprep.subr.mxu0 0.0
  %4027 = vmatpush2.msra.mxu0 0.0
  %4028 = vmatprep.subr.mxu0 0.0
  %4029 = vmatpush2.msra.mxu0 0.0
  %4030 = vmatprep.subr.mxu0 0.0
  %4031 = vmatpush2.msra.mxu0 0.0
  %4032 = vmatprep.subr.mxu0 0.0
  %4033 = vmatpush2.msra.mxu0 0.0
  %4034 = vmatprep.mubr.f32.mxu0 0.0
  %4035 = vmatmul.mubr.f32.gmra.mxu0 %v3966
  %v4036 = vpop.f32.mrf.mxu0
  %v4037 = vadd.f32 0.0, %v4036
  %v4038 = vpop.f32.mrf.mxu0
  %4039 = vdwg.mxu0
  %4041 = vrot.lane.b32.xlu0 %v3703, 8
  %v4042 = vpop.permute.xlu0 %4041
  %4045 = vrot.lane.b32.xlu0 %v3870, 16
  %v4046 = vpop.permute.xlu0 %4045
  %4049 = vrot.lane.b32.xlu0 %v4037, 24
  %v4050 = vpop.permute.xlu0 %4049
  %v4052 = vsel %vm1510, %v3536, %v4042
  %v4053 = vsel %vm2190, %v4052, %v4046
  %v4054 = vsel %vm2192, %v4053, %v4050
  %v4056 = vrot.slane %v3365, 5
  %v4057 = vrot.slane %v3370, 5
  %v4058 = vsel %vm2195, %v4056, %v4057
  %4059 = vrot.lane.b32.xlu0 %v4058, 96
  %v4060 = vpop.permute.xlu0 %4059
  %v4061 = vsel %vm1510, %v4058, 0
  %v4063 = vsel %vm1510, %v4060, 0
  %4065 = vmatprep.subr.mxu0 0.0
  %4066 = vmatpush1.xpose.msra.mxu0 0.0
  %4067 = vmatprep.subr.mxu0 0.0
  %4068 = vmatpush1.xpose.msra.mxu0 0.0
  %4069 = vmatprep.subr.mxu0 0.0
  %4070 = vmatpush1.xpose.msra.mxu0 0.0
  %4071 = vmatprep.subr.mxu0 0.0
  %4072 = vmatpush1.xpose.msra.mxu0 0.0
  %4073 = vmatprep.subr.mxu0 0.0
  %4074 = vmatpush1.xpose.msra.mxu0 0.0
  %4075 = vmatprep.subr.mxu0 0.0
  %4076 = vmatpush1.xpose.msra.mxu0 0.0
  %4077 = vmatprep.subr.mxu0 0.0
  %4078 = vmatpush1.xpose.msra.mxu0 0.0
  %4079 = vmatprep.subr.mxu0 0.0
  %4080 = vmatpush1.xpose.msra.mxu0 0.0
  %4081 = vmatprep.subr.mxu0 0.0
  %4082 = vmatpush1.xpose.msra.mxu0 0.0
  %4083 = vmatprep.subr.mxu0 0.0
  %4084 = vmatpush1.xpose.msra.mxu0 0.0
  %4085 = vmatprep.subr.mxu0 0.0
  %4086 = vmatpush1.xpose.msra.mxu0 0.0
  %4087 = vmatprep.subr.mxu0 0.0
  %4088 = vmatpush1.xpose.msra.mxu0 0.0
  %4089 = vmatprep.subr.mxu0 0.0
  %4090 = vmatpush1.xpose.msra.mxu0 0.0
  %4091 = vmatprep.subr.mxu0 0.0
  %4092 = vmatpush1.xpose.msra.mxu0 0.0
  %4093 = vmatprep.subr.mxu0 0.0
  %4094 = vmatpush1.xpose.msra.mxu0 0.0
  %4095 = vmatprep.subr.mxu0 0.0
  %4096 = vmatpush1.xpose.msra.mxu0 %v4063
  %4097 = vmatprep.subr.mxu0 0.0
  %4098 = vmatpush2.xpose.msra.mxu0 0.0
  %4099 = vmatprep.subr.mxu0 0.0
  %4100 = vmatpush2.xpose.msra.mxu0 0.0
  %4101 = vmatprep.subr.mxu0 0.0
  %4102 = vmatpush2.xpose.msra.mxu0 0.0
  %4103 = vmatprep.subr.mxu0 0.0
  %4104 = vmatpush2.xpose.msra.mxu0 0.0
  %4105 = vmatprep.subr.mxu0 0.0
  %4106 = vmatpush2.xpose.msra.mxu0 0.0
  %4107 = vmatprep.subr.mxu0 0.0
  %4108 = vmatpush2.xpose.msra.mxu0 0.0
  %4109 = vmatprep.subr.mxu0 0.0
  %4110 = vmatpush2.xpose.msra.mxu0 0.0
  %4111 = vmatprep.subr.mxu0 0.0
  %4112 = vmatpush2.xpose.msra.mxu0 0.0
  %4113 = vmatprep.subr.mxu0 0.0
  %4114 = vmatpush2.xpose.msra.mxu0 0.0
  %4115 = vmatprep.subr.mxu0 0.0
  %4116 = vmatpush2.xpose.msra.mxu0 0.0
  %4117 = vmatprep.subr.mxu0 0.0
  %4118 = vmatpush2.xpose.msra.mxu0 0.0
  %4119 = vmatprep.subr.mxu0 0.0
  %4120 = vmatpush2.xpose.msra.mxu0 0.0
  %4121 = vmatprep.subr.mxu0 0.0
  %4122 = vmatpush2.xpose.msra.mxu0 0.0
  %4123 = vmatprep.subr.mxu0 0.0
  %4124 = vmatpush2.xpose.msra.mxu0 0.0
  %4125 = vmatprep.subr.mxu0 0.0
  %4126 = vmatpush2.xpose.msra.mxu0 0.0
  %4127 = vmatprep.subr.mxu0 0.0
  %4128 = vmatpush2.xpose.msra.mxu0 0.0
  %4129 = vmatprep.mubr.f32.mxu0 0.0
  %4130 = vmatmul.mubr.f32.gmra.mxu0 %v4061
  %v4131 = vpop.f32.mrf.mxu0
  %v4132 = vadd.f32 0.0, %v4131
  %v4133 = vpop.f32.mrf.mxu0
  %4134 = vdwg.mxu0
  %v4135 = vmul.f32 %v4132, 0.35355338
  %v4136 = vsel %vm1586, %v4135, -inf
  %4137 = vmax.xlane.f32.xlu0 %v4136
  %v4138 = vpop.xlane.xlu0 %4137
  %v4139 = vsub.f32 %v4135, %v4138
  %v4140 = vmul.f32 %v4139, 1.442695
  %v4141 = vpow.pop %v4140
  %v4142 = vsel %vm1586, %v4141, 0.0
  %4143 = vadd.xlane.f32.xlu0 %v4142
  %v4144 = vpop.xlane.xlu0 %4143
  %v4145 = vrcp.pop %v4144
  %v4146 = vmul.f32 %v4141, %v4145
  %4147 = vrot.lane.b32.xlu0 %v4058, 64
  %v4148 = vpop.permute.xlu0 %4147
  %v4150 = vsel %vm1600, %v4146, 0
  %v4152 = vsel %vm1322, %v4148, 0
  %4154 = vmatprep.subr.mxu0 0.0
  %4155 = vmatpush1.msra.mxu0 0.0
  %4156 = vmatprep.subr.mxu0 0.0
  %4157 = vmatpush1.msra.mxu0 0.0
  %4158 = vmatprep.subr.mxu0 0.0
  %4159 = vmatpush1.msra.mxu0 0.0
  %4160 = vmatprep.subr.mxu0 0.0
  %4161 = vmatpush1.msra.mxu0 0.0
  %4162 = vmatprep.subr.mxu0 0.0
  %4163 = vmatpush1.msra.mxu0 0.0
  %4164 = vmatprep.subr.mxu0 0.0
  %4165 = vmatpush1.msra.mxu0 0.0
  %4166 = vmatprep.subr.mxu0 0.0
  %4167 = vmatpush1.msra.mxu0 0.0
  %4168 = vmatprep.subr.mxu0 0.0
  %4169 = vmatpush1.msra.mxu0 0.0
  %4170 = vmatprep.subr.mxu0 0.0
  %4171 = vmatpush1.msra.mxu0 0.0
  %4172 = vmatprep.subr.mxu0 0.0
  %4173 = vmatpush1.msra.mxu0 0.0
  %4174 = vmatprep.subr.mxu0 0.0
  %4175 = vmatpush1.msra.mxu0 0.0
  %4176 = vmatprep.subr.mxu0 0.0
  %4177 = vmatpush1.msra.mxu0 0.0
  %4178 = vmatprep.subr.mxu0 0.0
  %4179 = vmatpush1.msra.mxu0 0.0
  %4180 = vmatprep.subr.mxu0 0.0
  %4181 = vmatpush1.msra.mxu0 0.0
  %4182 = vmatprep.subr.mxu0 0.0
  %4183 = vmatpush1.msra.mxu0 0.0
  %4184 = vmatprep.subr.mxu0 0.0
  %4185 = vmatpush1.msra.mxu0 %v4152
  %4186 = vmatprep.subr.mxu0 0.0
  %4187 = vmatpush2.msra.mxu0 0.0
  %4188 = vmatprep.subr.mxu0 0.0
  %4189 = vmatpush2.msra.mxu0 0.0
  %4190 = vmatprep.subr.mxu0 0.0
  %4191 = vmatpush2.msra.mxu0 0.0
  %4192 = vmatprep.subr.mxu0 0.0
  %4193 = vmatpush2.msra.mxu0 0.0
  %4194 = vmatprep.subr.mxu0 0.0
  %4195 = vmatpush2.msra.mxu0 0.0
  %4196 = vmatprep.subr.mxu0 0.0
  %4197 = vmatpush2.msra.mxu0 0.0
  %4198 = vmatprep.subr.mxu0 0.0
  %4199 = vmatpush2.msra.mxu0 0.0
  %4200 = vmatprep.subr.mxu0 0.0
  %4201 = vmatpush2.msra.mxu0 0.0
  %4202 = vmatprep.subr.mxu0 0.0
  %4203 = vmatpush2.msra.mxu0 0.0
  %4204 = vmatprep.subr.mxu0 0.0
  %4205 = vmatpush2.msra.mxu0 0.0
  %4206 = vmatprep.subr.mxu0 0.0
  %4207 = vmatpush2.msra.mxu0 0.0
  %4208 = vmatprep.subr.mxu0 0.0
  %4209 = vmatpush2.msra.mxu0 0.0
  %4210 = vmatprep.subr.mxu0 0.0
  %4211 = vmatpush2.msra.mxu0 0.0
  %4212 = vmatprep.subr.mxu0 0.0
  %4213 = vmatpush2.msra.mxu0 0.0
  %4214 = vmatprep.subr.mxu0 0.0
  %4215 = vmatpush2.msra.mxu0 0.0
  %4216 = vmatprep.subr.mxu0 0.0
  %4217 = vmatpush2.msra.mxu0 0.0
  %4218 = vmatprep.mubr.f32.mxu0 0.0
  %4219 = vmatmul.mubr.f32.gmra.mxu0 %v4150
  %v4220 = vpop.f32.mrf.mxu0
  %v4221 = vadd.f32 0.0, %v4220
  %v4222 = vpop.f32.mrf.mxu0
  %4223 = vdwg.mxu0
  %4224 = vrot.lane.b32.xlu0 %v4058, 120
  %v4225 = vpop.permute.xlu0 %4224
  %4226 = vrot.lane.b32.xlu0 %v4058, 88
  %v4227 = vpop.permute.xlu0 %4226
  %v4228 = vsel %vm1510, %v4225, 0
  %v4230 = vsel %vm1510, %v4227, 0
  %4232 = vmatprep.subr.mxu0 0.0
  %4233 = vmatpush1.xpose.msra.mxu0 0.0
  %4234 = vmatprep.subr.mxu0 0.0
  %4235 = vmatpush1.xpose.msra.mxu0 0.0
  %4236 = vmatprep.subr.mxu0 0.0
  %4237 = vmatpush1.xpose.msra.mxu0 0.0
  %4238 = vmatprep.subr.mxu0 0.0
  %4239 = vmatpush1.xpose.msra.mxu0 0.0
  %4240 = vmatprep.subr.mxu0 0.0
  %4241 = vmatpush1.xpose.msra.mxu0 0.0
  %4242 = vmatprep.subr.mxu0 0.0
  %4243 = vmatpush1.xpose.msra.mxu0 0.0
  %4244 = vmatprep.subr.mxu0 0.0
  %4245 = vmatpush1.xpose.msra.mxu0 0.0
  %4246 = vmatprep.subr.mxu0 0.0
  %4247 = vmatpush1.xpose.msra.mxu0 0.0
  %4248 = vmatprep.subr.mxu0 0.0
  %4249 = vmatpush1.xpose.msra.mxu0 0.0
  %4250 = vmatprep.subr.mxu0 0.0
  %4251 = vmatpush1.xpose.msra.mxu0 0.0
  %4252 = vmatprep.subr.mxu0 0.0
  %4253 = vmatpush1.xpose.msra.mxu0 0.0
  %4254 = vmatprep.subr.mxu0 0.0
  %4255 = vmatpush1.xpose.msra.mxu0 0.0
  %4256 = vmatprep.subr.mxu0 0.0
  %4257 = vmatpush1.xpose.msra.mxu0 0.0
  %4258 = vmatprep.subr.mxu0 0.0
  %4259 = vmatpush1.xpose.msra.mxu0 0.0
  %4260 = vmatprep.subr.mxu0 0.0
  %4261 = vmatpush1.xpose.msra.mxu0 0.0
  %4262 = vmatprep.subr.mxu0 0.0
  %4263 = vmatpush1.xpose.msra.mxu0 %v4230
  %4264 = vmatprep.subr.mxu0 0.0
  %4265 = vmatpush2.xpose.msra.mxu0 0.0
  %4266 = vmatprep.subr.mxu0 0.0
  %4267 = vmatpush2.xpose.msra.mxu0 0.0
  %4268 = vmatprep.subr.mxu0 0.0
  %4269 = vmatpush2.xpose.msra.mxu0 0.0
  %4270 = vmatprep.subr.mxu0 0.0
  %4271 = vmatpush2.xpose.msra.mxu0 0.0
  %4272 = vmatprep.subr.mxu0 0.0
  %4273 = vmatpush2.xpose.msra.mxu0 0.0
  %4274 = vmatprep.subr.mxu0 0.0
  %4275 = vmatpush2.xpose.msra.mxu0 0.0
  %4276 = vmatprep.subr.mxu0 0.0
  %4277 = vmatpush2.xpose.msra.mxu0 0.0
  %4278 = vmatprep.subr.mxu0 0.0
  %4279 = vmatpush2.xpose.msra.mxu0 0.0
  %4280 = vmatprep.subr.mxu0 0.0
  %4281 = vmatpush2.xpose.msra.mxu0 0.0
  %4282 = vmatprep.subr.mxu0 0.0
  %4283 = vmatpush2.xpose.msra.mxu0 0.0
  %4284 = vmatprep.subr.mxu0 0.0
  %4285 = vmatpush2.xpose.msra.mxu0 0.0
  %4286 = vmatprep.subr.mxu0 0.0
  %4287 = vmatpush2.xpose.msra.mxu0 0.0
  %4288 = vmatprep.subr.mxu0 0.0
  %4289 = vmatpush2.xpose.msra.mxu0 0.0
  %4290 = vmatprep.subr.mxu0 0.0
  %4291 = vmatpush2.xpose.msra.mxu0 0.0
  %4292 = vmatprep.subr.mxu0 0.0
  %4293 = vmatpush2.xpose.msra.mxu0 0.0
  %4294 = vmatprep.subr.mxu0 0.0
  %4295 = vmatpush2.xpose.msra.mxu0 0.0
  %4296 = vmatprep.mubr.f32.mxu0 0.0
  %4297 = vmatmul.mubr.f32.gmra.mxu0 %v4228
  %v4298 = vpop.f32.mrf.mxu0
  %v4299 = vadd.f32 0.0, %v4298
  %v4300 = vpop.f32.mrf.mxu0
  %4301 = vdwg.mxu0
  %v4302 = vmul.f32 %v4299, 0.35355338
  %v4303 = vsel %vm1586, %v4302, -inf
  %4304 = vmax.xlane.f32.xlu0 %v4303
  %v4305 = vpop.xlane.xlu0 %4304
  %v4306 = vsub.f32 %v4302, %v4305
  %v4307 = vmul.f32 %v4306, 1.442695
  %v4308 = vpow.pop %v4307
  %v4309 = vsel %vm1586, %v4308, 0.0
  %4310 = vadd.xlane.f32.xlu0 %v4309
  %v4311 = vpop.xlane.xlu0 %4310
  %v4312 = vrcp.pop %v4311
  %v4313 = vmul.f32 %v4308, %v4312
  %4314 = vrot.lane.b32.xlu0 %v4058, 56
  %v4315 = vpop.permute.xlu0 %4314
  %v4317 = vsel %vm1600, %v4313, 0
  %v4319 = vsel %vm1322, %v4315, 0
  %4321 = vmatprep.subr.mxu0 0.0
  %4322 = vmatpush1.msra.mxu0 0.0
  %4323 = vmatprep.subr.mxu0 0.0
  %4324 = vmatpush1.msra.mxu0 0.0
  %4325 = vmatprep.subr.mxu0 0.0
  %4326 = vmatpush1.msra.mxu0 0.0
  %4327 = vmatprep.subr.mxu0 0.0
  %4328 = vmatpush1.msra.mxu0 0.0
  %4329 = vmatprep.subr.mxu0 0.0
  %4330 = vmatpush1.msra.mxu0 0.0
  %4331 = vmatprep.subr.mxu0 0.0
  %4332 = vmatpush1.msra.mxu0 0.0
  %4333 = vmatprep.subr.mxu0 0.0
  %4334 = vmatpush1.msra.mxu0 0.0
  %4335 = vmatprep.subr.mxu0 0.0
  %4336 = vmatpush1.msra.mxu0 0.0
  %4337 = vmatprep.subr.mxu0 0.0
  %4338 = vmatpush1.msra.mxu0 0.0
  %4339 = vmatprep.subr.mxu0 0.0
  %4340 = vmatpush1.msra.mxu0 0.0
  %4341 = vmatprep.subr.mxu0 0.0
  %4342 = vmatpush1.msra.mxu0 0.0
  %4343 = vmatprep.subr.mxu0 0.0
  %4344 = vmatpush1.msra.mxu0 0.0
  %4345 = vmatprep.subr.mxu0 0.0
  %4346 = vmatpush1.msra.mxu0 0.0
  %4347 = vmatprep.subr.mxu0 0.0
  %4348 = vmatpush1.msra.mxu0 0.0
  %4349 = vmatprep.subr.mxu0 0.0
  %4350 = vmatpush1.msra.mxu0 0.0
  %4351 = vmatprep.subr.mxu0 0.0
  %4352 = vmatpush1.msra.mxu0 %v4319
  %4353 = vmatprep.subr.mxu0 0.0
  %4354 = vmatpush2.msra.mxu0 0.0
  %4355 = vmatprep.subr.mxu0 0.0
  %4356 = vmatpush2.msra.mxu0 0.0
  %4357 = vmatprep.subr.mxu0 0.0
  %4358 = vmatpush2.msra.mxu0 0.0
  %4359 = vmatprep.subr.mxu0 0.0
  %4360 = vmatpush2.msra.mxu0 0.0
  %4361 = vmatprep.subr.mxu0 0.0
  %4362 = vmatpush2.msra.mxu0 0.0
  %4363 = vmatprep.subr.mxu0 0.0
  %4364 = vmatpush2.msra.mxu0 0.0
  %4365 = vmatprep.subr.mxu0 0.0
  %4366 = vmatpush2.msra.mxu0 0.0
  %4367 = vmatprep.subr.mxu0 0.0
  %4368 = vmatpush2.msra.mxu0 0.0
  %4369 = vmatprep.subr.mxu0 0.0
  %4370 = vmatpush2.msra.mxu0 0.0
  %4371 = vmatprep.subr.mxu0 0.0
  %4372 = vmatpush2.msra.mxu0 0.0
  %4373 = vmatprep.subr.mxu0 0.0
  %4374 = vmatpush2.msra.mxu0 0.0
  %4375 = vmatprep.subr.mxu0 0.0
  %4376 = vmatpush2.msra.mxu0 0.0
  %4377 = vmatprep.subr.mxu0 0.0
  %4378 = vmatpush2.msra.mxu0 0.0
  %4379 = vmatprep.subr.mxu0 0.0
  %4380 = vmatpush2.msra.mxu0 0.0
  %4381 = vmatprep.subr.mxu0 0.0
  %4382 = vmatpush2.msra.mxu0 0.0
  %4383 = vmatprep.subr.mxu0 0.0
  %4384 = vmatpush2.msra.mxu0 0.0
  %4385 = vmatprep.mubr.f32.mxu0 0.0
  %4386 = vmatmul.mubr.f32.gmra.mxu0 %v4317
  %v4387 = vpop.f32.mrf.mxu0
  %v4388 = vadd.f32 0.0, %v4387
  %v4389 = vpop.f32.mrf.mxu0
  %4390 = vdwg.mxu0
  %4391 = vrot.lane.b32.xlu0 %v4058, 112
  %v4392 = vpop.permute.xlu0 %4391
  %4393 = vrot.lane.b32.xlu0 %v4058, 80
  %v4394 = vpop.permute.xlu0 %4393
  %v4395 = vsel %vm1510, %v4392, 0
  %v4397 = vsel %vm1510, %v4394, 0
  %4399 = vmatprep.subr.mxu0 0.0
  %4400 = vmatpush1.xpose.msra.mxu0 0.0
  %4401 = vmatprep.subr.mxu0 0.0
  %4402 = vmatpush1.xpose.msra.mxu0 0.0
  %4403 = vmatprep.subr.mxu0 0.0
  %4404 = vmatpush1.xpose.msra.mxu0 0.0
  %4405 = vmatprep.subr.mxu0 0.0
  %4406 = vmatpush1.xpose.msra.mxu0 0.0
  %4407 = vmatprep.subr.mxu0 0.0
  %4408 = vmatpush1.xpose.msra.mxu0 0.0
  %4409 = vmatprep.subr.mxu0 0.0
  %4410 = vmatpush1.xpose.msra.mxu0 0.0
  %4411 = vmatprep.subr.mxu0 0.0
  %4412 = vmatpush1.xpose.msra.mxu0 0.0
  %4413 = vmatprep.subr.mxu0 0.0
  %4414 = vmatpush1.xpose.msra.mxu0 0.0
  %4415 = vmatprep.subr.mxu0 0.0
  %4416 = vmatpush1.xpose.msra.mxu0 0.0
  %4417 = vmatprep.subr.mxu0 0.0
  %4418 = vmatpush1.xpose.msra.mxu0 0.0
  %4419 = vmatprep.subr.mxu0 0.0
  %4420 = vmatpush1.xpose.msra.mxu0 0.0
  %4421 = vmatprep.subr.mxu0 0.0
  %4422 = vmatpush1.xpose.msra.mxu0 0.0
  %4423 = vmatprep.subr.mxu0 0.0
  %4424 = vmatpush1.xpose.msra.mxu0 0.0
  %4425 = vmatprep.subr.mxu0 0.0
  %4426 = vmatpush1.xpose.msra.mxu0 0.0
  %4427 = vmatprep.subr.mxu0 0.0
  %4428 = vmatpush1.xpose.msra.mxu0 0.0
  %4429 = vmatprep.subr.mxu0 0.0
  %4430 = vmatpush1.xpose.msra.mxu0 %v4397
  %4431 = vmatprep.subr.mxu0 0.0
  %4432 = vmatpush2.xpose.msra.mxu0 0.0
  %4433 = vmatprep.subr.mxu0 0.0
  %4434 = vmatpush2.xpose.msra.mxu0 0.0
  %4435 = vmatprep.subr.mxu0 0.0
  %4436 = vmatpush2.xpose.msra.mxu0 0.0
  %4437 = vmatprep.subr.mxu0 0.0
  %4438 = vmatpush2.xpose.msra.mxu0 0.0
  %4439 = vmatprep.subr.mxu0 0.0
  %4440 = vmatpush2.xpose.msra.mxu0 0.0
  %4441 = vmatprep.subr.mxu0 0.0
  %4442 = vmatpush2.xpose.msra.mxu0 0.0
  %4443 = vmatprep.subr.mxu0 0.0
  %4444 = vmatpush2.xpose.msra.mxu0 0.0
  %4445 = vmatprep.subr.mxu0 0.0
  %4446 = vmatpush2.xpose.msra.mxu0 0.0
  %4447 = vmatprep.subr.mxu0 0.0
  %4448 = vmatpush2.xpose.msra.mxu0 0.0
  %4449 = vmatprep.subr.mxu0 0.0
  %4450 = vmatpush2.xpose.msra.mxu0 0.0
  %4451 = vmatprep.subr.mxu0 0.0
  %4452 = vmatpush2.xpose.msra.mxu0 0.0
  %4453 = vmatprep.subr.mxu0 0.0
  %4454 = vmatpush2.xpose.msra.mxu0 0.0
  %4455 = vmatprep.subr.mxu0 0.0
  %4456 = vmatpush2.xpose.msra.mxu0 0.0
  %4457 = vmatprep.subr.mxu0 0.0
  %4458 = vmatpush2.xpose.msra.mxu0 0.0
  %4459 = vmatprep.subr.mxu0 0.0
  %4460 = vmatpush2.xpose.msra.mxu0 0.0
  %4461 = vmatprep.subr.mxu0 0.0
  %4462 = vmatpush2.xpose.msra.mxu0 0.0
  %4463 = vmatprep.mubr.f32.mxu0 0.0
  %4464 = vmatmul.mubr.f32.gmra.mxu0 %v4395
  %v4465 = vpop.f32.mrf.mxu0
  %v4466 = vadd.f32 0.0, %v4465
  %v4467 = vpop.f32.mrf.mxu0
  %4468 = vdwg.mxu0
  %v4469 = vmul.f32 %v4466, 0.35355338
  %v4470 = vsel %vm1586, %v4469, -inf
  %4471 = vmax.xlane.f32.xlu0 %v4470
  %v4472 = vpop.xlane.xlu0 %4471
  %v4473 = vsub.f32 %v4469, %v4472
  %v4474 = vmul.f32 %v4473, 1.442695
  %v4475 = vpow.pop %v4474
  %v4476 = vsel %vm1586, %v4475, 0.0
  %4477 = vadd.xlane.f32.xlu0 %v4476
  %v4478 = vpop.xlane.xlu0 %4477
  %v4479 = vrcp.pop %v4478
  %v4480 = vmul.f32 %v4475, %v4479
  %4481 = vrot.lane.b32.xlu0 %v4058, 48
  %v4482 = vpop.permute.xlu0 %4481
  %v4484 = vsel %vm1600, %v4480, 0
  %v4486 = vsel %vm1322, %v4482, 0
  %4488 = vmatprep.subr.mxu0 0.0
  %4489 = vmatpush1.msra.mxu0 0.0
  %4490 = vmatprep.subr.mxu0 0.0
  %4491 = vmatpush1.msra.mxu0 0.0
  %4492 = vmatprep.subr.mxu0 0.0
  %4493 = vmatpush1.msra.mxu0 0.0
  %4494 = vmatprep.subr.mxu0 0.0
  %4495 = vmatpush1.msra.mxu0 0.0
  %4496 = vmatprep.subr.mxu0 0.0
  %4497 = vmatpush1.msra.mxu0 0.0
  %4498 = vmatprep.subr.mxu0 0.0
  %4499 = vmatpush1.msra.mxu0 0.0
  %4500 = vmatprep.subr.mxu0 0.0
  %4501 = vmatpush1.msra.mxu0 0.0
  %4502 = vmatprep.subr.mxu0 0.0
  %4503 = vmatpush1.msra.mxu0 0.0
  %4504 = vmatprep.subr.mxu0 0.0
  %4505 = vmatpush1.msra.mxu0 0.0
  %4506 = vmatprep.subr.mxu0 0.0
  %4507 = vmatpush1.msra.mxu0 0.0
  %4508 = vmatprep.subr.mxu0 0.0
  %4509 = vmatpush1.msra.mxu0 0.0
  %4510 = vmatprep.subr.mxu0 0.0
  %4511 = vmatpush1.msra.mxu0 0.0
  %4512 = vmatprep.subr.mxu0 0.0
  %4513 = vmatpush1.msra.mxu0 0.0
  %4514 = vmatprep.subr.mxu0 0.0
  %4515 = vmatpush1.msra.mxu0 0.0
  %4516 = vmatprep.subr.mxu0 0.0
  %4517 = vmatpush1.msra.mxu0 0.0
  %4518 = vmatprep.subr.mxu0 0.0
  %4519 = vmatpush1.msra.mxu0 %v4486
  %4520 = vmatprep.subr.mxu0 0.0
  %4521 = vmatpush2.msra.mxu0 0.0
  %4522 = vmatprep.subr.mxu0 0.0
  %4523 = vmatpush2.msra.mxu0 0.0
  %4524 = vmatprep.subr.mxu0 0.0
  %4525 = vmatpush2.msra.mxu0 0.0
  %4526 = vmatprep.subr.mxu0 0.0
  %4527 = vmatpush2.msra.mxu0 0.0
  %4528 = vmatprep.subr.mxu0 0.0
  %4529 = vmatpush2.msra.mxu0 0.0
  %4530 = vmatprep.subr.mxu0 0.0
  %4531 = vmatpush2.msra.mxu0 0.0
  %4532 = vmatprep.subr.mxu0 0.0
  %4533 = vmatpush2.msra.mxu0 0.0
  %4534 = vmatprep.subr.mxu0 0.0
  %4535 = vmatpush2.msra.mxu0 0.0
  %4536 = vmatprep.subr.mxu0 0.0
  %4537 = vmatpush2.msra.mxu0 0.0
  %4538 = vmatprep.subr.mxu0 0.0
  %4539 = vmatpush2.msra.mxu0 0.0
  %4540 = vmatprep.subr.mxu0 0.0
  %4541 = vmatpush2.msra.mxu0 0.0
  %4542 = vmatprep.subr.mxu0 0.0
  %4543 = vmatpush2.msra.mxu0 0.0
  %4544 = vmatprep.subr.mxu0 0.0
  %4545 = vmatpush2.msra.mxu0 0.0
  %4546 = vmatprep.subr.mxu0 0.0
  %4547 = vmatpush2.msra.mxu0 0.0
  %4548 = vmatprep.subr.mxu0 0.0
  %4549 = vmatpush2.msra.mxu0 0.0
  %4550 = vmatprep.subr.mxu0 0.0
  %4551 = vmatpush2.msra.mxu0 0.0
  %4552 = vmatprep.mubr.f32.mxu0 0.0
  %4553 = vmatmul.mubr.f32.gmra.mxu0 %v4484
  %v4554 = vpop.f32.mrf.mxu0
  %v4555 = vadd.f32 0.0, %v4554
  %v4556 = vpop.f32.mrf.mxu0
  %4557 = vdwg.mxu0
  %4558 = vrot.lane.b32.xlu0 %v4058, 104
  %v4559 = vpop.permute.xlu0 %4558
  %4560 = vrot.lane.b32.xlu0 %v4058, 72
  %v4561 = vpop.permute.xlu0 %4560
  %v4562 = vsel %vm1510, %v4559, 0
  %v4564 = vsel %vm1510, %v4561, 0
  %4566 = vmatprep.subr.mxu0 0.0
  %4567 = vmatpush1.xpose.msra.mxu0 0.0
  %4568 = vmatprep.subr.mxu0 0.0
  %4569 = vmatpush1.xpose.msra.mxu0 0.0
  %4570 = vmatprep.subr.mxu0 0.0
  %4571 = vmatpush1.xpose.msra.mxu0 0.0
  %4572 = vmatprep.subr.mxu0 0.0
  %4573 = vmatpush1.xpose.msra.mxu0 0.0
  %4574 = vmatprep.subr.mxu0 0.0
  %4575 = vmatpush1.xpose.msra.mxu0 0.0
  %4576 = vmatprep.subr.mxu0 0.0
  %4577 = vmatpush1.xpose.msra.mxu0 0.0
  %4578 = vmatprep.subr.mxu0 0.0
  %4579 = vmatpush1.xpose.msra.mxu0 0.0
  %4580 = vmatprep.subr.mxu0 0.0
  %4581 = vmatpush1.xpose.msra.mxu0 0.0
  %4582 = vmatprep.subr.mxu0 0.0
  %4583 = vmatpush1.xpose.msra.mxu0 0.0
  %4584 = vmatprep.subr.mxu0 0.0
  %4585 = vmatpush1.xpose.msra.mxu0 0.0
  %4586 = vmatprep.subr.mxu0 0.0
  %4587 = vmatpush1.xpose.msra.mxu0 0.0
  %4588 = vmatprep.subr.mxu0 0.0
  %4589 = vmatpush1.xpose.msra.mxu0 0.0
  %4590 = vmatprep.subr.mxu0 0.0
  %4591 = vmatpush1.xpose.msra.mxu0 0.0
  %4592 = vmatprep.subr.mxu0 0.0
  %4593 = vmatpush1.xpose.msra.mxu0 0.0
  %4594 = vmatprep.subr.mxu0 0.0
  %4595 = vmatpush1.xpose.msra.mxu0 0.0
  %4596 = vmatprep.subr.mxu0 0.0
  %4597 = vmatpush1.xpose.msra.mxu0 %v4564
  %4598 = vmatprep.subr.mxu0 0.0
  %4599 = vmatpush2.xpose.msra.mxu0 0.0
  %4600 = vmatprep.subr.mxu0 0.0
  %4601 = vmatpush2.xpose.msra.mxu0 0.0
  %4602 = vmatprep.subr.mxu0 0.0
  %4603 = vmatpush2.xpose.msra.mxu0 0.0
  %4604 = vmatprep.subr.mxu0 0.0
  %4605 = vmatpush2.xpose.msra.mxu0 0.0
  %4606 = vmatprep.subr.mxu0 0.0
  %4607 = vmatpush2.xpose.msra.mxu0 0.0
  %4608 = vmatprep.subr.mxu0 0.0
  %4609 = vmatpush2.xpose.msra.mxu0 0.0
  %4610 = vmatprep.subr.mxu0 0.0
  %4611 = vmatpush2.xpose.msra.mxu0 0.0
  %4612 = vmatprep.subr.mxu0 0.0
  %4613 = vmatpush2.xpose.msra.mxu0 0.0
  %4614 = vmatprep.subr.mxu0 0.0
  %4615 = vmatpush2.xpose.msra.mxu0 0.0
  %4616 = vmatprep.subr.mxu0 0.0
  %4617 = vmatpush2.xpose.msra.mxu0 0.0
  %4618 = vmatprep.subr.mxu0 0.0
  %4619 = vmatpush2.xpose.msra.mxu0 0.0
  %4620 = vmatprep.subr.mxu0 0.0
  %4621 = vmatpush2.xpose.msra.mxu0 0.0
  %4622 = vmatprep.subr.mxu0 0.0
  %4623 = vmatpush2.xpose.msra.mxu0 0.0
  %4624 = vmatprep.subr.mxu0 0.0
  %4625 = vmatpush2.xpose.msra.mxu0 0.0
  %4626 = vmatprep.subr.mxu0 0.0
  %4627 = vmatpush2.xpose.msra.mxu0 0.0
  %4628 = vmatprep.subr.mxu0 0.0
  %4629 = vmatpush2.xpose.msra.mxu0 0.0
  %4630 = vmatprep.mubr.f32.mxu0 0.0
  %4631 = vmatmul.mubr.f32.gmra.mxu0 %v4562
  %v4632 = vpop.f32.mrf.mxu0
  %v4633 = vadd.f32 0.0, %v4632
  %v4634 = vpop.f32.mrf.mxu0
  %4635 = vdwg.mxu0
  %v4636 = vmul.f32 %v4633, 0.35355338
  %v4637 = vsel %vm1586, %v4636, -inf
  %4638 = vmax.xlane.f32.xlu0 %v4637
  %v4639 = vpop.xlane.xlu0 %4638
  %v4640 = vsub.f32 %v4636, %v4639
  %v4641 = vmul.f32 %v4640, 1.442695
  %v4642 = vpow.pop %v4641
  %v4643 = vsel %vm1586, %v4642, 0.0
  %4644 = vadd.xlane.f32.xlu0 %v4643
  %v4645 = vpop.xlane.xlu0 %4644
  %v4646 = vrcp.pop %v4645
  %v4647 = vmul.f32 %v4642, %v4646
  %4648 = vrot.lane.b32.xlu0 %v4058, 40
  %v4649 = vpop.permute.xlu0 %4648
  %v4651 = vsel %vm1600, %v4647, 0
  %v4653 = vsel %vm1322, %v4649, 0
  %4655 = vmatprep.subr.mxu0 0.0
  %4656 = vmatpush1.msra.mxu0 0.0
  %4657 = vmatprep.subr.mxu0 0.0
  %4658 = vmatpush1.msra.mxu0 0.0
  %4659 = vmatprep.subr.mxu0 0.0
  %4660 = vmatpush1.msra.mxu0 0.0
  %4661 = vmatprep.subr.mxu0 0.0
  %4662 = vmatpush1.msra.mxu0 0.0
  %4663 = vmatprep.subr.mxu0 0.0
  %4664 = vmatpush1.msra.mxu0 0.0
  %4665 = vmatprep.subr.mxu0 0.0
  %4666 = vmatpush1.msra.mxu0 0.0
  %4667 = vmatprep.subr.mxu0 0.0
  %4668 = vmatpush1.msra.mxu0 0.0
  %4669 = vmatprep.subr.mxu0 0.0
  %4670 = vmatpush1.msra.mxu0 0.0
  %4671 = vmatprep.subr.mxu0 0.0
  %4672 = vmatpush1.msra.mxu0 0.0
  %4673 = vmatprep.subr.mxu0 0.0
  %4674 = vmatpush1.msra.mxu0 0.0
  %4675 = vmatprep.subr.mxu0 0.0
  %4676 = vmatpush1.msra.mxu0 0.0
  %4677 = vmatprep.subr.mxu0 0.0
  %4678 = vmatpush1.msra.mxu0 0.0
  %4679 = vmatprep.subr.mxu0 0.0
  %4680 = vmatpush1.msra.mxu0 0.0
  %4681 = vmatprep.subr.mxu0 0.0
  %4682 = vmatpush1.msra.mxu0 0.0
  %4683 = vmatprep.subr.mxu0 0.0
  %4684 = vmatpush1.msra.mxu0 0.0
  %4685 = vmatprep.subr.mxu0 0.0
  %4686 = vmatpush1.msra.mxu0 %v4653
  %4687 = vmatprep.subr.mxu0 0.0
  %4688 = vmatpush2.msra.mxu0 0.0
  %4689 = vmatprep.subr.mxu0 0.0
  %4690 = vmatpush2.msra.mxu0 0.0
  %4691 = vmatprep.subr.mxu0 0.0
  %4692 = vmatpush2.msra.mxu0 0.0
  %4693 = vmatprep.subr.mxu0 0.0
  %4694 = vmatpush2.msra.mxu0 0.0
  %4695 = vmatprep.subr.mxu0 0.0
  %4696 = vmatpush2.msra.mxu0 0.0
  %4697 = vmatprep.subr.mxu0 0.0
  %4698 = vmatpush2.msra.mxu0 0.0
  %4699 = vmatprep.subr.mxu0 0.0
  %4700 = vmatpush2.msra.mxu0 0.0
  %4701 = vmatprep.subr.mxu0 0.0
  %4702 = vmatpush2.msra.mxu0 0.0
  %4703 = vmatprep.subr.mxu0 0.0
  %4704 = vmatpush2.msra.mxu0 0.0
  %4705 = vmatprep.subr.mxu0 0.0
  %4706 = vmatpush2.msra.mxu0 0.0
  %4707 = vmatprep.subr.mxu0 0.0
  %4708 = vmatpush2.msra.mxu0 0.0
  %4709 = vmatprep.subr.mxu0 0.0
  %4710 = vmatpush2.msra.mxu0 0.0
  %4711 = vmatprep.subr.mxu0 0.0
  %4712 = vmatpush2.msra.mxu0 0.0
  %4713 = vmatprep.subr.mxu0 0.0
  %4714 = vmatpush2.msra.mxu0 0.0
  %4715 = vmatprep.subr.mxu0 0.0
  %4716 = vmatpush2.msra.mxu0 0.0
  %4717 = vmatprep.subr.mxu0 0.0
  %4718 = vmatpush2.msra.mxu0 0.0
  %4719 = vmatprep.mubr.f32.mxu0 0.0
  %4720 = vmatmul.mubr.f32.gmra.mxu0 %v4651
  %v4721 = vpop.f32.mrf.mxu0
  %v4722 = vadd.f32 0.0, %v4721
  %v4723 = vpop.f32.mrf.mxu0
  %4724 = vdwg.mxu0
  %4726 = vrot.lane.b32.xlu0 %v4388, 8
  %v4727 = vpop.permute.xlu0 %4726
  %4730 = vrot.lane.b32.xlu0 %v4555, 16
  %v4731 = vpop.permute.xlu0 %4730
  %4734 = vrot.lane.b32.xlu0 %v4722, 24
  %v4735 = vpop.permute.xlu0 %4734
  %v4737 = vsel %vm1510, %v4221, %v4727
  %v4738 = vsel %vm2190, %v4737, %v4731
  %v4739 = vsel %vm2192, %v4738, %v4735
  %v4741 = vrot.slane %v4739, 3
  %v4743 = vsel %vm1322, %v4054, %v4741
  %s4744 = scalar_lea.vmem %s10, 32
  %v4745 = vld [vmem:[%s4744] sm:$0xff]
  %v4746 = vld [vmem:[%s4744 + $0x8] sm:$0xff]
  %v4747 = vld [vmem:[%s4744 + $0x10] sm:$0xff]
  %v4748 = vld [vmem:[%s4744 + $0x18] sm:$0xff]
  %v4750 = vsel %vm1326, %v4743, 0
  %v4752 = vsel %vm1326, %v4741, 0
  %4754 = vmatprep.subr.mxu0 0.0
  %4755 = vmatpush1.msra.mxu0 0.0
  %4756 = vmatprep.subr.mxu0 0.0
  %4757 = vmatpush1.msra.mxu0 0.0
  %4758 = vmatprep.subr.mxu0 0.0
  %4759 = vmatpush1.msra.mxu0 0.0
  %4760 = vmatprep.subr.mxu0 0.0
  %4761 = vmatpush1.msra.mxu0 0.0
  %4762 = vmatprep.subr.mxu0 0.0
  %4763 = vmatpush1.msra.mxu0 0.0
  %4764 = vmatprep.subr.mxu0 0.0
  %4765 = vmatpush1.msra.mxu0 0.0
  %4766 = vmatprep.subr.mxu0 0.0
  %4767 = vmatpush1.msra.mxu0 0.0
  %4768 = vmatprep.subr.mxu0 0.0
  %4769 = vmatpush1.msra.mxu0 0.0
  %4770 = vmatprep.subr.mxu0 0.0
  %4771 = vmatpush1.msra.mxu0 0.0
  %4772 = vmatprep.subr.mxu0 0.0
  %4773 = vmatpush1.msra.mxu0 0.0
  %4774 = vmatprep.subr.mxu0 0.0
  %4775 = vmatpush1.msra.mxu0 0.0
  %4776 = vmatprep.subr.mxu0 0.0
  %4777 = vmatpush1.msra.mxu0 0.0
  %4778 = vmatprep.subr.mxu0 0.0
  %4779 = vmatpush1.msra.mxu0 %v4748
  %4780 = vmatprep.subr.mxu0 0.0
  %4781 = vmatpush1.msra.mxu0 %v4747
  %4782 = vmatprep.subr.mxu0 0.0
  %4783 = vmatpush1.msra.mxu0 %v4746
  %4784 = vmatprep.subr.mxu0 0.0
  %4785 = vmatpush1.msra.mxu0 %v4745
  %4786 = vmatprep.subr.mxu0 0.0
  %4787 = vmatpush2.msra.mxu0 0.0
  %4788 = vmatprep.subr.mxu0 0.0
  %4789 = vmatpush2.msra.mxu0 0.0
  %4790 = vmatprep.subr.mxu0 0.0
  %4791 = vmatpush2.msra.mxu0 0.0
  %4792 = vmatprep.subr.mxu0 0.0
  %4793 = vmatpush2.msra.mxu0 0.0
  %4794 = vmatprep.subr.mxu0 0.0
  %4795 = vmatpush2.msra.mxu0 0.0
  %4796 = vmatprep.subr.mxu0 0.0
  %4797 = vmatpush2.msra.mxu0 0.0
  %4798 = vmatprep.subr.mxu0 0.0
  %4799 = vmatpush2.msra.mxu0 0.0
  %4800 = vmatprep.subr.mxu0 0.0
  %4801 = vmatpush2.msra.mxu0 0.0
  %4802 = vmatprep.subr.mxu0 0.0
  %4803 = vmatpush2.msra.mxu0 0.0
  %4804 = vmatprep.subr.mxu0 0.0
  %4805 = vmatpush2.msra.mxu0 0.0
  %4806 = vmatprep.subr.mxu0 0.0
  %4807 = vmatpush2.msra.mxu0 0.0
  %4808 = vmatprep.subr.mxu0 0.0
  %4809 = vmatpush2.msra.mxu0 0.0
  %4810 = vmatprep.subr.mxu0 0.0
  %4811 = vmatpush2.msra.mxu0 0.0
  %4812 = vmatprep.subr.mxu0 0.0
  %4813 = vmatpush2.msra.mxu0 0.0
  %4814 = vmatprep.subr.mxu0 0.0
  %4815 = vmatpush2.msra.mxu0 0.0
  %4816 = vmatprep.subr.mxu0 0.0
  %4817 = vmatpush2.msra.mxu0 0.0
  %4818 = vmatprep.mubr.f32.mxu0 0.0
  %4819 = vmatmul.mubr.f32.gmra.mxu0 %v4750
  %v4820 = vpop.f32.mrf.mxu0
  %v4821 = vadd.f32 0.0, %v4820
  %v4822 = vpop.f32.mrf.mxu0
  %4823 = vmatprep.mubr.f32.mxu0 0.0
  %4824 = vmatmul.mubr.f32.gmra.mxu0 %v4752
  %v4825 = vpop.f32.mrf.mxu0
  %v4826 = vadd.f32 0.0, %v4825
  %v4827 = vpop.f32.mrf.mxu0
  %4828 = vdwg.mxu0
  %v4829 = vadd.f32 %v3231, %v4821
  %v4830 = vadd.f32 %v3232, %v4826
  %s4831 = scalar_lea.vmem %s11, 1
  %v4832 = vld [vmem:[%s4831] sm:$0x1]
  %v4834 = vlaneseq
  %v4835 = vshrl.u32 %v4834, 7
  %v4836 = vsub.s32 0, %v4835
  %v4837 = vrot.slane %v4832, %v4836
  %v4839 = vadd.f32 %v4829, %v4837
  %v4840 = vadd.f32 %v4830, %v4837
  %s4841 = scalar_lea.vmem %s12, 1
  %v4842 = vld [vmem:[%s4841] sm:$0x1]
  %s4843 = scalar_lea.vmem %s13, 1
  %v4844 = vld [vmem:[%s4843] sm:$0x1]
  %v4845 = vsel %vm1326, %v4839, 0.0
  %4846 = vadd.xlane.f32.xlu0 %v4845
  %v4847 = vpop.xlane.xlu0 %4846
  %v4848 = vsel %vm1330, %v4840, 0.0
  %4849 = vadd.xlane.f32.xlu0 %v4848
  %v4850 = vpop.xlane.xlu0 %4849
  %v4851 = vmul.f32 %v4847, %v1334
  %v4852 = vmul.f32 %v4850, %v1334
  %v4853 = vsub.f32 %v4839, %v4851
  %v4854 = vsub.f32 %v4840, %v4852
  %v4855 = vmul.f32 %v4853, %v4853
  %v4856 = vmul.f32 %v4854, %v4854
  %v4857 = vsel %vm1326, %v4855, 0.0
  %4858 = vadd.xlane.f32.xlu0 %v4857
  %v4859 = vpop.xlane.xlu0 %4858
  %v4860 = vsel %vm1330, %v4856, 0.0
  %4861 = vadd.xlane.f32.xlu0 %v4860
  %v4862 = vpop.xlane.xlu0 %4861
  %v4863 = vmul.f32 %v4859, %v1334
  %v4864 = vmul.f32 %v4862, %v1334
  %v4865 = vadd.f32 %v4863, 1e-05
  %v4866 = vadd.f32 %v4864, 1e-05
  %v4867 = vrsqrt.pop %v4865
  %v4868 = vrsqrt.pop %v4866
  %v4869 = vmul.f32 %v4853, %v4867
  %v4870 = vmul.f32 %v4854, %v4868
  %v4872 = vlaneseq
  %v4873 = vshrl.u32 %v4872, 7
  %v4874 = vsub.s32 0, %v4873
  %v4875 = vrot.slane %v4842, %v4874
  %v4877 = vmul.f32 %v4869, %v4875
  %v4878 = vmul.f32 %v4870, %v4875
  %v4880 = vlaneseq
  %v4881 = vshrl.u32 %v4880, 7
  %v4882 = vsub.s32 0, %v4881
  %v4883 = vrot.slane %v4844, %v4882
  %v4885 = vadd.f32 %v4877, %v4883
  %v4886 = vadd.f32 %v4878, %v4883
  %s4887 = scalar_lea.vmem %s14, 32
  %v4888 = vld [vmem:[%s4887] sm:$0xff]
  %v4889 = vld [vmem:[%s4887 + $0x8] sm:$0xff]
  %v4890 = vld [vmem:[%s4887 + $0x10] sm:$0xff]
  %v4891 = vld [vmem:[%s4887 + $0x18] sm:$0xff]
  %s4892 = scalar_lea.vmem %s15, 1
  %v4893 = vld [vmem:[%s4892] sm:$0x1]
  %v4895 = vlaneseq
  %v4896 = vshrl.u32 %v4895, 7
  %v4897 = vsub.s32 0, %v4896
  %v4898 = vrot.slane %v4893, %v4897
  %v4901 = vsel %vm1326, %v4885, 0
  %v4904 = vsel %vm1326, %v4886, 0
  %4906 = vmatprep.subr.mxu0 0.0
  %4907 = vmatpush1.msra.mxu0 0.0
  %4908 = vmatprep.subr.mxu0 0.0
  %4909 = vmatpush1.msra.mxu0 0.0
  %4910 = vmatprep.subr.mxu0 0.0
  %4911 = vmatpush1.msra.mxu0 0.0
  %4912 = vmatprep.subr.mxu0 0.0
  %4913 = vmatpush1.msra.mxu0 0.0
  %4914 = vmatprep.subr.mxu0 0.0
  %4915 = vmatpush1.msra.mxu0 0.0
  %4916 = vmatprep.subr.mxu0 0.0
  %4917 = vmatpush1.msra.mxu0 0.0
  %4918 = vmatprep.subr.mxu0 0.0
  %4919 = vmatpush1.msra.mxu0 0.0
  %4920 = vmatprep.subr.mxu0 0.0
  %4921 = vmatpush1.msra.mxu0 0.0
  %4922 = vmatprep.subr.mxu0 0.0
  %4923 = vmatpush1.msra.mxu0 0.0
  %4924 = vmatprep.subr.mxu0 0.0
  %4925 = vmatpush1.msra.mxu0 0.0
  %4926 = vmatprep.subr.mxu0 0.0
  %4927 = vmatpush1.msra.mxu0 0.0
  %4928 = vmatprep.subr.mxu0 0.0
  %4929 = vmatpush1.msra.mxu0 0.0
  %4930 = vmatprep.subr.mxu0 0.0
  %4931 = vmatpush1.msra.mxu0 %v4891
  %4932 = vmatprep.subr.mxu0 0.0
  %4933 = vmatpush1.msra.mxu0 %v4890
  %4934 = vmatprep.subr.mxu0 0.0
  %4935 = vmatpush1.msra.mxu0 %v4889
  %4936 = vmatprep.subr.mxu0 0.0
  %4937 = vmatpush1.msra.mxu0 %v4888
  %4938 = vmatprep.subr.mxu0 0.0
  %4939 = vmatpush2.msra.mxu0 0.0
  %4940 = vmatprep.subr.mxu0 0.0
  %4941 = vmatpush2.msra.mxu0 0.0
  %4942 = vmatprep.subr.mxu0 0.0
  %4943 = vmatpush2.msra.mxu0 0.0
  %4944 = vmatprep.subr.mxu0 0.0
  %4945 = vmatpush2.msra.mxu0 0.0
  %4946 = vmatprep.subr.mxu0 0.0
  %4947 = vmatpush2.msra.mxu0 0.0
  %4948 = vmatprep.subr.mxu0 0.0
  %4949 = vmatpush2.msra.mxu0 0.0
  %4950 = vmatprep.subr.mxu0 0.0
  %4951 = vmatpush2.msra.mxu0 0.0
  %4952 = vmatprep.subr.mxu0 0.0
  %4953 = vmatpush2.msra.mxu0 0.0
  %4954 = vmatprep.subr.mxu0 0.0
  %4955 = vmatpush2.msra.mxu0 0.0
  %4956 = vmatprep.subr.mxu0 0.0
  %4957 = vmatpush2.msra.mxu0 0.0
  %4958 = vmatprep.subr.mxu0 0.0
  %4959 = vmatpush2.msra.mxu0 0.0
  %4960 = vmatprep.subr.mxu0 0.0
  %4961 = vmatpush2.msra.mxu0 0.0
  %4962 = vmatprep.subr.mxu0 0.0
  %4963 = vmatpush2.msra.mxu0 0.0
  %4964 = vmatprep.subr.mxu0 0.0
  %4965 = vmatpush2.msra.mxu0 0.0
  %4966 = vmatprep.subr.mxu0 0.0
  %4967 = vmatpush2.msra.mxu0 0.0
  %4968 = vmatprep.subr.mxu0 0.0
  %4969 = vmatpush2.msra.mxu0 0.0
  %4970 = vmatprep.mubr.f32.mxu0 0.0
  %4971 = vmatmul.mubr.f32.gmra.mxu0 %v4901
  %v4972 = vpop.f32.mrf.mxu0
  %v4973 = vadd.f32 %v4898, %v4972
  %v4974 = vpop.f32.mrf.mxu0
  %4975 = vmatprep.mubr.f32.mxu0 0.0
  %4976 = vmatmul.mubr.f32.gmra.mxu0 %v4904
  %v4977 = vpop.f32.mrf.mxu0
  %v4978 = vadd.f32 %v4898, %v4977
  %v4979 = vpop.f32.mrf.mxu0
  %4980 = vdwg.mxu0
  %v4981 = vmul.f32 %v4973, 1.702
  %v4982 = vmul.f32 %v4978, 1.702
  %v4983 = vxor.u32 %v4981, 2147483648
  %v4984 = vxor.u32 %v4982, 2147483648
  %v4985 = vmul.f32 %v4983, 1.442695
  %v4986 = vpow.pop %v4985
  %v4987 = vmul.f32 %v4984, 1.442695
  %v4988 = vpow.pop %v4987
  %v4989 = vadd.f32 %v4986, 1.0
  %v4990 = vadd.f32 %v4988, 1.0
  %v4991 = vrcp.pop %v4989
  %v4992 = vmul.f32 1.0, %v4991
  %v4993 = vrcp.pop %v4990
  %v4994 = vmul.f32 1.0, %v4993
  %v4995 = vmul.f32 %v4973, %v4992
  %v4996 = vmul.f32 %v4978, %v4994
  %s4997 = scalar_lea.vmem %s16, 128
  %v4998 = vld [vmem:[%s4997] sm:$0xff]
  %v4999 = vld [vmem:[%s4997 + $0x8] sm:$0xff]
  %v5000 = vld [vmem:[%s4997 + $0x10] sm:$0xff]
  %v5001 = vld [vmem:[%s4997 + $0x18] sm:$0xff]
  %v5002 = vld [vmem:[%s4997 + $0x20] sm:$0xff]
  %v5003 = vld [vmem:[%s4997 + $0x28] sm:$0xff]
  %v5004 = vld [vmem:[%s4997 + $0x30] sm:$0xff]
  %v5005 = vld [vmem:[%s4997 + $0x38] sm:$0xff]
  %v5006 = vld [vmem:[%s4997 + $0x40] sm:$0xff]
  %v5007 = vld [vmem:[%s4997 + $0x48] sm:$0xff]
  %v5008 = vld [vmem:[%s4997 + $0x50] sm:$0xff]
  %v5009 = vld [vmem:[%s4997 + $0x58] sm:$0xff]
  %v5010 = vld [vmem:[%s4997 + $0x60] sm:$0xff]
  %v5011 = vld [vmem:[%s4997 + $0x68] sm:$0xff]
  %v5012 = vld [vmem:[%s4997 + $0x70] sm:$0xff]
  %v5013 = vld [vmem:[%s4997 + $0x78] sm:$0xff]
  %5014 = vmatprep.subr.mxu0 0.0
  %5015 = vmatpush1.msra.mxu0 %v5013
  %5016 = vmatprep.subr.mxu0 0.0
  %5017 = vmatpush1.msra.mxu0 %v5012
  %5018 = vmatprep.subr.mxu0 0.0
  %5019 = vmatpush1.msra.mxu0 %v5011
  %5020 = vmatprep.subr.mxu0 0.0
  %5021 = vmatpush1.msra.mxu0 %v5010
  %5022 = vmatprep.subr.mxu0 0.0
  %5023 = vmatpush1.msra.mxu0 %v5009
  %5024 = vmatprep.subr.mxu0 0.0
  %5025 = vmatpush1.msra.mxu0 %v5008
  %5026 = vmatprep.subr.mxu0 0.0
  %5027 = vmatpush1.msra.mxu0 %v5007
  %5028 = vmatprep.subr.mxu0 0.0
  %5029 = vmatpush1.msra.mxu0 %v5006
  %5030 = vmatprep.subr.mxu0 0.0
  %5031 = vmatpush1.msra.mxu0 %v5005
  %5032 = vmatprep.subr.mxu0 0.0
  %5033 = vmatpush1.msra.mxu0 %v5004
  %5034 = vmatprep.subr.mxu0 0.0
  %5035 = vmatpush1.msra.mxu0 %v5003
  %5036 = vmatprep.subr.mxu0 0.0
  %5037 = vmatpush1.msra.mxu0 %v5002
  %5038 = vmatprep.subr.mxu0 0.0
  %5039 = vmatpush1.msra.mxu0 %v5001
  %5040 = vmatprep.subr.mxu0 0.0
  %5041 = vmatpush1.msra.mxu0 %v5000
  %5042 = vmatprep.subr.mxu0 0.0
  %5043 = vmatpush1.msra.mxu0 %v4999
  %5044 = vmatprep.subr.mxu0 0.0
  %5045 = vmatpush1.msra.mxu0 %v4998
  %5046 = vmatprep.subr.mxu0 0.0
  %5047 = vmatpush2.msra.mxu0 0.0
  %5048 = vmatprep.subr.mxu0 0.0
  %5049 = vmatpush2.msra.mxu0 0.0
  %5050 = vmatprep.subr.mxu0 0.0
  %5051 = vmatpush2.msra.mxu0 0.0
  %5052 = vmatprep.subr.mxu0 0.0
  %5053 = vmatpush2.msra.mxu0 0.0
  %5054 = vmatprep.subr.mxu0 0.0
  %5055 = vmatpush2.msra.mxu0 0.0
  %5056 = vmatprep.subr.mxu0 0.0
  %5057 = vmatpush2.msra.mxu0 0.0
  %5058 = vmatprep.subr.mxu0 0.0
  %5059 = vmatpush2.msra.mxu0 0.0
  %5060 = vmatprep.subr.mxu0 0.0
  %5061 = vmatpush2.msra.mxu0 0.0
  %5062 = vmatprep.subr.mxu0 0.0
  %5063 = vmatpush2.msra.mxu0 0.0
  %5064 = vmatprep.subr.mxu0 0.0
  %5065 = vmatpush2.msra.mxu0 0.0
  %5066 = vmatprep.subr.mxu0 0.0
  %5067 = vmatpush2.msra.mxu0 0.0
  %5068 = vmatprep.subr.mxu0 0.0
  %5069 = vmatpush2.msra.mxu0 0.0
  %5070 = vmatprep.subr.mxu0 0.0
  %5071 = vmatpush2.msra.mxu0 0.0
  %5072 = vmatprep.subr.mxu0 0.0
  %5073 = vmatpush2.msra.mxu0 0.0
  %5074 = vmatprep.subr.mxu0 0.0
  %5075 = vmatpush2.msra.mxu0 0.0
  %5076 = vmatprep.subr.mxu0 0.0
  %5077 = vmatpush2.msra.mxu0 0.0
  %5078 = vmatprep.mubr.f32.mxu0 0.0
  %5079 = vmatmul.mubr.f32.gmra.mxu0 %v4995
  %v5080 = vpop.f32.mrf.mxu0
  %v5081 = vadd.f32 0.0, %v5080
  %v5082 = vpop.f32.mrf.mxu0
  %5083 = vmatprep.mubr.f32.mxu0 0.0
  %5084 = vmatmul.mubr.f32.gmra.mxu0 %v4996
  %v5085 = vpop.f32.mrf.mxu0
  %v5086 = vadd.f32 0.0, %v5085
  %v5087 = vpop.f32.mrf.mxu0
  %5088 = vdwg.mxu0
  %v5089 = vadd.f32 %v4839, %v5081
  %v5090 = vadd.f32 %v4840, %v5086
  %s5091 = scalar_lea.vmem %s17, 1
  %v5092 = vld [vmem:[%s5091] sm:$0x1]
  %v5094 = vlaneseq
  %v5095 = vshrl.u32 %v5094, 7
  %v5096 = vsub.s32 0, %v5095
  %v5097 = vrot.slane %v5092, %v5096
  %v5099 = vadd.f32 %v5089, %v5097
  %v5100 = vadd.f32 %v5090, %v5097
  %5101 = vst.msk [vmem:[%s18] sm:$0xff] %vm1326, %v5099
  %5102 = vst.msk [vmem:[%s18 + $0x8] sm:$0x3] %vm1330, %v5100
  // Predicated region
  $region74: #{_visual_forward.1} parent=0 // pred_check
    _
  $region75: #{_visual_forward.1} parent=0 // pred_check_branch
    %5104 = sbr.rel (0) target = $region77
  $region76: #{_visual_forward.1} parent=0 // pred_region
    _
  $region77: #{_visual_forward.1} parent=0 // pred_fallthru
    _
  // Predicated region
  $region78: #{_visual_forward.1} parent=0 // pred_check
    _
  $region79: #{_visual_forward.1} parent=0 // pred_check_branch
    %5106 = sbr.rel (0) target = $region81
  $region80: #{_visual_forward.1} parent=0 // pred_region
    _
  $region81: #{_visual_forward.1} parent=0 // pred_fallthru
    _

</llo_original>
